<compile_context>
chip_gen: v7x
topology: tpu7x:2x2x1
jax: 0.10.0
libtpu: 0.0.40
codegen_flags: <defaults>
</compile_context>

<pallas_src>
import functools

import jax
import jax.numpy as jnp
from jax.experimental import pallas as pl
from jax.experimental.pallas import tpu as pltpu


def _cbam_kernel(x_ref, w1t_ref, w2t_ref, wsa_ref, o_ref, pad_ref,
                 *, Bblk, C, CR, H, W, K, PAD):
    HW = H * W
    Hp = H + 2 * PAD
    Wp = W + 2 * PAD

    xb = x_ref[...].astype(jnp.float32)                       # (Bblk, C, HW) lane-dense

    # ---------------- channel attention -------------------------------------
    # Spatial max / avg pools (lane reductions), batched over the block.
    maxp = jnp.max(xb, axis=2)                                 # (Bblk, C)
    avgp = jnp.sum(xb, axis=2) * (1.0 / HW)                    # (Bblk, C)  (no ones const)
    pooled = jnp.concatenate([maxp, avgp], axis=0)             # (2*Bblk, C)

    # Shared 1x1 MLP applied to all pooled vectors of the block at once.
    h = jnp.dot(pooled, w1t_ref[...], preferred_element_type=jnp.float32)   # (2*Bblk, CR)
    h = jnp.where(h > 0, h, 0.01 * h)                          # LeakyReLU(0.01)
    att = jnp.dot(h, w2t_ref[...], preferred_element_type=jnp.float32)      # (2*Bblk, C)
    ca = jax.nn.sigmoid(att[:Bblk, :] + att[Bblk:, :])         # (Bblk, C)

    x1 = xb * ca[:, :, None]                                   # (Bblk, C, HW), stays in regs

    # ---------------- spatial attention --------------------------------------
    # Channel max / mean in the lane-dense layout (sublane reductions).
    mx = jnp.max(x1, axis=1)                                   # (Bblk, HW)
    av = jnp.sum(x1, axis=1) * (1.0 / C)                       # (Bblk, HW)

    # Zero-padded conv planes: one slab store per plane (interior fully
    # rewritten each step; full re-zero kept for megacore safety -- tiny buffer).
    pad_ref[...] = jnp.zeros((Bblk, 2, Hp, Wp), jnp.float32)
    pad_ref[:, 0, PAD:PAD + H, PAD:PAD + W] = mx.reshape(Bblk, H, W)
    pad_ref[:, 1, PAD:PAD + H, PAD:PAD + W] = av.reshape(Bblk, H, W)

    # KxK conv: padded planes loaded once into registers, kw lane shifts
    # hoisted out of the kh loop (2*K lane shifts + 2*K*K sublane-shift FMAs).
    planes = pad_ref[...]                                      # (Bblk, 2, Hp, Wp)
    acc = jnp.zeros((Bblk, H, W), jnp.float32)
    for c in range(2):
        plane = planes[:, c, :, :]                             # (Bblk, Hp, Wp)
        for kw in range(K):
            col = plane[:, :, kw:kw + W]                       # (Bblk, Hp, W) lane shift
            for kh in range(K):
                wv = wsa_ref[c * K * K + kh * K + kw]          # SMEM scalar tap
                acc = acc + wv * col[:, kh:kh + H, :]          # sublane slice + FMA
    sa = jax.nn.sigmoid(acc)                                   # (Bblk, H, W)

    # Final scale applied straight from registers: one relayout to the
    # lane-dense (Bblk, 1, HW) shape, then a full-width unmasked store.
    o_ref[...] = (x1 * sa.reshape(Bblk, 1, HW)).astype(o_ref.dtype)


def _pick_block_batch(B, per_image_bytes):
    """~0.5-1 MiB per grid step, >=2 steps when possible (v7x dual TC)."""
    target = max(1, (1 << 20) // max(per_image_bytes, 1))
    bblk = min(B, target)
    if B >= 2:
        bblk = min(bblk, max(1, B // 2))   # keep at least 2 parallel grid steps
    while B % bblk:                        # largest divisor of B <= bblk
        bblk -= 1
    return bblk


def cbam_pallas(x, w1, w2, w_sa, *, kernel_size=7, block_batch=None):
    """x: (B, C, H, W); w1: (C//r, C); w2: (C, C//r); w_sa: (2, K, K)."""
    B, C, H, W = x.shape
    CR = w1.shape[0]
    K = kernel_size
    PAD = 3 if K == 7 else 1
    HW = H * W
    Hp = H + 2 * PAD
    Wp = W + 2 * PAD

    if block_batch is None:
        block_batch = _pick_block_batch(B, C * HW * x.dtype.itemsize)
    Bblk = block_batch
    assert B % Bblk == 0
    grid = (B // Bblk,)

    x_flat = x.reshape(B, C, HW)            # lane-dense I/O layout (HW multiple of 128)
    w1t = jnp.transpose(w1)                 # (C, CR)  pre-transposed host-side
    w2t = jnp.transpose(w2)                 # (CR, C)
    wsa_flat = w_sa.reshape(-1)             # (2*K*K,), (c, kh, kw) order

    kern = functools.partial(_cbam_kernel, Bblk=Bblk, C=C, CR=CR,
                             H=H, W=W, K=K, PAD=PAD)
    out_flat = pl.pallas_call(
        kern,
        out_shape=jax.ShapeDtypeStruct((B, C, HW), x.dtype),
        grid=grid,
        in_specs=[
            pl.BlockSpec((Bblk, C, HW), lambda b: (b, 0, 0)),     # x (lane-dense)
            pl.BlockSpec((C, CR), lambda b: (0, 0)),              # w1^T (VMEM)
            pl.BlockSpec((CR, C), lambda b: (0, 0)),              # w2^T (VMEM)
            pl.BlockSpec(memory_space=pltpu.MemorySpace.SMEM),    # conv taps (scalars)
        ],
        out_specs=pl.BlockSpec((Bblk, C, HW), lambda b: (b, 0, 0)),
        scratch_shapes=[
            pltpu.VMEM((Bblk, 2, Hp, Wp), jnp.float32),           # padded conv planes
        ],
        compiler_params=pltpu.CompilerParams(
            dimension_semantics=("parallel",),   # batch-block steps shard across TCs
            vmem_limit_bytes=48 * 1024 * 1024),  # v7x-safe (64 MiB physical)
    )(x_flat, w1t, w2t, wsa_flat)
    return out_flat.reshape(B, C, H, W)


def cbam_ref(x, w1, w2, w_sa):
    """Pure-JAX reference mirroring the PyTorch module (NCHW)."""
    maxp = jnp.max(x, axis=(2, 3))                               # (B, C)
    avgp = jnp.mean(x, axis=(2, 3))                              # (B, C)

    def mlp(p):
        h = p @ w1.T
        h = jnp.where(h > 0, h, 0.01 * h)
        return h @ w2.T

    ca = jax.nn.sigmoid(mlp(maxp) + mlp(avgp))                   # (B, C)
    x1 = x * ca[:, :, None, None]

    mx = jnp.max(x1, axis=1, keepdims=True)
    av = jnp.mean(x1, axis=1, keepdims=True)
    sa_in = jnp.concatenate([mx, av], axis=1)                    # (B, 2, H, W)
    p = (w_sa.shape[-1] - 1) // 2
    conv = jax.lax.conv_general_dilated(
        sa_in, w_sa[None], window_strides=(1, 1),
        padding=((p, p), (p, p)),
        dimension_numbers=("NCHW", "OIHW", "NCHW"))
    sa = jax.nn.sigmoid(conv)
    return x1 * sa


if __name__ == "__main__":
    B, C, RATIO, H, W, K = 2, 32, 16, 16, 16, 7
    CR = C // RATIO                                              # hidden = 2

    key = jax.random.PRNGKey(0)
    kx, k1, k2, k3 = jax.random.split(key, 4)
    x = jax.random.normal(kx, (B, C, H, W), jnp.float32)
    # deterministic synthetic parameters (Conv2d weights, bias=False)
    w1 = 0.2 * jax.random.normal(k1, (CR, C), jnp.float32)       # 1x1 conv #1
    w2 = 0.2 * jax.random.normal(k2, (C, CR), jnp.float32)       # 1x1 conv #2
    w_sa = 0.1 * jax.random.normal(k3, (2, K, K), jnp.float32)   # 7x7 spatial conv

    out = jax.block_until_ready(cbam_pallas(x, w1, w2, w_sa, kernel_size=K))
    ref = cbam_ref(x, w1, w2, w_sa)

    assert out.shape == ref.shape == (B, C, H, W)
    if not bool(jnp.allclose(out, ref, atol=1e-4, rtol=1e-4)):
        raise AssertionError(
            f"mismatch, max abs diff = {float(jnp.max(jnp.abs(out - ref)))}")
    print("KERNEL_OK")
</pallas_src>

<mosaic_0001>
module attributes {stable_mosaic.version = 11 : i64} {
  func.func @_cbam_kernel(%arg0: i32, %arg1: memref<1x32x256xf32, #tpu.memory_space<vmem>>, %arg2: memref<32x2xf32, #tpu.memory_space<vmem>>, %arg3: memref<2x32xf32, #tpu.memory_space<vmem>>, %arg4: memref<98xf32, #tpu.memory_space<smem>>, %arg5: memref<1x32x256xf32, #tpu.memory_space<vmem>>, %arg6: memref<1x2x22x22xf32, #tpu.memory_space<vmem>>) attributes {dimension_semantics = [#tpu.dimension_semantics<parallel>], iteration_bounds = array<i64: 2>, scalar_prefetch = 0 : i64, scratch_operands = 1 : i64, tpu.core_type = #tpu.core_type<tc>, window_params = [{transform_indices = @transform_0, window_bounds = array<i64: 1, 32, 256>}, {pipeline_mode = #tpu.pipeline_mode<synchronous>, transform_indices = @transform_1, window_bounds = array<i64: 32, 2>}, {pipeline_mode = #tpu.pipeline_mode<synchronous>, transform_indices = @transform_2, window_bounds = array<i64: 2, 32>}, {transform_indices = @transform_3, window_bounds = array<i64: 98>}, {transform_indices = @transform_4, window_bounds = array<i64: 1, 32, 256>}]} {
    %c0 = arith.constant 0 : index
    %c0_0 = arith.constant 0 : index
    %c0_1 = arith.constant 0 : index
    %0 = vector.load %arg1[%c0, %c0_0, %c0_1] : memref<1x32x256xf32, #tpu.memory_space<vmem>>, vector<1x32x256xf32>
    %cst = arith.constant dense<0xFF800000> : vector<1x32xf32>
    %1 = vector.multi_reduction <maximumf>, %0, %cst [2] : vector<1x32x256xf32> to vector<1x32xf32>
    %cst_2 = arith.constant dense<0.000000e+00> : vector<1x32xf32>
    %2 = vector.multi_reduction <add>, %0, %cst_2 [2] : vector<1x32x256xf32> to vector<1x32xf32>
    %cst_3 = arith.constant 3.906250e-03 : f32
    %3 = vector.broadcast %cst_3 : f32 to vector<1x32xf32>
    %4 = arith.mulf %2, %3 : vector<1x32xf32>
    %5 = tpu.concatenate %1, %4 in 0 : vector<1x32xf32>, vector<1x32xf32> -> vector<2x32xf32>
    %c0_4 = arith.constant 0 : index
    %c0_5 = arith.constant 0 : index
    %6 = vector.load %arg2[%c0_4, %c0_5] : memref<32x2xf32, #tpu.memory_space<vmem>>, vector<32x2xf32>
    %cst_6 = arith.constant dense<0.000000e+00> : vector<2x2xf32>
    %7 = tpu.matmul %5, %6, %cst_6 {dimension_numbers = #tpu.dot_dimension_numbers<[1], [0], [0], [1], [0, 0, 1, 1], [], []>} : vector<2x32xf32>, vector<32x2xf32>, vector<2x2xf32> -> vector<2x2xf32>
    %cst_7 = arith.constant 0.000000e+00 : f32
    %8 = vector.broadcast %cst_7 : f32 to vector<2x2xf32>
    %9 = arith.cmpf ogt, %7, %8 : vector<2x2xf32>
    %cst_8 = arith.constant 0.00999999977 : f32
    %10 = vector.broadcast %cst_8 : f32 to vector<2x2xf32>
    %11 = arith.mulf %10, %7 : vector<2x2xf32>
    %12 = arith.select %9, %7, %11 : vector<2x2xi1>, vector<2x2xf32>
    %c0_9 = arith.constant 0 : index
    %c0_10 = arith.constant 0 : index
    %13 = vector.load %arg3[%c0_9, %c0_10] : memref<2x32xf32, #tpu.memory_space<vmem>>, vector<2x32xf32>
    %cst_11 = arith.constant dense<0.000000e+00> : vector<2x32xf32>
    %14 = tpu.matmul %12, %13, %cst_11 {dimension_numbers = #tpu.dot_dimension_numbers<[1], [0], [0], [1], [0, 0, 1, 1], [], []>} : vector<2x2xf32>, vector<2x32xf32>, vector<2x32xf32> -> vector<2x32xf32>
    %15 = vector.extract_strided_slice %14 {offsets = [0, 0], sizes = [1, 32], strides = [1, 1]} : vector<2x32xf32> to vector<1x32xf32>
    %16 = vector.extract_strided_slice %14 {offsets = [1, 0], sizes = [1, 32], strides = [1, 1]} : vector<2x32xf32> to vector<1x32xf32>
    %17 = arith.addf %15, %16 : vector<1x32xf32>
    %18 = arith.negf %17 : vector<1x32xf32>
    %19 = math.exp %18 : vector<1x32xf32>
    %cst_12 = arith.constant 1.000000e+00 : f32
    %20 = vector.broadcast %cst_12 : f32 to vector<1x32xf32>
    %21 = arith.addf %20, %19 : vector<1x32xf32>
    %22 = arith.divf %20, %21 : vector<1x32xf32>
    %23 = vector.shape_cast %22 : vector<1x32xf32> to vector<1x32x1xf32>
    %24 = vector.broadcast %23 : vector<1x32x1xf32> to vector<1x32x256xf32>
    %25 = arith.mulf %0, %24 : vector<1x32x256xf32>
    %cst_13 = arith.constant dense<0xFF800000> : vector<1x256xf32>
    %26 = vector.multi_reduction <maximumf>, %25, %cst_13 [1] : vector<1x32x256xf32> to vector<1x256xf32>
    %cst_14 = arith.constant dense<0.000000e+00> : vector<1x256xf32>
    %27 = vector.multi_reduction <add>, %25, %cst_14 [1] : vector<1x32x256xf32> to vector<1x256xf32>
    %cst_15 = arith.constant 3.125000e-02 : f32
    %28 = vector.broadcast %cst_15 : f32 to vector<1x256xf32>
    %29 = arith.mulf %27, %28 : vector<1x256xf32>
    %cst_16 = arith.constant 0.000000e+00 : f32
    %30 = vector.broadcast %cst_16 : f32 to vector<1x2x22x22xf32>
    %c0_17 = arith.constant 0 : index
    %c0_18 = arith.constant 0 : index
    %c0_19 = arith.constant 0 : index
    %c0_20 = arith.constant 0 : index
    %31 = vector.load %arg6[%c0_17, %c0_18, %c0_19, %c0_20] : memref<1x2x22x22xf32, #tpu.memory_space<vmem>>, vector<1x2x22x22xf32>
    tpu.vector_store %arg6[%c0_17, %c0_18, %c0_19, %c0_20], %30 {strides = array<i32>} : memref<1x2x22x22xf32, #tpu.memory_space<vmem>>, vector<1x2x22x22xf32>,
    %32 = vector.shape_cast %26 : vector<1x256xf32> to vector<1x16x16xf32>
    %c0_21 = arith.constant 0 : index
    %c0_22 = arith.constant 0 : index
    %c3 = arith.constant 3 : index
    %c3_23 = arith.constant 3 : index
    %33 = vector.load %arg6[%c0_21, %c0_22, %c3, %c3_23] : memref<1x2x22x22xf32, #tpu.memory_space<vmem>>, vector<1x1x16x16xf32>
    %34 = vector.shape_cast %33 : vector<1x1x16x16xf32> to vector<1x16x16xf32>
    %35 = vector.shape_cast %32 : vector<1x16x16xf32> to vector<1x1x16x16xf32>
    tpu.vector_store %arg6[%c0_21, %c0_22, %c3, %c3_23], %35 {strides = array<i32>} : memref<1x2x22x22xf32, #tpu.memory_space<vmem>>, vector<1x1x16x16xf32>,
    %36 = vector.shape_cast %29 : vector<1x256xf32> to vector<1x16x16xf32>
    %c0_24 = arith.constant 0 : index
    %c1 = arith.constant 1 : index
    %c3_25 = arith.constant 3 : index
    %c3_26 = arith.constant 3 : index
    %37 = vector.load %arg6[%c0_24, %c1, %c3_25, %c3_26] : memref<1x2x22x22xf32, #tpu.memory_space<vmem>>, vector<1x1x16x16xf32>
    %38 = vector.shape_cast %37 : vector<1x1x16x16xf32> to vector<1x16x16xf32>
    %39 = vector.shape_cast %36 : vector<1x16x16xf32> to vector<1x1x16x16xf32>
    tpu.vector_store %arg6[%c0_24, %c1, %c3_25, %c3_26], %39 {strides = array<i32>} : memref<1x2x22x22xf32, #tpu.memory_space<vmem>>, vector<1x1x16x16xf32>,
    %c0_27 = arith.constant 0 : index
    %c0_28 = arith.constant 0 : index
    %c0_29 = arith.constant 0 : index
    %c0_30 = arith.constant 0 : index
    %40 = vector.load %arg6[%c0_27, %c0_28, %c0_29, %c0_30] : memref<1x2x22x22xf32, #tpu.memory_space<vmem>>, vector<1x2x22x22xf32>
    %cst_31 = arith.constant 0.000000e+00 : f32
    %41 = vector.broadcast %cst_31 : f32 to vector<1x16x16xf32>
    %42 = vector.extract_strided_slice %40 {offsets = [0, 0, 0, 0], sizes = [1, 1, 22, 22], strides = [1, 1, 1, 1]} : vector<1x2x22x22xf32> to vector<1x1x22x22xf32>
    %43 = vector.shape_cast %42 : vector<1x1x22x22xf32> to vector<1x22x22xf32>
    %44 = vector.extract_strided_slice %43 {offsets = [0, 0, 0], sizes = [1, 22, 16], strides = [1, 1, 1]} : vector<1x22x22xf32> to vector<1x22x16xf32>
    %c0_32 = arith.constant 0 : index
    %45 = memref.load %arg4[%c0_32] : memref<98xf32, #tpu.memory_space<smem>>
    %46 = vector.extract_strided_slice %44 {offsets = [0, 0, 0], sizes = [1, 16, 16], strides = [1, 1, 1]} : vector<1x22x16xf32> to vector<1x16x16xf32>
    %47 = vector.broadcast %45 : f32 to vector<1x16x16xf32>
    %48 = arith.mulf %47, %46 : vector<1x16x16xf32>
    %49 = arith.addf %41, %48 : vector<1x16x16xf32>
    %c7 = arith.constant 7 : index
    %50 = memref.load %arg4[%c7] : memref<98xf32, #tpu.memory_space<smem>>
    %51 = vector.extract_strided_slice %44 {offsets = [0, 1, 0], sizes = [1, 16, 16], strides = [1, 1, 1]} : vector<1x22x16xf32> to vector<1x16x16xf32>
    %52 = vector.broadcast %50 : f32 to vector<1x16x16xf32>
    %53 = arith.mulf %52, %51 : vector<1x16x16xf32>
    %54 = arith.addf %49, %53 : vector<1x16x16xf32>
    %c14 = arith.constant 14 : index
    %55 = memref.load %arg4[%c14] : memref<98xf32, #tpu.memory_space<smem>>
    %56 = vector.extract_strided_slice %44 {offsets = [0, 2, 0], sizes = [1, 16, 16], strides = [1, 1, 1]} : vector<1x22x16xf32> to vector<1x16x16xf32>
    %57 = vector.broadcast %55 : f32 to vector<1x16x16xf32>
    %58 = arith.mulf %57, %56 : vector<1x16x16xf32>
    %59 = arith.addf %54, %58 : vector<1x16x16xf32>
    %c21 = arith.constant 21 : index
    %60 = memref.load %arg4[%c21] : memref<98xf32, #tpu.memory_space<smem>>
    %61 = vector.extract_strided_slice %44 {offsets = [0, 3, 0], sizes = [1, 16, 16], strides = [1, 1, 1]} : vector<1x22x16xf32> to vector<1x16x16xf32>
    %62 = vector.broadcast %60 : f32 to vector<1x16x16xf32>
    %63 = arith.mulf %62, %61 : vector<1x16x16xf32>
    %64 = arith.addf %59, %63 : vector<1x16x16xf32>
    %c28 = arith.constant 28 : index
    %65 = memref.load %arg4[%c28] : memref<98xf32, #tpu.memory_space<smem>>
    %66 = vector.extract_strided_slice %44 {offsets = [0, 4, 0], sizes = [1, 16, 16], strides = [1, 1, 1]} : vector<1x22x16xf32> to vector<1x16x16xf32>
    %67 = vector.broadcast %65 : f32 to vector<1x16x16xf32>
    %68 = arith.mulf %67, %66 : vector<1x16x16xf32>
    %69 = arith.addf %64, %68 : vector<1x16x16xf32>
    %c35 = arith.constant 35 : index
    %70 = memref.load %arg4[%c35] : memref<98xf32, #tpu.memory_space<smem>>
    %71 = vector.extract_strided_slice %44 {offsets = [0, 5, 0], sizes = [1, 16, 16], strides = [1, 1, 1]} : vector<1x22x16xf32> to vector<1x16x16xf32>
    %72 = vector.broadcast %70 : f32 to vector<1x16x16xf32>
    %73 = arith.mulf %72, %71 : vector<1x16x16xf32>
    %74 = arith.addf %69, %73 : vector<1x16x16xf32>
    %c42 = arith.constant 42 : index
    %75 = memref.load %arg4[%c42] : memref<98xf32, #tpu.memory_space<smem>>
    %76 = vector.extract_strided_slice %44 {offsets = [0, 6, 0], sizes = [1, 16, 16], strides = [1, 1, 1]} : vector<1x22x16xf32> to vector<1x16x16xf32>
    %77 = vector.broadcast %75 : f32 to vector<1x16x16xf32>
    %78 = arith.mulf %77, %76 : vector<1x16x16xf32>
    %79 = arith.addf %74, %78 : vector<1x16x16xf32>
    %80 = vector.extract_strided_slice %43 {offsets = [0, 0, 1], sizes = [1, 22, 16], strides = [1, 1, 1]} : vector<1x22x22xf32> to vector<1x22x16xf32>
    %c1_33 = arith.constant 1 : index
    %81 = memref.load %arg4[%c1_33] : memref<98xf32, #tpu.memory_space<smem>>
    %82 = vector.extract_strided_slice %80 {offsets = [0, 0, 0], sizes = [1, 16, 16], strides = [1, 1, 1]} : vector<1x22x16xf32> to vector<1x16x16xf32>
    %83 = vector.broadcast %81 : f32 to vector<1x16x16xf32>
    %84 = arith.mulf %83, %82 : vector<1x16x16xf32>
    %85 = arith.addf %79, %84 : vector<1x16x16xf32>
    %c8 = arith.constant 8 : index
    %86 = memref.load %arg4[%c8] : memref<98xf32, #tpu.memory_space<smem>>
    %87 = vector.extract_strided_slice %80 {offsets = [0, 1, 0], sizes = [1, 16, 16], strides = [1, 1, 1]} : vector<1x22x16xf32> to vector<1x16x16xf32>
    %88 = vector.broadcast %86 : f32 to vector<1x16x16xf32>
    %89 = arith.mulf %88, %87 : vector<1x16x16xf32>
    %90 = arith.addf %85, %89 : vector<1x16x16xf32>
    %c15 = arith.constant 15 : index
    %91 = memref.load %arg4[%c15] : memref<98xf32, #tpu.memory_space<smem>>
    %92 = vector.extract_strided_slice %80 {offsets = [0, 2, 0], sizes = [1, 16, 16], strides = [1, 1, 1]} : vector<1x22x16xf32> to vector<1x16x16xf32>
    %93 = vector.broadcast %91 : f32 to vector<1x16x16xf32>
    %94 = arith.mulf %93, %92 : vector<1x16x16xf32>
    %95 = arith.addf %90, %94 : vector<1x16x16xf32>
    %c22 = arith.constant 22 : index
    %96 = memref.load %arg4[%c22] : memref<98xf32, #tpu.memory_space<smem>>
    %97 = vector.extract_strided_slice %80 {offsets = [0, 3, 0], sizes = [1, 16, 16], strides = [1, 1, 1]} : vector<1x22x16xf32> to vector<1x16x16xf32>
    %98 = vector.broadcast %96 : f32 to vector<1x16x16xf32>
    %99 = arith.mulf %98, %97 : vector<1x16x16xf32>
    %100 = arith.addf %95, %99 : vector<1x16x16xf32>
    %c29 = arith.constant 29 : index
    %101 = memref.load %arg4[%c29] : memref<98xf32, #tpu.memory_space<smem>>
    %102 = vector.extract_strided_slice %80 {offsets = [0, 4, 0], sizes = [1, 16, 16], strides = [1, 1, 1]} : vector<1x22x16xf32> to vector<1x16x16xf32>
    %103 = vector.broadcast %101 : f32 to vector<1x16x16xf32>
    %104 = arith.mulf %103, %102 : vector<1x16x16xf32>
    %105 = arith.addf %100, %104 : vector<1x16x16xf32>
    %c36 = arith.constant 36 : index
    %106 = memref.load %arg4[%c36] : memref<98xf32, #tpu.memory_space<smem>>
    %107 = vector.extract_strided_slice %80 {offsets = [0, 5, 0], sizes = [1, 16, 16], strides = [1, 1, 1]} : vector<1x22x16xf32> to vector<1x16x16xf32>
    %108 = vector.broadcast %106 : f32 to vector<1x16x16xf32>
    %109 = arith.mulf %108, %107 : vector<1x16x16xf32>
    %110 = arith.addf %105, %109 : vector<1x16x16xf32>
    %c43 = arith.constant 43 : index
    %111 = memref.load %arg4[%c43] : memref<98xf32, #tpu.memory_space<smem>>
    %112 = vector.extract_strided_slice %80 {offsets = [0, 6, 0], sizes = [1, 16, 16], strides = [1, 1, 1]} : vector<1x22x16xf32> to vector<1x16x16xf32>
    %113 = vector.broadcast %111 : f32 to vector<1x16x16xf32>
    %114 = arith.mulf %113, %112 : vector<1x16x16xf32>
    %115 = arith.addf %110, %114 : vector<1x16x16xf32>
    %116 = vector.extract_strided_slice %43 {offsets = [0, 0, 2], sizes = [1, 22, 16], strides = [1, 1, 1]} : vector<1x22x22xf32> to vector<1x22x16xf32>
    %c2 = arith.constant 2 : index
    %117 = memref.load %arg4[%c2] : memref<98xf32, #tpu.memory_space<smem>>
    %118 = vector.extract_strided_slice %116 {offsets = [0, 0, 0], sizes = [1, 16, 16], strides = [1, 1, 1]} : vector<1x22x16xf32> to vector<1x16x16xf32>
    %119 = vector.broadcast %117 : f32 to vector<1x16x16xf32>
    %120 = arith.mulf %119, %118 : vector<1x16x16xf32>
    %121 = arith.addf %115, %120 : vector<1x16x16xf32>
    %c9 = arith.constant 9 : index
    %122 = memref.load %arg4[%c9] : memref<98xf32, #tpu.memory_space<smem>>
    %123 = vector.extract_strided_slice %116 {offsets = [0, 1, 0], sizes = [1, 16, 16], strides = [1, 1, 1]} : vector<1x22x16xf32> to vector<1x16x16xf32>
    %124 = vector.broadcast %122 : f32 to vector<1x16x16xf32>
    %125 = arith.mulf %124, %123 : vector<1x16x16xf32>
    %126 = arith.addf %121, %125 : vector<1x16x16xf32>
    %c16 = arith.constant 16 : index
    %127 = memref.load %arg4[%c16] : memref<98xf32, #tpu.memory_space<smem>>
    %128 = vector.extract_strided_slice %116 {offsets = [0, 2, 0], sizes = [1, 16, 16], strides = [1, 1, 1]} : vector<1x22x16xf32> to vector<1x16x16xf32>
    %129 = vector.broadcast %127 : f32 to vector<1x16x16xf32>
    %130 = arith.mulf %129, %128 : vector<1x16x16xf32>
    %131 = arith.addf %126, %130 : vector<1x16x16xf32>
    %c23 = arith.constant 23 : index
    %132 = memref.load %arg4[%c23] : memref<98xf32, #tpu.memory_space<smem>>
    %133 = vector.extract_strided_slice %116 {offsets = [0, 3, 0], sizes = [1, 16, 16], strides = [1, 1, 1]} : vector<1x22x16xf32> to vector<1x16x16xf32>
    %134 = vector.broadcast %132 : f32 to vector<1x16x16xf32>
    %135 = arith.mulf %134, %133 : vector<1x16x16xf32>
    %136 = arith.addf %131, %135 : vector<1x16x16xf32>
    %c30 = arith.constant 30 : index
    %137 = memref.load %arg4[%c30] : memref<98xf32, #tpu.memory_space<smem>>
    %138 = vector.extract_strided_slice %116 {offsets = [0, 4, 0], sizes = [1, 16, 16], strides = [1, 1, 1]} : vector<1x22x16xf32> to vector<1x16x16xf32>
    %139 = vector.broadcast %137 : f32 to vector<1x16x16xf32>
    %140 = arith.mulf %139, %138 : vector<1x16x16xf32>
    %141 = arith.addf %136, %140 : vector<1x16x16xf32>
    %c37 = arith.constant 37 : index
    %142 = memref.load %arg4[%c37] : memref<98xf32, #tpu.memory_space<smem>>
    %143 = vector.extract_strided_slice %116 {offsets = [0, 5, 0], sizes = [1, 16, 16], strides = [1, 1, 1]} : vector<1x22x16xf32> to vector<1x16x16xf32>
    %144 = vector.broadcast %142 : f32 to vector<1x16x16xf32>
    %145 = arith.mulf %144, %143 : vector<1x16x16xf32>
    %146 = arith.addf %141, %145 : vector<1x16x16xf32>
    %c44 = arith.constant 44 : index
    %147 = memref.load %arg4[%c44] : memref<98xf32, #tpu.memory_space<smem>>
    %148 = vector.extract_strided_slice %116 {offsets = [0, 6, 0], sizes = [1, 16, 16], strides = [1, 1, 1]} : vector<1x22x16xf32> to vector<1x16x16xf32>
    %149 = vector.broadcast %147 : f32 to vector<1x16x16xf32>
    %150 = arith.mulf %149, %148 : vector<1x16x16xf32>
    %151 = arith.addf %146, %150 : vector<1x16x16xf32>
    %152 = vector.extract_strided_slice %43 {offsets = [0, 0, 3], sizes = [1, 22, 16], strides = [1, 1, 1]} : vector<1x22x22xf32> to vector<1x22x16xf32>
    %c3_34 = arith.constant 3 : index
    %153 = memref.load %arg4[%c3_34] : memref<98xf32, #tpu.memory_space<smem>>
    %154 = vector.extract_strided_slice %152 {offsets = [0, 0, 0], sizes = [1, 16, 16], strides = [1, 1, 1]} : vector<1x22x16xf32> to vector<1x16x16xf32>
    %155 = vector.broadcast %153 : f32 to vector<1x16x16xf32>
    %156 = arith.mulf %155, %154 : vector<1x16x16xf32>
    %157 = arith.addf %151, %156 : vector<1x16x16xf32>
    %c10 = arith.constant 10 : index
    %158 = memref.load %arg4[%c10] : memref<98xf32, #tpu.memory_space<smem>>
    %159 = vector.extract_strided_slice %152 {offsets = [0, 1, 0], sizes = [1, 16, 16], strides = [1, 1, 1]} : vector<1x22x16xf32> to vector<1x16x16xf32>
    %160 = vector.broadcast %158 : f32 to vector<1x16x16xf32>
    %161 = arith.mulf %160, %159 : vector<1x16x16xf32>
    %162 = arith.addf %157, %161 : vector<1x16x16xf32>
    %c17 = arith.constant 17 : index
    %163 = memref.load %arg4[%c17] : memref<98xf32, #tpu.memory_space<smem>>
    %164 = vector.extract_strided_slice %152 {offsets = [0, 2, 0], sizes = [1, 16, 16], strides = [1, 1, 1]} : vector<1x22x16xf32> to vector<1x16x16xf32>
    %165 = vector.broadcast %163 : f32 to vector<1x16x16xf32>
    %166 = arith.mulf %165, %164 : vector<1x16x16xf32>
    %167 = arith.addf %162, %166 : vector<1x16x16xf32>
    %c24 = arith.constant 24 : index
    %168 = memref.load %arg4[%c24] : memref<98xf32, #tpu.memory_space<smem>>
    %169 = vector.extract_strided_slice %152 {offsets = [0, 3, 0], sizes = [1, 16, 16], strides = [1, 1, 1]} : vector<1x22x16xf32> to vector<1x16x16xf32>
    %170 = vector.broadcast %168 : f32 to vector<1x16x16xf32>
    %171 = arith.mulf %170, %169 : vector<1x16x16xf32>
    %172 = arith.addf %167, %171 : vector<1x16x16xf32>
    %c31 = arith.constant 31 : index
    %173 = memref.load %arg4[%c31] : memref<98xf32, #tpu.memory_space<smem>>
    %174 = vector.extract_strided_slice %152 {offsets = [0, 4, 0], sizes = [1, 16, 16], strides = [1, 1, 1]} : vector<1x22x16xf32> to vector<1x16x16xf32>
    %175 = vector.broadcast %173 : f32 to vector<1x16x16xf32>
    %176 = arith.mulf %175, %174 : vector<1x16x16xf32>
    %177 = arith.addf %172, %176 : vector<1x16x16xf32>
    %c38 = arith.constant 38 : index
    %178 = memref.load %arg4[%c38] : memref<98xf32, #tpu.memory_space<smem>>
    %179 = vector.extract_strided_slice %152 {offsets = [0, 5, 0], sizes = [1, 16, 16], strides = [1, 1, 1]} : vector<1x22x16xf32> to vector<1x16x16xf32>
    %180 = vector.broadcast %178 : f32 to vector<1x16x16xf32>
    %181 = arith.mulf %180, %179 : vector<1x16x16xf32>
    %182 = arith.addf %177, %181 : vector<1x16x16xf32>
    %c45 = arith.constant 45 : index
    %183 = memref.load %arg4[%c45] : memref<98xf32, #tpu.memory_space<smem>>
    %184 = vector.extract_strided_slice %152 {offsets = [0, 6, 0], sizes = [1, 16, 16], strides = [1, 1, 1]} : vector<1x22x16xf32> to vector<1x16x16xf32>
    %185 = vector.broadcast %183 : f32 to vector<1x16x16xf32>
    %186 = arith.mulf %185, %184 : vector<1x16x16xf32>
    %187 = arith.addf %182, %186 : vector<1x16x16xf32>
    %188 = vector.extract_strided_slice %43 {offsets = [0, 0, 4], sizes = [1, 22, 16], strides = [1, 1, 1]} : vector<1x22x22xf32> to vector<1x22x16xf32>
    %c4 = arith.constant 4 : index
    %189 = memref.load %arg4[%c4] : memref<98xf32, #tpu.memory_space<smem>>
    %190 = vector.extract_strided_slice %188 {offsets = [0, 0, 0], sizes = [1, 16, 16], strides = [1, 1, 1]} : vector<1x22x16xf32> to vector<1x16x16xf32>
    %191 = vector.broadcast %189 : f32 to vector<1x16x16xf32>
    %192 = arith.mulf %191, %190 : vector<1x16x16xf32>
    %193 = arith.addf %187, %192 : vector<1x16x16xf32>
    %c11 = arith.constant 11 : index
    %194 = memref.load %arg4[%c11] : memref<98xf32, #tpu.memory_space<smem>>
    %195 = vector.extract_strided_slice %188 {offsets = [0, 1, 0], sizes = [1, 16, 16], strides = [1, 1, 1]} : vector<1x22x16xf32> to vector<1x16x16xf32>
    %196 = vector.broadcast %194 : f32 to vector<1x16x16xf32>
    %197 = arith.mulf %196, %195 : vector<1x16x16xf32>
    %198 = arith.addf %193, %197 : vector<1x16x16xf32>
    %c18 = arith.constant 18 : index
    %199 = memref.load %arg4[%c18] : memref<98xf32, #tpu.memory_space<smem>>
    %200 = vector.extract_strided_slice %188 {offsets = [0, 2, 0], sizes = [1, 16, 16], strides = [1, 1, 1]} : vector<1x22x16xf32> to vector<1x16x16xf32>
    %201 = vector.broadcast %199 : f32 to vector<1x16x16xf32>
    %202 = arith.mulf %201, %200 : vector<1x16x16xf32>
    %203 = arith.addf %198, %202 : vector<1x16x16xf32>
    %c25 = arith.constant 25 : index
    %204 = memref.load %arg4[%c25] : memref<98xf32, #tpu.memory_space<smem>>
    %205 = vector.extract_strided_slice %188 {offsets = [0, 3, 0], sizes = [1, 16, 16], strides = [1, 1, 1]} : vector<1x22x16xf32> to vector<1x16x16xf32>
    %206 = vector.broadcast %204 : f32 to vector<1x16x16xf32>
    %207 = arith.mulf %206, %205 : vector<1x16x16xf32>
    %208 = arith.addf %203, %207 : vector<1x16x16xf32>
    %c32 = arith.constant 32 : index
    %209 = memref.load %arg4[%c32] : memref<98xf32, #tpu.memory_space<smem>>
    %210 = vector.extract_strided_slice %188 {offsets = [0, 4, 0], sizes = [1, 16, 16], strides = [1, 1, 1]} : vector<1x22x16xf32> to vector<1x16x16xf32>
    %211 = vector.broadcast %209 : f32 to vector<1x16x16xf32>
    %212 = arith.mulf %211, %210 : vector<1x16x16xf32>
    %213 = arith.addf %208, %212 : vector<1x16x16xf32>
    %c39 = arith.constant 39 : index
    %214 = memref.load %arg4[%c39] : memref<98xf32, #tpu.memory_space<smem>>
    %215 = vector.extract_strided_slice %188 {offsets = [0, 5, 0], sizes = [1, 16, 16], strides = [1, 1, 1]} : vector<1x22x16xf32> to vector<1x16x16xf32>
    %216 = vector.broadcast %214 : f32 to vector<1x16x16xf32>
    %217 = arith.mulf %216, %215 : vector<1x16x16xf32>
    %218 = arith.addf %213, %217 : vector<1x16x16xf32>
    %c46 = arith.constant 46 : index
    %219 = memref.load %arg4[%c46] : memref<98xf32, #tpu.memory_space<smem>>
    %220 = vector.extract_strided_slice %188 {offsets = [0, 6, 0], sizes = [1, 16, 16], strides = [1, 1, 1]} : vector<1x22x16xf32> to vector<1x16x16xf32>
    %221 = vector.broadcast %219 : f32 to vector<1x16x16xf32>
    %222 = arith.mulf %221, %220 : vector<1x16x16xf32>
    %223 = arith.addf %218, %222 : vector<1x16x16xf32>
    %224 = vector.extract_strided_slice %43 {offsets = [0, 0, 5], sizes = [1, 22, 16], strides = [1, 1, 1]} : vector<1x22x22xf32> to vector<1x22x16xf32>
    %c5 = arith.constant 5 : index
    %225 = memref.load %arg4[%c5] : memref<98xf32, #tpu.memory_space<smem>>
    %226 = vector.extract_strided_slice %224 {offsets = [0, 0, 0], sizes = [1, 16, 16], strides = [1, 1, 1]} : vector<1x22x16xf32> to vector<1x16x16xf32>
    %227 = vector.broadcast %225 : f32 to vector<1x16x16xf32>
    %228 = arith.mulf %227, %226 : vector<1x16x16xf32>
    %229 = arith.addf %223, %228 : vector<1x16x16xf32>
    %c12 = arith.constant 12 : index
    %230 = memref.load %arg4[%c12] : memref<98xf32, #tpu.memory_space<smem>>
    %231 = vector.extract_strided_slice %224 {offsets = [0, 1, 0], sizes = [1, 16, 16], strides = [1, 1, 1]} : vector<1x22x16xf32> to vector<1x16x16xf32>
    %232 = vector.broadcast %230 : f32 to vector<1x16x16xf32>
    %233 = arith.mulf %232, %231 : vector<1x16x16xf32>
    %234 = arith.addf %229, %233 : vector<1x16x16xf32>
    %c19 = arith.constant 19 : index
    %235 = memref.load %arg4[%c19] : memref<98xf32, #tpu.memory_space<smem>>
    %236 = vector.extract_strided_slice %224 {offsets = [0, 2, 0], sizes = [1, 16, 16], strides = [1, 1, 1]} : vector<1x22x16xf32> to vector<1x16x16xf32>
    %237 = vector.broadcast %235 : f32 to vector<1x16x16xf32>
    %238 = arith.mulf %237, %236 : vector<1x16x16xf32>
    %239 = arith.addf %234, %238 : vector<1x16x16xf32>
    %c26 = arith.constant 26 : index
    %240 = memref.load %arg4[%c26] : memref<98xf32, #tpu.memory_space<smem>>
    %241 = vector.extract_strided_slice %224 {offsets = [0, 3, 0], sizes = [1, 16, 16], strides = [1, 1, 1]} : vector<1x22x16xf32> to vector<1x16x16xf32>
    %242 = vector.broadcast %240 : f32 to vector<1x16x16xf32>
    %243 = arith.mulf %242, %241 : vector<1x16x16xf32>
    %244 = arith.addf %239, %243 : vector<1x16x16xf32>
    %c33 = arith.constant 33 : index
    %245 = memref.load %arg4[%c33] : memref<98xf32, #tpu.memory_space<smem>>
    %246 = vector.extract_strided_slice %224 {offsets = [0, 4, 0], sizes = [1, 16, 16], strides = [1, 1, 1]} : vector<1x22x16xf32> to vector<1x16x16xf32>
    %247 = vector.broadcast %245 : f32 to vector<1x16x16xf32>
    %248 = arith.mulf %247, %246 : vector<1x16x16xf32>
    %249 = arith.addf %244, %248 : vector<1x16x16xf32>
    %c40 = arith.constant 40 : index
    %250 = memref.load %arg4[%c40] : memref<98xf32, #tpu.memory_space<smem>>
    %251 = vector.extract_strided_slice %224 {offsets = [0, 5, 0], sizes = [1, 16, 16], strides = [1, 1, 1]} : vector<1x22x16xf32> to vector<1x16x16xf32>
    %252 = vector.broadcast %250 : f32 to vector<1x16x16xf32>
    %253 = arith.mulf %252, %251 : vector<1x16x16xf32>
    %254 = arith.addf %249, %253 : vector<1x16x16xf32>
    %c47 = arith.constant 47 : index
    %255 = memref.load %arg4[%c47] : memref<98xf32, #tpu.memory_space<smem>>
    %256 = vector.extract_strided_slice %224 {offsets = [0, 6, 0], sizes = [1, 16, 16], strides = [1, 1, 1]} : vector<1x22x16xf32> to vector<1x16x16xf32>
    %257 = vector.broadcast %255 : f32 to vector<1x16x16xf32>
    %258 = arith.mulf %257, %256 : vector<1x16x16xf32>
    %259 = arith.addf %254, %258 : vector<1x16x16xf32>
    %260 = vector.extract_strided_slice %43 {offsets = [0, 0, 6], sizes = [1, 22, 16], strides = [1, 1, 1]} : vector<1x22x22xf32> to vector<1x22x16xf32>
    %c6 = arith.constant 6 : index
    %261 = memref.load %arg4[%c6] : memref<98xf32, #tpu.memory_space<smem>>
    %262 = vector.extract_strided_slice %260 {offsets = [0, 0, 0], sizes = [1, 16, 16], strides = [1, 1, 1]} : vector<1x22x16xf32> to vector<1x16x16xf32>
    %263 = vector.broadcast %261 : f32 to vector<1x16x16xf32>
    %264 = arith.mulf %263, %262 : vector<1x16x16xf32>
    %265 = arith.addf %259, %264 : vector<1x16x16xf32>
    %c13 = arith.constant 13 : index
    %266 = memref.load %arg4[%c13] : memref<98xf32, #tpu.memory_space<smem>>
    %267 = vector.extract_strided_slice %260 {offsets = [0, 1, 0], sizes = [1, 16, 16], strides = [1, 1, 1]} : vector<1x22x16xf32> to vector<1x16x16xf32>
    %268 = vector.broadcast %266 : f32 to vector<1x16x16xf32>
    %269 = arith.mulf %268, %267 : vector<1x16x16xf32>
    %270 = arith.addf %265, %269 : vector<1x16x16xf32>
    %c20 = arith.constant 20 : index
    %271 = memref.load %arg4[%c20] : memref<98xf32, #tpu.memory_space<smem>>
    %272 = vector.extract_strided_slice %260 {offsets = [0, 2, 0], sizes = [1, 16, 16], strides = [1, 1, 1]} : vector<1x22x16xf32> to vector<1x16x16xf32>
    %273 = vector.broadcast %271 : f32 to vector<1x16x16xf32>
    %274 = arith.mulf %273, %272 : vector<1x16x16xf32>
    %275 = arith.addf %270, %274 : vector<1x16x16xf32>
    %c27 = arith.constant 27 : index
    %276 = memref.load %arg4[%c27] : memref<98xf32, #tpu.memory_space<smem>>
    %277 = vector.extract_strided_slice %260 {offsets = [0, 3, 0], sizes = [1, 16, 16], strides = [1, 1, 1]} : vector<1x22x16xf32> to vector<1x16x16xf32>
    %278 = vector.broadcast %276 : f32 to vector<1x16x16xf32>
    %279 = arith.mulf %278, %277 : vector<1x16x16xf32>
    %280 = arith.addf %275, %279 : vector<1x16x16xf32>
    %c34 = arith.constant 34 : index
    %281 = memref.load %arg4[%c34] : memref<98xf32, #tpu.memory_space<smem>>
    %282 = vector.extract_strided_slice %260 {offsets = [0, 4, 0], sizes = [1, 16, 16], strides = [1, 1, 1]} : vector<1x22x16xf32> to vector<1x16x16xf32>
    %283 = vector.broadcast %281 : f32 to vector<1x16x16xf32>
    %284 = arith.mulf %283, %282 : vector<1x16x16xf32>
    %285 = arith.addf %280, %284 : vector<1x16x16xf32>
    %c41 = arith.constant 41 : index
    %286 = memref.load %arg4[%c41] : memref<98xf32, #tpu.memory_space<smem>>
    %287 = vector.extract_strided_slice %260 {offsets = [0, 5, 0], sizes = [1, 16, 16], strides = [1, 1, 1]} : vector<1x22x16xf32> to vector<1x16x16xf32>
    %288 = vector.broadcast %286 : f32 to vector<1x16x16xf32>
    %289 = arith.mulf %288, %287 : vector<1x16x16xf32>
    %290 = arith.addf %285, %289 : vector<1x16x16xf32>
    %c48 = arith.constant 48 : index
    %291 = memref.load %arg4[%c48] : memref<98xf32, #tpu.memory_space<smem>>
    %292 = vector.extract_strided_slice %260 {offsets = [0, 6, 0], sizes = [1, 16, 16], strides = [1, 1, 1]} : vector<1x22x16xf32> to vector<1x16x16xf32>
    %293 = vector.broadcast %291 : f32 to vector<1x16x16xf32>
    %294 = arith.mulf %293, %292 : vector<1x16x16xf32>
    %295 = arith.addf %290, %294 : vector<1x16x16xf32>
    %296 = vector.extract_strided_slice %40 {offsets = [0, 1, 0, 0], sizes = [1, 1, 22, 22], strides = [1, 1, 1, 1]} : vector<1x2x22x22xf32> to vector<1x1x22x22xf32>
    %297 = vector.shape_cast %296 : vector<1x1x22x22xf32> to vector<1x22x22xf32>
    %298 = vector.extract_strided_slice %297 {offsets = [0, 0, 0], sizes = [1, 22, 16], strides = [1, 1, 1]} : vector<1x22x22xf32> to vector<1x22x16xf32>
    %c49 = arith.constant 49 : index
    %299 = memref.load %arg4[%c49] : memref<98xf32, #tpu.memory_space<smem>>
    %300 = vector.extract_strided_slice %298 {offsets = [0, 0, 0], sizes = [1, 16, 16], strides = [1, 1, 1]} : vector<1x22x16xf32> to vector<1x16x16xf32>
    %301 = vector.broadcast %299 : f32 to vector<1x16x16xf32>
    %302 = arith.mulf %301, %300 : vector<1x16x16xf32>
    %303 = arith.addf %295, %302 : vector<1x16x16xf32>
    %c56 = arith.constant 56 : index
    %304 = memref.load %arg4[%c56] : memref<98xf32, #tpu.memory_space<smem>>
    %305 = vector.extract_strided_slice %298 {offsets = [0, 1, 0], sizes = [1, 16, 16], strides = [1, 1, 1]} : vector<1x22x16xf32> to vector<1x16x16xf32>
    %306 = vector.broadcast %304 : f32 to vector<1x16x16xf32>
    %307 = arith.mulf %306, %305 : vector<1x16x16xf32>
    %308 = arith.addf %303, %307 : vector<1x16x16xf32>
    %c63 = arith.constant 63 : index
    %309 = memref.load %arg4[%c63] : memref<98xf32, #tpu.memory_space<smem>>
    %310 = vector.extract_strided_slice %298 {offsets = [0, 2, 0], sizes = [1, 16, 16], strides = [1, 1, 1]} : vector<1x22x16xf32> to vector<1x16x16xf32>
    %311 = vector.broadcast %309 : f32 to vector<1x16x16xf32>
    %312 = arith.mulf %311, %310 : vector<1x16x16xf32>
    %313 = arith.addf %308, %312 : vector<1x16x16xf32>
    %c70 = arith.constant 70 : index
    %314 = memref.load %arg4[%c70] : memref<98xf32, #tpu.memory_space<smem>>
    %315 = vector.extract_strided_slice %298 {offsets = [0, 3, 0], sizes = [1, 16, 16], strides = [1, 1, 1]} : vector<1x22x16xf32> to vector<1x16x16xf32>
    %316 = vector.broadcast %314 : f32 to vector<1x16x16xf32>
    %317 = arith.mulf %316, %315 : vector<1x16x16xf32>
    %318 = arith.addf %313, %317 : vector<1x16x16xf32>
    %c77 = arith.constant 77 : index
    %319 = memref.load %arg4[%c77] : memref<98xf32, #tpu.memory_space<smem>>
    %320 = vector.extract_strided_slice %298 {offsets = [0, 4, 0], sizes = [1, 16, 16], strides = [1, 1, 1]} : vector<1x22x16xf32> to vector<1x16x16xf32>
    %321 = vector.broadcast %319 : f32 to vector<1x16x16xf32>
    %322 = arith.mulf %321, %320 : vector<1x16x16xf32>
    %323 = arith.addf %318, %322 : vector<1x16x16xf32>
    %c84 = arith.constant 84 : index
    %324 = memref.load %arg4[%c84] : memref<98xf32, #tpu.memory_space<smem>>
    %325 = vector.extract_strided_slice %298 {offsets = [0, 5, 0], sizes = [1, 16, 16], strides = [1, 1, 1]} : vector<1x22x16xf32> to vector<1x16x16xf32>
    %326 = vector.broadcast %324 : f32 to vector<1x16x16xf32>
    %327 = arith.mulf %326, %325 : vector<1x16x16xf32>
    %328 = arith.addf %323, %327 : vector<1x16x16xf32>
    %c91 = arith.constant 91 : index
    %329 = memref.load %arg4[%c91] : memref<98xf32, #tpu.memory_space<smem>>
    %330 = vector.extract_strided_slice %298 {offsets = [0, 6, 0], sizes = [1, 16, 16], strides = [1, 1, 1]} : vector<1x22x16xf32> to vector<1x16x16xf32>
    %331 = vector.broadcast %329 : f32 to vector<1x16x16xf32>
    %332 = arith.mulf %331, %330 : vector<1x16x16xf32>
    %333 = arith.addf %328, %332 : vector<1x16x16xf32>
    %334 = vector.extract_strided_slice %297 {offsets = [0, 0, 1], sizes = [1, 22, 16], strides = [1, 1, 1]} : vector<1x22x22xf32> to vector<1x22x16xf32>
    %c50 = arith.constant 50 : index
    %335 = memref.load %arg4[%c50] : memref<98xf32, #tpu.memory_space<smem>>
    %336 = vector.extract_strided_slice %334 {offsets = [0, 0, 0], sizes = [1, 16, 16], strides = [1, 1, 1]} : vector<1x22x16xf32> to vector<1x16x16xf32>
    %337 = vector.broadcast %335 : f32 to vector<1x16x16xf32>
    %338 = arith.mulf %337, %336 : vector<1x16x16xf32>
    %339 = arith.addf %333, %338 : vector<1x16x16xf32>
    %c57 = arith.constant 57 : index
    %340 = memref.load %arg4[%c57] : memref<98xf32, #tpu.memory_space<smem>>
    %341 = vector.extract_strided_slice %334 {offsets = [0, 1, 0], sizes = [1, 16, 16], strides = [1, 1, 1]} : vector<1x22x16xf32> to vector<1x16x16xf32>
    %342 = vector.broadcast %340 : f32 to vector<1x16x16xf32>
    %343 = arith.mulf %342, %341 : vector<1x16x16xf32>
    %344 = arith.addf %339, %343 : vector<1x16x16xf32>
    %c64 = arith.constant 64 : index
    %345 = memref.load %arg4[%c64] : memref<98xf32, #tpu.memory_space<smem>>
    %346 = vector.extract_strided_slice %334 {offsets = [0, 2, 0], sizes = [1, 16, 16], strides = [1, 1, 1]} : vector<1x22x16xf32> to vector<1x16x16xf32>
    %347 = vector.broadcast %345 : f32 to vector<1x16x16xf32>
    %348 = arith.mulf %347, %346 : vector<1x16x16xf32>
    %349 = arith.addf %344, %348 : vector<1x16x16xf32>
    %c71 = arith.constant 71 : index
    %350 = memref.load %arg4[%c71] : memref<98xf32, #tpu.memory_space<smem>>
    %351 = vector.extract_strided_slice %334 {offsets = [0, 3, 0], sizes = [1, 16, 16], strides = [1, 1, 1]} : vector<1x22x16xf32> to vector<1x16x16xf32>
    %352 = vector.broadcast %350 : f32 to vector<1x16x16xf32>
    %353 = arith.mulf %352, %351 : vector<1x16x16xf32>
    %354 = arith.addf %349, %353 : vector<1x16x16xf32>
    %c78 = arith.constant 78 : index
    %355 = memref.load %arg4[%c78] : memref<98xf32, #tpu.memory_space<smem>>
    %356 = vector.extract_strided_slice %334 {offsets = [0, 4, 0], sizes = [1, 16, 16], strides = [1, 1, 1]} : vector<1x22x16xf32> to vector<1x16x16xf32>
    %357 = vector.broadcast %355 : f32 to vector<1x16x16xf32>
    %358 = arith.mulf %357, %356 : vector<1x16x16xf32>
    %359 = arith.addf %354, %358 : vector<1x16x16xf32>
    %c85 = arith.constant 85 : index
    %360 = memref.load %arg4[%c85] : memref<98xf32, #tpu.memory_space<smem>>
    %361 = vector.extract_strided_slice %334 {offsets = [0, 5, 0], sizes = [1, 16, 16], strides = [1, 1, 1]} : vector<1x22x16xf32> to vector<1x16x16xf32>
    %362 = vector.broadcast %360 : f32 to vector<1x16x16xf32>
    %363 = arith.mulf %362, %361 : vector<1x16x16xf32>
    %364 = arith.addf %359, %363 : vector<1x16x16xf32>
    %c92 = arith.constant 92 : index
    %365 = memref.load %arg4[%c92] : memref<98xf32, #tpu.memory_space<smem>>
    %366 = vector.extract_strided_slice %334 {offsets = [0, 6, 0], sizes = [1, 16, 16], strides = [1, 1, 1]} : vector<1x22x16xf32> to vector<1x16x16xf32>
    %367 = vector.broadcast %365 : f32 to vector<1x16x16xf32>
    %368 = arith.mulf %367, %366 : vector<1x16x16xf32>
    %369 = arith.addf %364, %368 : vector<1x16x16xf32>
    %370 = vector.extract_strided_slice %297 {offsets = [0, 0, 2], sizes = [1, 22, 16], strides = [1, 1, 1]} : vector<1x22x22xf32> to vector<1x22x16xf32>
    %c51 = arith.constant 51 : index
    %371 = memref.load %arg4[%c51] : memref<98xf32, #tpu.memory_space<smem>>
    %372 = vector.extract_strided_slice %370 {offsets = [0, 0, 0], sizes = [1, 16, 16], strides = [1, 1, 1]} : vector<1x22x16xf32> to vector<1x16x16xf32>
    %373 = vector.broadcast %371 : f32 to vector<1x16x16xf32>
    %374 = arith.mulf %373, %372 : vector<1x16x16xf32>
    %375 = arith.addf %369, %374 : vector<1x16x16xf32>
    %c58 = arith.constant 58 : index
    %376 = memref.load %arg4[%c58] : memref<98xf32, #tpu.memory_space<smem>>
    %377 = vector.extract_strided_slice %370 {offsets = [0, 1, 0], sizes = [1, 16, 16], strides = [1, 1, 1]} : vector<1x22x16xf32> to vector<1x16x16xf32>
    %378 = vector.broadcast %376 : f32 to vector<1x16x16xf32>
    %379 = arith.mulf %378, %377 : vector<1x16x16xf32>
    %380 = arith.addf %375, %379 : vector<1x16x16xf32>
    %c65 = arith.constant 65 : index
    %381 = memref.load %arg4[%c65] : memref<98xf32, #tpu.memory_space<smem>>
    %382 = vector.extract_strided_slice %370 {offsets = [0, 2, 0], sizes = [1, 16, 16], strides = [1, 1, 1]} : vector<1x22x16xf32> to vector<1x16x16xf32>
    %383 = vector.broadcast %381 : f32 to vector<1x16x16xf32>
    %384 = arith.mulf %383, %382 : vector<1x16x16xf32>
    %385 = arith.addf %380, %384 : vector<1x16x16xf32>
    %c72 = arith.constant 72 : index
    %386 = memref.load %arg4[%c72] : memref<98xf32, #tpu.memory_space<smem>>
    %387 = vector.extract_strided_slice %370 {offsets = [0, 3, 0], sizes = [1, 16, 16], strides = [1, 1, 1]} : vector<1x22x16xf32> to vector<1x16x16xf32>
    %388 = vector.broadcast %386 : f32 to vector<1x16x16xf32>
    %389 = arith.mulf %388, %387 : vector<1x16x16xf32>
    %390 = arith.addf %385, %389 : vector<1x16x16xf32>
    %c79 = arith.constant 79 : index
    %391 = memref.load %arg4[%c79] : memref<98xf32, #tpu.memory_space<smem>>
    %392 = vector.extract_strided_slice %370 {offsets = [0, 4, 0], sizes = [1, 16, 16], strides = [1, 1, 1]} : vector<1x22x16xf32> to vector<1x16x16xf32>
    %393 = vector.broadcast %391 : f32 to vector<1x16x16xf32>
    %394 = arith.mulf %393, %392 : vector<1x16x16xf32>
    %395 = arith.addf %390, %394 : vector<1x16x16xf32>
    %c86 = arith.constant 86 : index
    %396 = memref.load %arg4[%c86] : memref<98xf32, #tpu.memory_space<smem>>
    %397 = vector.extract_strided_slice %370 {offsets = [0, 5, 0], sizes = [1, 16, 16], strides = [1, 1, 1]} : vector<1x22x16xf32> to vector<1x16x16xf32>
    %398 = vector.broadcast %396 : f32 to vector<1x16x16xf32>
    %399 = arith.mulf %398, %397 : vector<1x16x16xf32>
    %400 = arith.addf %395, %399 : vector<1x16x16xf32>
    %c93 = arith.constant 93 : index
    %401 = memref.load %arg4[%c93] : memref<98xf32, #tpu.memory_space<smem>>
    %402 = vector.extract_strided_slice %370 {offsets = [0, 6, 0], sizes = [1, 16, 16], strides = [1, 1, 1]} : vector<1x22x16xf32> to vector<1x16x16xf32>
    %403 = vector.broadcast %401 : f32 to vector<1x16x16xf32>
    %404 = arith.mulf %403, %402 : vector<1x16x16xf32>
    %405 = arith.addf %400, %404 : vector<1x16x16xf32>
    %406 = vector.extract_strided_slice %297 {offsets = [0, 0, 3], sizes = [1, 22, 16], strides = [1, 1, 1]} : vector<1x22x22xf32> to vector<1x22x16xf32>
    %c52 = arith.constant 52 : index
    %407 = memref.load %arg4[%c52] : memref<98xf32, #tpu.memory_space<smem>>
    %408 = vector.extract_strided_slice %406 {offsets = [0, 0, 0], sizes = [1, 16, 16], strides = [1, 1, 1]} : vector<1x22x16xf32> to vector<1x16x16xf32>
    %409 = vector.broadcast %407 : f32 to vector<1x16x16xf32>
    %410 = arith.mulf %409, %408 : vector<1x16x16xf32>
    %411 = arith.addf %405, %410 : vector<1x16x16xf32>
    %c59 = arith.constant 59 : index
    %412 = memref.load %arg4[%c59] : memref<98xf32, #tpu.memory_space<smem>>
    %413 = vector.extract_strided_slice %406 {offsets = [0, 1, 0], sizes = [1, 16, 16], strides = [1, 1, 1]} : vector<1x22x16xf32> to vector<1x16x16xf32>
    %414 = vector.broadcast %412 : f32 to vector<1x16x16xf32>
    %415 = arith.mulf %414, %413 : vector<1x16x16xf32>
    %416 = arith.addf %411, %415 : vector<1x16x16xf32>
    %c66 = arith.constant 66 : index
    %417 = memref.load %arg4[%c66] : memref<98xf32, #tpu.memory_space<smem>>
    %418 = vector.extract_strided_slice %406 {offsets = [0, 2, 0], sizes = [1, 16, 16], strides = [1, 1, 1]} : vector<1x22x16xf32> to vector<1x16x16xf32>
    %419 = vector.broadcast %417 : f32 to vector<1x16x16xf32>
    %420 = arith.mulf %419, %418 : vector<1x16x16xf32>
    %421 = arith.addf %416, %420 : vector<1x16x16xf32>
    %c73 = arith.constant 73 : index
    %422 = memref.load %arg4[%c73] : memref<98xf32, #tpu.memory_space<smem>>
    %423 = vector.extract_strided_slice %406 {offsets = [0, 3, 0], sizes = [1, 16, 16], strides = [1, 1, 1]} : vector<1x22x16xf32> to vector<1x16x16xf32>
    %424 = vector.broadcast %422 : f32 to vector<1x16x16xf32>
    %425 = arith.mulf %424, %423 : vector<1x16x16xf32>
    %426 = arith.addf %421, %425 : vector<1x16x16xf32>
    %c80 = arith.constant 80 : index
    %427 = memref.load %arg4[%c80] : memref<98xf32, #tpu.memory_space<smem>>
    %428 = vector.extract_strided_slice %406 {offsets = [0, 4, 0], sizes = [1, 16, 16], strides = [1, 1, 1]} : vector<1x22x16xf32> to vector<1x16x16xf32>
    %429 = vector.broadcast %427 : f32 to vector<1x16x16xf32>
    %430 = arith.mulf %429, %428 : vector<1x16x16xf32>
    %431 = arith.addf %426, %430 : vector<1x16x16xf32>
    %c87 = arith.constant 87 : index
    %432 = memref.load %arg4[%c87] : memref<98xf32, #tpu.memory_space<smem>>
    %433 = vector.extract_strided_slice %406 {offsets = [0, 5, 0], sizes = [1, 16, 16], strides = [1, 1, 1]} : vector<1x22x16xf32> to vector<1x16x16xf32>
    %434 = vector.broadcast %432 : f32 to vector<1x16x16xf32>
    %435 = arith.mulf %434, %433 : vector<1x16x16xf32>
    %436 = arith.addf %431, %435 : vector<1x16x16xf32>
    %c94 = arith.constant 94 : index
    %437 = memref.load %arg4[%c94] : memref<98xf32, #tpu.memory_space<smem>>
    %438 = vector.extract_strided_slice %406 {offsets = [0, 6, 0], sizes = [1, 16, 16], strides = [1, 1, 1]} : vector<1x22x16xf32> to vector<1x16x16xf32>
    %439 = vector.broadcast %437 : f32 to vector<1x16x16xf32>
    %440 = arith.mulf %439, %438 : vector<1x16x16xf32>
    %441 = arith.addf %436, %440 : vector<1x16x16xf32>
    %442 = vector.extract_strided_slice %297 {offsets = [0, 0, 4], sizes = [1, 22, 16], strides = [1, 1, 1]} : vector<1x22x22xf32> to vector<1x22x16xf32>
    %c53 = arith.constant 53 : index
    %443 = memref.load %arg4[%c53] : memref<98xf32, #tpu.memory_space<smem>>
    %444 = vector.extract_strided_slice %442 {offsets = [0, 0, 0], sizes = [1, 16, 16], strides = [1, 1, 1]} : vector<1x22x16xf32> to vector<1x16x16xf32>
    %445 = vector.broadcast %443 : f32 to vector<1x16x16xf32>
    %446 = arith.mulf %445, %444 : vector<1x16x16xf32>
    %447 = arith.addf %441, %446 : vector<1x16x16xf32>
    %c60 = arith.constant 60 : index
    %448 = memref.load %arg4[%c60] : memref<98xf32, #tpu.memory_space<smem>>
    %449 = vector.extract_strided_slice %442 {offsets = [0, 1, 0], sizes = [1, 16, 16], strides = [1, 1, 1]} : vector<1x22x16xf32> to vector<1x16x16xf32>
    %450 = vector.broadcast %448 : f32 to vector<1x16x16xf32>
    %451 = arith.mulf %450, %449 : vector<1x16x16xf32>
    %452 = arith.addf %447, %451 : vector<1x16x16xf32>
    %c67 = arith.constant 67 : index
    %453 = memref.load %arg4[%c67] : memref<98xf32, #tpu.memory_space<smem>>
    %454 = vector.extract_strided_slice %442 {offsets = [0, 2, 0], sizes = [1, 16, 16], strides = [1, 1, 1]} : vector<1x22x16xf32> to vector<1x16x16xf32>
    %455 = vector.broadcast %453 : f32 to vector<1x16x16xf32>
    %456 = arith.mulf %455, %454 : vector<1x16x16xf32>
    %457 = arith.addf %452, %456 : vector<1x16x16xf32>
    %c74 = arith.constant 74 : index
    %458 = memref.load %arg4[%c74] : memref<98xf32, #tpu.memory_space<smem>>
    %459 = vector.extract_strided_slice %442 {offsets = [0, 3, 0], sizes = [1, 16, 16], strides = [1, 1, 1]} : vector<1x22x16xf32> to vector<1x16x16xf32>
    %460 = vector.broadcast %458 : f32 to vector<1x16x16xf32>
    %461 = arith.mulf %460, %459 : vector<1x16x16xf32>
    %462 = arith.addf %457, %461 : vector<1x16x16xf32>
    %c81 = arith.constant 81 : index
    %463 = memref.load %arg4[%c81] : memref<98xf32, #tpu.memory_space<smem>>
    %464 = vector.extract_strided_slice %442 {offsets = [0, 4, 0], sizes = [1, 16, 16], strides = [1, 1, 1]} : vector<1x22x16xf32> to vector<1x16x16xf32>
    %465 = vector.broadcast %463 : f32 to vector<1x16x16xf32>
    %466 = arith.mulf %465, %464 : vector<1x16x16xf32>
    %467 = arith.addf %462, %466 : vector<1x16x16xf32>
    %c88 = arith.constant 88 : index
    %468 = memref.load %arg4[%c88] : memref<98xf32, #tpu.memory_space<smem>>
    %469 = vector.extract_strided_slice %442 {offsets = [0, 5, 0], sizes = [1, 16, 16], strides = [1, 1, 1]} : vector<1x22x16xf32> to vector<1x16x16xf32>
    %470 = vector.broadcast %468 : f32 to vector<1x16x16xf32>
    %471 = arith.mulf %470, %469 : vector<1x16x16xf32>
    %472 = arith.addf %467, %471 : vector<1x16x16xf32>
    %c95 = arith.constant 95 : index
    %473 = memref.load %arg4[%c95] : memref<98xf32, #tpu.memory_space<smem>>
    %474 = vector.extract_strided_slice %442 {offsets = [0, 6, 0], sizes = [1, 16, 16], strides = [1, 1, 1]} : vector<1x22x16xf32> to vector<1x16x16xf32>
    %475 = vector.broadcast %473 : f32 to vector<1x16x16xf32>
    %476 = arith.mulf %475, %474 : vector<1x16x16xf32>
    %477 = arith.addf %472, %476 : vector<1x16x16xf32>
    %478 = vector.extract_strided_slice %297 {offsets = [0, 0, 5], sizes = [1, 22, 16], strides = [1, 1, 1]} : vector<1x22x22xf32> to vector<1x22x16xf32>
    %c54 = arith.constant 54 : index
    %479 = memref.load %arg4[%c54] : memref<98xf32, #tpu.memory_space<smem>>
    %480 = vector.extract_strided_slice %478 {offsets = [0, 0, 0], sizes = [1, 16, 16], strides = [1, 1, 1]} : vector<1x22x16xf32> to vector<1x16x16xf32>
    %481 = vector.broadcast %479 : f32 to vector<1x16x16xf32>
    %482 = arith.mulf %481, %480 : vector<1x16x16xf32>
    %483 = arith.addf %477, %482 : vector<1x16x16xf32>
    %c61 = arith.constant 61 : index
    %484 = memref.load %arg4[%c61] : memref<98xf32, #tpu.memory_space<smem>>
    %485 = vector.extract_strided_slice %478 {offsets = [0, 1, 0], sizes = [1, 16, 16], strides = [1, 1, 1]} : vector<1x22x16xf32> to vector<1x16x16xf32>
    %486 = vector.broadcast %484 : f32 to vector<1x16x16xf32>
    %487 = arith.mulf %486, %485 : vector<1x16x16xf32>
    %488 = arith.addf %483, %487 : vector<1x16x16xf32>
    %c68 = arith.constant 68 : index
    %489 = memref.load %arg4[%c68] : memref<98xf32, #tpu.memory_space<smem>>
    %490 = vector.extract_strided_slice %478 {offsets = [0, 2, 0], sizes = [1, 16, 16], strides = [1, 1, 1]} : vector<1x22x16xf32> to vector<1x16x16xf32>
    %491 = vector.broadcast %489 : f32 to vector<1x16x16xf32>
    %492 = arith.mulf %491, %490 : vector<1x16x16xf32>
    %493 = arith.addf %488, %492 : vector<1x16x16xf32>
    %c75 = arith.constant 75 : index
    %494 = memref.load %arg4[%c75] : memref<98xf32, #tpu.memory_space<smem>>
    %495 = vector.extract_strided_slice %478 {offsets = [0, 3, 0], sizes = [1, 16, 16], strides = [1, 1, 1]} : vector<1x22x16xf32> to vector<1x16x16xf32>
    %496 = vector.broadcast %494 : f32 to vector<1x16x16xf32>
    %497 = arith.mulf %496, %495 : vector<1x16x16xf32>
    %498 = arith.addf %493, %497 : vector<1x16x16xf32>
    %c82 = arith.constant 82 : index
    %499 = memref.load %arg4[%c82] : memref<98xf32, #tpu.memory_space<smem>>
    %500 = vector.extract_strided_slice %478 {offsets = [0, 4, 0], sizes = [1, 16, 16], strides = [1, 1, 1]} : vector<1x22x16xf32> to vector<1x16x16xf32>
    %501 = vector.broadcast %499 : f32 to vector<1x16x16xf32>
    %502 = arith.mulf %501, %500 : vector<1x16x16xf32>
    %503 = arith.addf %498, %502 : vector<1x16x16xf32>
    %c89 = arith.constant 89 : index
    %504 = memref.load %arg4[%c89] : memref<98xf32, #tpu.memory_space<smem>>
    %505 = vector.extract_strided_slice %478 {offsets = [0, 5, 0], sizes = [1, 16, 16], strides = [1, 1, 1]} : vector<1x22x16xf32> to vector<1x16x16xf32>
    %506 = vector.broadcast %504 : f32 to vector<1x16x16xf32>
    %507 = arith.mulf %506, %505 : vector<1x16x16xf32>
    %508 = arith.addf %503, %507 : vector<1x16x16xf32>
    %c96 = arith.constant 96 : index
    %509 = memref.load %arg4[%c96] : memref<98xf32, #tpu.memory_space<smem>>
    %510 = vector.extract_strided_slice %478 {offsets = [0, 6, 0], sizes = [1, 16, 16], strides = [1, 1, 1]} : vector<1x22x16xf32> to vector<1x16x16xf32>
    %511 = vector.broadcast %509 : f32 to vector<1x16x16xf32>
    %512 = arith.mulf %511, %510 : vector<1x16x16xf32>
    %513 = arith.addf %508, %512 : vector<1x16x16xf32>
    %514 = vector.extract_strided_slice %297 {offsets = [0, 0, 6], sizes = [1, 22, 16], strides = [1, 1, 1]} : vector<1x22x22xf32> to vector<1x22x16xf32>
    %c55 = arith.constant 55 : index
    %515 = memref.load %arg4[%c55] : memref<98xf32, #tpu.memory_space<smem>>
    %516 = vector.extract_strided_slice %514 {offsets = [0, 0, 0], sizes = [1, 16, 16], strides = [1, 1, 1]} : vector<1x22x16xf32> to vector<1x16x16xf32>
    %517 = vector.broadcast %515 : f32 to vector<1x16x16xf32>
    %518 = arith.mulf %517, %516 : vector<1x16x16xf32>
    %519 = arith.addf %513, %518 : vector<1x16x16xf32>
    %c62 = arith.constant 62 : index
    %520 = memref.load %arg4[%c62] : memref<98xf32, #tpu.memory_space<smem>>
    %521 = vector.extract_strided_slice %514 {offsets = [0, 1, 0], sizes = [1, 16, 16], strides = [1, 1, 1]} : vector<1x22x16xf32> to vector<1x16x16xf32>
    %522 = vector.broadcast %520 : f32 to vector<1x16x16xf32>
    %523 = arith.mulf %522, %521 : vector<1x16x16xf32>
    %524 = arith.addf %519, %523 : vector<1x16x16xf32>
    %c69 = arith.constant 69 : index
    %525 = memref.load %arg4[%c69] : memref<98xf32, #tpu.memory_space<smem>>
    %526 = vector.extract_strided_slice %514 {offsets = [0, 2, 0], sizes = [1, 16, 16], strides = [1, 1, 1]} : vector<1x22x16xf32> to vector<1x16x16xf32>
    %527 = vector.broadcast %525 : f32 to vector<1x16x16xf32>
    %528 = arith.mulf %527, %526 : vector<1x16x16xf32>
    %529 = arith.addf %524, %528 : vector<1x16x16xf32>
    %c76 = arith.constant 76 : index
    %530 = memref.load %arg4[%c76] : memref<98xf32, #tpu.memory_space<smem>>
    %531 = vector.extract_strided_slice %514 {offsets = [0, 3, 0], sizes = [1, 16, 16], strides = [1, 1, 1]} : vector<1x22x16xf32> to vector<1x16x16xf32>
    %532 = vector.broadcast %530 : f32 to vector<1x16x16xf32>
    %533 = arith.mulf %532, %531 : vector<1x16x16xf32>
    %534 = arith.addf %529, %533 : vector<1x16x16xf32>
    %c83 = arith.constant 83 : index
    %535 = memref.load %arg4[%c83] : memref<98xf32, #tpu.memory_space<smem>>
    %536 = vector.extract_strided_slice %514 {offsets = [0, 4, 0], sizes = [1, 16, 16], strides = [1, 1, 1]} : vector<1x22x16xf32> to vector<1x16x16xf32>
    %537 = vector.broadcast %535 : f32 to vector<1x16x16xf32>
    %538 = arith.mulf %537, %536 : vector<1x16x16xf32>
    %539 = arith.addf %534, %538 : vector<1x16x16xf32>
    %c90 = arith.constant 90 : index
    %540 = memref.load %arg4[%c90] : memref<98xf32, #tpu.memory_space<smem>>
    %541 = vector.extract_strided_slice %514 {offsets = [0, 5, 0], sizes = [1, 16, 16], strides = [1, 1, 1]} : vector<1x22x16xf32> to vector<1x16x16xf32>
    %542 = vector.broadcast %540 : f32 to vector<1x16x16xf32>
    %543 = arith.mulf %542, %541 : vector<1x16x16xf32>
    %544 = arith.addf %539, %543 : vector<1x16x16xf32>
    %c97 = arith.constant 97 : index
    %545 = memref.load %arg4[%c97] : memref<98xf32, #tpu.memory_space<smem>>
    %546 = vector.extract_strided_slice %514 {offsets = [0, 6, 0], sizes = [1, 16, 16], strides = [1, 1, 1]} : vector<1x22x16xf32> to vector<1x16x16xf32>
    %547 = vector.broadcast %545 : f32 to vector<1x16x16xf32>
    %548 = arith.mulf %547, %546 : vector<1x16x16xf32>
    %549 = arith.addf %544, %548 : vector<1x16x16xf32>
    %550 = arith.negf %549 : vector<1x16x16xf32>
    %551 = math.exp %550 : vector<1x16x16xf32>
    %cst_35 = arith.constant 1.000000e+00 : f32
    %552 = vector.broadcast %cst_35 : f32 to vector<1x16x16xf32>
    %553 = arith.addf %552, %551 : vector<1x16x16xf32>
    %554 = arith.divf %552, %553 : vector<1x16x16xf32>
    %555 = vector.shape_cast %554 : vector<1x16x16xf32> to vector<1x1x256xf32>
    %556 = vector.broadcast %555 : vector<1x1x256xf32> to vector<1x32x256xf32>
    %557 = arith.mulf %25, %556 : vector<1x32x256xf32>
    %c0_36 = arith.constant 0 : index
    %c0_37 = arith.constant 0 : index
    %c0_38 = arith.constant 0 : index
    %558 = vector.load %arg5[%c0_36, %c0_37, %c0_38] : memref<1x32x256xf32, #tpu.memory_space<vmem>>, vector<1x32x256xf32>
    tpu.vector_store %arg5[%c0_36, %c0_37, %c0_38], %557 {strides = array<i32>} : memref<1x32x256xf32, #tpu.memory_space<vmem>>, vector<1x32x256xf32>,
    return
  }
  func.func @transform_0(%arg0: i32) -> (i32, i32, i32) {
    %c0_i32 = arith.constant 0 : i32
    %c0_i32_0 = arith.constant 0 : i32
    %c0_i32_1 = arith.constant 0 : i32
    return %arg0, %c0_i32, %c0_i32_0 : i32, i32, i32
  }
  func.func @transform_1(%arg0: i32) -> (i32, i32) {
    %c0_i32 = arith.constant 0 : i32
    %c0_i32_0 = arith.constant 0 : i32
    %c0_i32_1 = arith.constant 0 : i32
    return %c0_i32, %c0_i32_0 : i32, i32
  }
  func.func @transform_2(%arg0: i32) -> (i32, i32) {
    %c0_i32 = arith.constant 0 : i32
    %c0_i32_0 = arith.constant 0 : i32
    %c0_i32_1 = arith.constant 0 : i32
    return %c0_i32, %c0_i32_0 : i32, i32
  }
  func.func @transform_3(%arg0: i32) -> i32 {
    %c0_i32 = arith.constant 0 : i32
    %c0_i32_0 = arith.constant 0 : i32
    return %c0_i32 : i32
  }
  func.func @transform_4(%arg0: i32) -> (i32, i32, i32) {
    %c0_i32 = arith.constant 0 : i32
    %c0_i32_0 = arith.constant 0 : i32
    %c0_i32_1 = arith.constant 0 : i32
    return %arg0, %c0_i32, %c0_i32_0 : i32, i32, i32
  }
}

</mosaic_0001>

<llo_original>
// kernel: tpu_custom_call.1
$region0: #{tpu_custom_call.1}
  #allocation0 [shape = 'u32[]', space=smem, size = 0x4, offset = 0x4, fixed_abs, tag = 'smem constant byte address 0x4 - core index']
  #allocation1 [shape = 'u32[144,128]{1,0:T(1,128)}', space=vmem, size = 0x12000, scoped, tag = 'internal scratch']
  #allocation2 [shape = 'f32[1,2,22,22]{3,2,1,0:T(8,128)}', space=vmem, size = 0x6000, scoped, tag = 'scratch operand']
  %s0 = inlined_call_operand.hbm [shape: f32[2,32,256], index: 0, kind: input, shape index: {}]
  %s1 = inlined_call_operand.vmem [shape: f32[32,2], index: 1, kind: input, shape index: {}]
  %s2 = inlined_call_operand.vmem [shape: f32[2,32], index: 2, kind: input, shape index: {}]
  %s3 = inlined_call_operand.vmem [shape: f32[98], index: 3, kind: input, shape index: {}]
  %s4 = inlined_call_operand.hbm [shape: f32[2,32,256], index: 4, kind: output, shape index: {}]
  %s5 = sld [smem:[#allocation0]]
  $region57: #{tpu_custom_call.1} parent=0
    _
  %s7 = ssub.s32 1, %s5
  %s8 = scalar_select 0, %s7, %s5
  $region1: #{tpu_custom_call.1} parent=0
    #allocation3 [shape = 'u8[65536]{0}', space=vmem, size = 0x10000, scoped, tag = 'input window, operand 0']
    #allocation4 [shape = 's32[2]{0}', space=sflag, size = 0x8, scoped, tag = 'scoped memory for tpu_custom_call.1']
    #allocation5 [shape = 's32[2]{0}', space=sflag, size = 0x8, scoped, tag = 'scoped memory for tpu_custom_call.1']
    #allocation6 [shape = 's32[2]{0}', space=sflag, size = 0x8, scoped, tag = 'scoped memory for tpu_custom_call.1']
    #allocation7 [shape = 'u8[512]{0}', space=smem, size = 0x200, scoped, tag = 'input window, operand 3, single buffered']
    #allocation8 [shape = 'u8[65536]{0}', space=vmem, size = 0x10000, scoped, tag = 'output window, operand 0']
    %9 = vsyncpa [#allocation4], 0
    %s10 = scalar_lea.sflag [#allocation4], 1
    %11 = vsyncpa %s10, 0
    %12 = vsyncpa [#allocation6], 0
    %13 = vsyncpa [#allocation5], 0
    %s14 = scalar_lea.sflag [#allocation5], 1
    %15 = vsyncpa %s14, 0
    loop: start=0, step=1, limit=4
    $region2: #{tpu_custom_call.1} parent=1 // loop_pre_header
      _
    $region3: #{tpu_custom_call.1} parent=1 // loop_header
      %s17 = sphi 0, %s21
      %p18 = scmp.ge.s32.totalorder %s17, 4
      %s27 = sphi 0, %s29
      %s30 = sphi 0, %s27
      %s31 = sphi 0, %s30
      %s47 = sphi 0, %s31
      %s51 = sphi 0, %s51
      %s53 = sphi 0, %s51
      %s54 = sphi 0, %s53
      %s68 = sphi 0, %s54
      %s72 = sphi 0, %s72
      %s74 = sphi 0, %s72
      %s75 = sphi 0, %s74
      %s89 = sphi 0, %s75
      %s93 = sphi 0, %s93
      %s95 = sphi 0, %s93
      %s96 = sphi 0, %s95
      %s110 = sphi 0, %s96
      %s116 = sphi 0, %s118
      %s119 = sphi 0, %s116
      %s120 = sphi 0, %s119
      %s136 = sphi 0, %s120
    $region4: #{tpu_custom_call.1} parent=1 // loop_header_branch
      %20 = sbr.rel (%p18) target = $region8
    $region5: #{tpu_custom_call.1} parent=1 // loop_body
      %s22 = ssub.s32 %s17, 1
      %s23 = ssub.s32 %s17, 2
      %s24 = sadd.s32 %s17, 1
      %s25 = ssub.s32 %s17, %s24
      %p26 = scmp.eq.s32.totalorder %s25, 0
      %s28 = sadd.s32 %s27, 1
      %s29 = scalar_select %p26, %s27, %s28
      %p32 = pneg %p26
      %p33 = scmp.eq.s32.totalorder %s17, 1
      %p34 = por %p32, %p33
      %p35 = scmp.ne.s32.totalorder %s27, %s30
      %p36 = scmp.eq.s32.totalorder %s17, 0
      %p37 = por %p35, %p36
      %p38 = scmp.ne.s32.totalorder %s27, %s30
      %p39 = scmp.eq.s32.totalorder %s22, 1
      %p40 = por %p38, %p39
      %p41 = scmp.ne.s32.totalorder %s30, %s31
      %p42 = scmp.eq.s32.totalorder %s22, 0
      %p43 = por %p41, %p42
      %p44 = scmp.ne.s32.totalorder %s30, %s31
      %p45 = scmp.eq.s32.totalorder %s23, 1
      %p46 = por %p44, %p45
      %p48 = scmp.ne.s32.totalorder %s31, %s47
      %p49 = scmp.eq.s32.totalorder %s23, 0
      %p50 = por %p48, %p49
      %s52 = sadd.s32 %s51, 1
      %p55 = scmp.eq.s32.totalorder %s17, 1
      %p56 = scmp.ne.s32.totalorder %s51, %s53
      %p57 = scmp.eq.s32.totalorder %s17, 0
      %p58 = por %p56, %p57
      %p59 = scmp.ne.s32.totalorder %s51, %s53
      %p60 = scmp.eq.s32.totalorder %s22, 1
      %p61 = por %p59, %p60
      %p62 = scmp.ne.s32.totalorder %s53, %s54
      %p63 = scmp.eq.s32.totalorder %s22, 0
      %p64 = por %p62, %p63
      %p65 = scmp.ne.s32.totalorder %s53, %s54
      %p66 = scmp.eq.s32.totalorder %s23, 1
      %p67 = por %p65, %p66
      %p69 = scmp.ne.s32.totalorder %s54, %s68
      %p70 = scmp.eq.s32.totalorder %s23, 0
      %p71 = por %p69, %p70
      %s73 = sadd.s32 %s72, 1
      %p76 = scmp.eq.s32.totalorder %s17, 1
      %p77 = scmp.ne.s32.totalorder %s72, %s74
      %p78 = scmp.eq.s32.totalorder %s17, 0
      %p79 = por %p77, %p78
      %p80 = scmp.ne.s32.totalorder %s72, %s74
      %p81 = scmp.eq.s32.totalorder %s22, 1
      %p82 = por %p80, %p81
      %p83 = scmp.ne.s32.totalorder %s74, %s75
      %p84 = scmp.eq.s32.totalorder %s22, 0
      %p85 = por %p83, %p84
      %p86 = scmp.ne.s32.totalorder %s74, %s75
      %p87 = scmp.eq.s32.totalorder %s23, 1
      %p88 = por %p86, %p87
      %p90 = scmp.ne.s32.totalorder %s75, %s89
      %p91 = scmp.eq.s32.totalorder %s23, 0
      %p92 = por %p90, %p91
      %s94 = sadd.s32 %s93, 1
      %p97 = scmp.eq.s32.totalorder %s17, 1
      %p98 = scmp.ne.s32.totalorder %s93, %s95
      %p99 = scmp.eq.s32.totalorder %s17, 0
      %p100 = por %p98, %p99
      %p101 = scmp.ne.s32.totalorder %s93, %s95
      %p102 = scmp.eq.s32.totalorder %s22, 1
      %p103 = por %p101, %p102
      %p104 = scmp.ne.s32.totalorder %s95, %s96
      %p105 = scmp.eq.s32.totalorder %s22, 0
      %p106 = por %p104, %p105
      %p107 = scmp.ne.s32.totalorder %s95, %s96
      %p108 = scmp.eq.s32.totalorder %s23, 1
      %p109 = por %p107, %p108
      %p111 = scmp.ne.s32.totalorder %s96, %s110
      %p112 = scmp.eq.s32.totalorder %s23, 0
      %p113 = por %p111, %p112
      %s114 = ssub.s32 %s17, %s24
      %p115 = scmp.eq.s32.totalorder %s114, 0
      %s117 = sadd.s32 %s116, 1
      %s118 = scalar_select %p115, %s116, %s117
      %p121 = pneg %p115
      %p122 = scmp.eq.s32.totalorder %s17, 1
      %p123 = por %p121, %p122
      %p124 = scmp.ne.s32.totalorder %s116, %s119
      %p125 = scmp.eq.s32.totalorder %s17, 0
      %p126 = por %p124, %p125
      %p127 = scmp.ne.s32.totalorder %s116, %s119
      %p128 = scmp.eq.s32.totalorder %s22, 1
      %p129 = por %p127, %p128
      %p130 = scmp.ne.s32.totalorder %s119, %s120
      %p131 = scmp.eq.s32.totalorder %s22, 0
      %p132 = por %p130, %p131
      %p133 = scmp.ne.s32.totalorder %s119, %s120
      %p134 = scmp.eq.s32.totalorder %s23, 1
      %p135 = por %p133, %p134
      %p137 = scmp.ne.s32.totalorder %s120, %s136
      %p138 = scmp.eq.s32.totalorder %s23, 0
      %p139 = por %p137, %p138
      %p140 = scmp.le.s32.totalorder 1, %s17
      %p141 = scmp.lt.s32.totalorder %s17, 3
      %p142 = pnand %p140, %p141
      %p143 = pneg %p142
      // Predicated region
      $region9: #{tpu_custom_call.1} parent=5 // pred_check
        _
      $region10: #{tpu_custom_call.1} parent=5 // pred_check_branch
        %145 = sbr.rel (%p142) target = $region12
      $region11: #{tpu_custom_call.1} parent=5 // pred_region
        %s146 = ssub.s32 %s17, 1
        // Predicated region
        $region13: #{tpu_custom_call.1} parent=11 // pred_check
          %p147 = pneg %p64
        $region14: #{tpu_custom_call.1} parent=11 // pred_check_branch
          %149 = sbr.rel (%p147) target = $region16
        $region15: #{tpu_custom_call.1} parent=11 // pred_region
          _
        $region16: #{tpu_custom_call.1} parent=11 // pred_fallthru
          _
        // Predicated region
        $region17: #{tpu_custom_call.1} parent=11 // pred_check
          %p150 = pneg %p85
        $region18: #{tpu_custom_call.1} parent=11 // pred_check_branch
          %152 = sbr.rel (%p150) target = $region20
        $region19: #{tpu_custom_call.1} parent=11 // pred_region
          _
        $region20: #{tpu_custom_call.1} parent=11 // pred_fallthru
          _
        // Predicated region
        $region21: #{tpu_custom_call.1} parent=11 // pred_check
          %p153 = pneg %p106
        $region22: #{tpu_custom_call.1} parent=11 // pred_check_branch
          %155 = sbr.rel (%p153) target = $region24
        $region23: #{tpu_custom_call.1} parent=11 // pred_region
          %s157 = ssub.s32 16, 16
          %158 = vsyncadd [#allocation6], %s157
          %s160 = sshll.u32 %s3, 4
          %s161 = int_to_ptr.vmem [resolvable:$true] %s160
          %163 = dma.vmem_to_smem %s161, 16, [#allocation7], [#allocation6]
        $region24: #{tpu_custom_call.1} parent=11 // pred_fallthru
          _
      $region12: #{tpu_custom_call.1} parent=5 // pred_fallthru
        _
      %p164 = scmp.lt.s32.totalorder %s17, 2
      // Predicated region
      $region25: #{tpu_custom_call.1} parent=5 // pred_check
        %p165 = pneg %p164
      $region26: #{tpu_custom_call.1} parent=5 // pred_check_branch
        %167 = sbr.rel (%p165) target = $region28
      $region27: #{tpu_custom_call.1} parent=5 // pred_region
        // Predicated region
        $region29: #{tpu_custom_call.1} parent=27 // pred_check
          %p168 = pneg %p37
        $region30: #{tpu_custom_call.1} parent=27 // pred_check_branch
          %170 = sbr.rel (%p168) target = $region32
        $region31: #{tpu_custom_call.1} parent=27 // pred_region
          %s171 = sand.u32 %s27, 1
          %s172 = scalar_lea.sflag [#allocation4], %s171
          %s173 = sand.u32 %s27, 1
          %s174 = smul.addr %s173, 64
          %s175 = scalar_lea.vmem [#allocation3], %s174
          %s177 = ssub.s32 1024, 1024
          %178 = vsyncadd %s172, %s177
          %s179 = smul.addr %s17, 8
          %s180 = smul.addr %s179, 128
          %s181 = scalar_lea.hbm %s0, %s180
          %s182 = sshll.u32 %s175, 4
          %s183 = int_to_ptr.vmem [resolvable:$true] %s182
          %188 = dma.hbm_to_vmem [thread:$0]  %s181, 1024, %s183, %s172, 256, 256, 16
        $region32: #{tpu_custom_call.1} parent=27 // pred_fallthru
          _
      $region28: #{tpu_custom_call.1} parent=5 // pred_fallthru
        _
      %p189 = scmp.le.s32.totalorder 1, %s17
      %p190 = scmp.lt.s32.totalorder %s17, 3
      %p191 = pnand %p189, %p190
      %p192 = pneg %p191
      // Predicated region
      $region33: #{tpu_custom_call.1} parent=5 // pred_check
        _
      $region34: #{tpu_custom_call.1} parent=5 // pred_check_branch
        %194 = sbr.rel (%p191) target = $region36
      $region35: #{tpu_custom_call.1} parent=5 // pred_region
        %s195 = ssub.s32 %s17, 1
        %s196 = sand.u32 %s30, 1
        %s197 = scalar_lea.sflag [#allocation4], %s196
        %s198 = sand.u32 %s30, 1
        %s199 = smul.addr %s198, 64
        %s200 = scalar_lea.vmem [#allocation3], %s199
        // Predicated region
        $region37: #{tpu_custom_call.1} parent=35 // pred_check
          %p201 = pneg %p43
        $region38: #{tpu_custom_call.1} parent=35 // pred_check_branch
          %203 = sbr.rel (%p201) target = $region40
        $region39: #{tpu_custom_call.1} parent=35 // pred_region
          %204 = dma.done %s197, 1024
        $region40: #{tpu_custom_call.1} parent=35 // pred_fallthru
          _
        // Predicated region
        $region41: #{tpu_custom_call.1} parent=35 // pred_check
          %p205 = pneg %p106
        $region42: #{tpu_custom_call.1} parent=35 // pred_check_branch
          %207 = sbr.rel (%p205) target = $region44
        $region43: #{tpu_custom_call.1} parent=35 // pred_region
          %208 = dma.done [#allocation6], 16
        $region44: #{tpu_custom_call.1} parent=35 // pred_fallthru
          _
        %209 = sfence
        %s210 = sand.u32 %s30, 1
        %s211 = scalar_lea.sflag [#allocation4], %s210
        %s212 = sand.u32 %s30, 1
        %s213 = smul.addr %s212, 64
        %s214 = scalar_lea.vmem [#allocation3], %s213
        %p215 = pneg %p43
        %p216 = pneg %p40
        %p217 = pneg %p64
        %p218 = pneg %p61
        %p219 = pneg %p85
        %p220 = pneg %p82
        %p221 = pneg %p106
        %p222 = pneg %p103
        %p223 = pneg %p132
        %p224 = pneg %p129
        %s225 = sand.u32 %s119, 1
        %s226 = scalar_lea.sflag [#allocation5], %s225
        %s227 = sand.u32 %s119, 1
        %s228 = smul.addr %s227, 64
        %s229 = scalar_lea.vmem [#allocation8], %s228
        %v230 = vld [vmem:[%s200] sm:$0xff]
        %v231 = vld [vmem:[%s200 + $0x8] sm:$0xff]
        %v232 = vld [vmem:[%s200 + $0x10] sm:$0xff]
        %v233 = vld [vmem:[%s200 + $0x18] sm:$0xff]
        %v234 = vld [vmem:[%s200 + $0x20] sm:$0xff]
        %v235 = vld [vmem:[%s200 + $0x28] sm:$0xff]
        %v236 = vld [vmem:[%s200 + $0x30] sm:$0xff]
        %v237 = vld [vmem:[%s200 + $0x38] sm:$0xff]
        %v238 = vmax.f32 %v230, %v231
        %239 = vmax.xlane.f32.xlu0 %v238
        %v240 = vpop.xlane.xlu0 %239
        %v241 = vmax.f32 %v232, %v233
        %242 = vmax.xlane.f32.xlu0 %v241
        %v243 = vpop.xlane.xlu0 %242
        %v244 = vmax.f32 %v234, %v235
        %245 = vmax.xlane.f32.xlu0 %v244
        %v246 = vpop.xlane.xlu0 %245
        %v247 = vmax.f32 %v236, %v237
        %248 = vmax.xlane.f32.xlu0 %v247
        %v249 = vpop.xlane.xlu0 %248
        %v250 = vadd.f32 %v230, %v231
        %251 = vadd.xlane.f32.xlu0 %v250
        %v252 = vpop.xlane.xlu0 %251
        %v253 = vadd.f32 %v232, %v233
        %254 = vadd.xlane.f32.xlu0 %v253
        %v255 = vpop.xlane.xlu0 %254
        %v256 = vadd.f32 %v234, %v235
        %257 = vadd.xlane.f32.xlu0 %v256
        %v258 = vpop.xlane.xlu0 %257
        %v259 = vadd.f32 %v236, %v237
        %260 = vadd.xlane.f32.xlu0 %v259
        %v261 = vpop.xlane.xlu0 %260
        %v262 = vmul.f32 %v252, 0.00390625
        %v263 = vmul.f32 %v255, 0.00390625
        %v264 = vmul.f32 %v258, 0.00390625
        %v265 = vmul.f32 %v261, 0.00390625
        %v270 = vlaneseq
        %v271 = vand.u32 %v270, 127
        %v272 = vlaneseq
        %v273 = vshrl.u32 %v272, 7
        %v274 = vsub.s32 %v271, %v273
        %v275 = vrot.slane %v240, %v274
        %v276 = vadd.s32 %v271, 4294967288
        %v277 = vlaneseq
        %v278 = vshrl.u32 %v277, 7
        %v279 = vsub.s32 %v276, %v278
        %v280 = vrot.slane %v243, %v279
        %vm281 = vcmask 130112
        %v282 = vsel %vm281, %v280, %v275
        %v283 = vadd.s32 %v271, 4294967280
        %v284 = vlaneseq
        %v285 = vshrl.u32 %v284, 7
        %v286 = vsub.s32 %v283, %v285
        %v287 = vrot.slane %v246, %v286
        %vm288 = vcmask 195712
        %v289 = vsel %vm288, %v287, %v282
        %v290 = vadd.s32 %v271, 4294967272
        %v291 = vlaneseq
        %v292 = vshrl.u32 %v291, 7
        %v293 = vsub.s32 %v290, %v292
        %v294 = vrot.slane %v249, %v293
        %vm295 = vcmask 261312
        %v296 = vsel %vm295, %v294, %v289
        %v302 = vlaneseq
        %v303 = vshrl.u32 %v302, 7
        %v304 = vsub.s32 %v271, %v303
        %v305 = vrot.slane %v262, %v304
        %v306 = vlaneseq
        %v307 = vshrl.u32 %v306, 7
        %v308 = vsub.s32 %v276, %v307
        %v309 = vrot.slane %v263, %v308
        %v310 = vsel %vm281, %v309, %v305
        %v311 = vlaneseq
        %v312 = vshrl.u32 %v311, 7
        %v313 = vsub.s32 %v283, %v312
        %v314 = vrot.slane %v264, %v313
        %v315 = vsel %vm288, %v314, %v310
        %v316 = vlaneseq
        %v317 = vshrl.u32 %v316, 7
        %v318 = vsub.s32 %v290, %v317
        %v319 = vrot.slane %v265, %v318
        %v320 = vsel %vm295, %v319, %v315
        %vm322 = vcmask 1040384
        %v323 = vsel %vm322, %v296, %v320
        %v324 = vld [vmem:[%s1] sm:$0xff]
        %v325 = vld [vmem:[%s1 + $0x8] sm:$0xff]
        %v326 = vld [vmem:[%s1 + $0x10] sm:$0xff]
        %v327 = vld [vmem:[%s1 + $0x18] sm:$0xff]
        %vm328 = vcmask 261120
        %v330 = vsel %vm328, %v323, 0
        %332 = vmatprep.subr.mxu0 0.0
        %333 = vmatpush1.msra.mxu0 %v324
        %334 = vmatprep.subr.mxu0 0.0
        %335 = vmatpush1.msra.mxu0 %v325
        %336 = vmatprep.subr.mxu0 0.0
        %337 = vmatpush1.msra.mxu0 %v326
        %338 = vmatprep.subr.mxu0 0.0
        %339 = vmatpush1.msra.mxu0 %v327
        %340 = vmatprep.subr.mxu0 0.0
        %341 = vmatpush1.msra.mxu0 0.0
        %342 = vmatprep.subr.mxu0 0.0
        %343 = vmatpush1.msra.mxu0 0.0
        %344 = vmatprep.subr.mxu0 0.0
        %345 = vmatpush1.msra.mxu0 0.0
        %346 = vmatprep.subr.mxu0 0.0
        %347 = vmatpush1.msra.mxu0 0.0
        %348 = vmatprep.subr.mxu0 0.0
        %349 = vmatpush1.msra.mxu0 0.0
        %350 = vmatprep.subr.mxu0 0.0
        %351 = vmatpush1.msra.mxu0 0.0
        %352 = vmatprep.subr.mxu0 0.0
        %353 = vmatpush1.msra.mxu0 0.0
        %354 = vmatprep.subr.mxu0 0.0
        %355 = vmatpush1.msra.mxu0 0.0
        %356 = vmatprep.subr.mxu0 0.0
        %357 = vmatpush1.msra.mxu0 0.0
        %358 = vmatprep.subr.mxu0 0.0
        %359 = vmatpush1.msra.mxu0 0.0
        %360 = vmatprep.subr.mxu0 0.0
        %361 = vmatpush1.msra.mxu0 0.0
        %362 = vmatprep.subr.mxu0 0.0
        %363 = vmatpush1.msra.mxu0 0.0
        %364 = vmatprep.subr.mxu0 0.0
        %365 = vmatpush1.msra.mxu0 0.0
        %366 = vmatprep.subr.mxu0 0.0
        %367 = vmatpush1.msra.mxu0 0.0
        %368 = vmatprep.subr.mxu0 0.0
        %369 = vmatpush1.msra.mxu0 0.0
        %370 = vmatprep.subr.mxu0 0.0
        %371 = vmatpush1.msra.mxu0 0.0
        %372 = vmatprep.subr.mxu0 0.0
        %373 = vmatpush1.msra.mxu0 0.0
        %374 = vmatprep.subr.mxu0 0.0
        %375 = vmatpush1.msra.mxu0 0.0
        %376 = vmatprep.subr.mxu0 0.0
        %377 = vmatpush1.msra.mxu0 0.0
        %378 = vmatprep.subr.mxu0 0.0
        %379 = vmatpush1.msra.mxu0 0.0
        %380 = vmatprep.subr.mxu0 0.0
        %381 = vmatpush1.msra.mxu0 0.0
        %382 = vmatprep.subr.mxu0 0.0
        %383 = vmatpush1.msra.mxu0 0.0
        %384 = vmatprep.subr.mxu0 0.0
        %385 = vmatpush1.msra.mxu0 0.0
        %386 = vmatprep.subr.mxu0 0.0
        %387 = vmatpush1.msra.mxu0 0.0
        %388 = vmatprep.subr.mxu0 0.0
        %389 = vmatpush1.msra.mxu0 0.0
        %390 = vmatprep.subr.mxu0 0.0
        %391 = vmatpush1.msra.mxu0 0.0
        %392 = vmatprep.subr.mxu0 0.0
        %393 = vmatpush1.msra.mxu0 0.0
        %394 = vmatprep.subr.mxu0 0.0
        %395 = vmatpush1.msra.mxu0 0.0
        %396 = vmatprep.mubr.f32.mxu0 0.0
        %397 = vmatmul.mubr.f32.gmra.mrb[0].mxu0 %v330
        %v398 = vpop.f32.mrb[0].mxu0
        %v399 = vadd.f32 0.0, %v398
        %v400 = vpop.f32.mrb[0].mxu0
        %401 = vdwg.mxu0
        %vm402 = vcmp.gt.f32.partialorder %v399, 0.0
        %v403 = vmul.f32 %v399, 0.01
        %v404 = vsel %vm402, %v399, %v403
        %v405 = vld [vmem:[%s2] sm:$0x3]
        %vm406 = vcmask 15360
        %v408 = vsel %vm406, %v404, 0
        %vm410 = vcmask 1041408
        %v412 = vsel %vm410, %v405, 0
        %414 = vmatprep.subr.mxu0 0.0
        %415 = vmatpush1.msra.mxu0 %v412
        %416 = vmatprep.subr.mxu0 0.0
        %417 = vmatpush1.msra.mxu0 0.0
        %418 = vmatprep.subr.mxu0 0.0
        %419 = vmatpush1.msra.mxu0 0.0
        %420 = vmatprep.subr.mxu0 0.0
        %421 = vmatpush1.msra.mxu0 0.0
        %422 = vmatprep.subr.mxu0 0.0
        %423 = vmatpush1.msra.mxu0 0.0
        %424 = vmatprep.subr.mxu0 0.0
        %425 = vmatpush1.msra.mxu0 0.0
        %426 = vmatprep.subr.mxu0 0.0
        %427 = vmatpush1.msra.mxu0 0.0
        %428 = vmatprep.subr.mxu0 0.0
        %429 = vmatpush1.msra.mxu0 0.0
        %430 = vmatprep.subr.mxu0 0.0
        %431 = vmatpush1.msra.mxu0 0.0
        %432 = vmatprep.subr.mxu0 0.0
        %433 = vmatpush1.msra.mxu0 0.0
        %434 = vmatprep.subr.mxu0 0.0
        %435 = vmatpush1.msra.mxu0 0.0
        %436 = vmatprep.subr.mxu0 0.0
        %437 = vmatpush1.msra.mxu0 0.0
        %438 = vmatprep.subr.mxu0 0.0
        %439 = vmatpush1.msra.mxu0 0.0
        %440 = vmatprep.subr.mxu0 0.0
        %441 = vmatpush1.msra.mxu0 0.0
        %442 = vmatprep.subr.mxu0 0.0
        %443 = vmatpush1.msra.mxu0 0.0
        %444 = vmatprep.subr.mxu0 0.0
        %445 = vmatpush1.msra.mxu0 0.0
        %446 = vmatprep.subr.mxu0 0.0
        %447 = vmatpush1.msra.mxu0 0.0
        %448 = vmatprep.subr.mxu0 0.0
        %449 = vmatpush1.msra.mxu0 0.0
        %450 = vmatprep.subr.mxu0 0.0
        %451 = vmatpush1.msra.mxu0 0.0
        %452 = vmatprep.subr.mxu0 0.0
        %453 = vmatpush1.msra.mxu0 0.0
        %454 = vmatprep.subr.mxu0 0.0
        %455 = vmatpush1.msra.mxu0 0.0
        %456 = vmatprep.subr.mxu0 0.0
        %457 = vmatpush1.msra.mxu0 0.0
        %458 = vmatprep.subr.mxu0 0.0
        %459 = vmatpush1.msra.mxu0 0.0
        %460 = vmatprep.subr.mxu0 0.0
        %461 = vmatpush1.msra.mxu0 0.0
        %462 = vmatprep.subr.mxu0 0.0
        %463 = vmatpush1.msra.mxu0 0.0
        %464 = vmatprep.subr.mxu0 0.0
        %465 = vmatpush1.msra.mxu0 0.0
        %466 = vmatprep.subr.mxu0 0.0
        %467 = vmatpush1.msra.mxu0 0.0
        %468 = vmatprep.subr.mxu0 0.0
        %469 = vmatpush1.msra.mxu0 0.0
        %470 = vmatprep.subr.mxu0 0.0
        %471 = vmatpush1.msra.mxu0 0.0
        %472 = vmatprep.subr.mxu0 0.0
        %473 = vmatpush1.msra.mxu0 0.0
        %474 = vmatprep.subr.mxu0 0.0
        %475 = vmatpush1.msra.mxu0 0.0
        %476 = vmatprep.subr.mxu0 0.0
        %477 = vmatpush1.msra.mxu0 0.0
        %478 = vmatprep.mubr.f32.mxu0 0.0
        %479 = vmatmul.mubr.f32.gmra.mrb[0].mxu0 %v408
        %v480 = vpop.f32.mrb[0].mxu0
        %v481 = vadd.f32 0.0, %v480
        %v482 = vpop.f32.mrb[0].mxu0
        %483 = vdwg.mxu0
        %v485 = vrot.slane %v481, 1
        %v487 = vadd.f32 %v481, %v485
        %v488 = vxor.u32 %v487, 2147483648
        %v489 = vmul.f32 %v488, 1.442695
        %v490 = vpow.pop %v489
        %v491 = vadd.f32 %v490, 1.0
        %v492 = vrcp.pop %v491
        %v493 = vmul.f32 1.0, %v492
        %v494 = vlaneseq
        %v495 = vshrl.u32 %v494, 7
        %v496 = vsub.s32 0, %v495
        %v497 = vrot.slane %v493, %v496
        %499 = vbcast.lane.b32.xlu0 %v497, 256
        %v500 = vpop.permute.xlu0 %499
        %s502 = sor.u32 256, 8
        %503 = vbcast.lane.b32.xlu0 %v497, %s502
        %v504 = vpop.permute.xlu0 %503
        %s506 = sor.u32 256, 16
        %507 = vbcast.lane.b32.xlu0 %v497, %s506
        %v508 = vpop.permute.xlu0 %507
        %s510 = sor.u32 256, 24
        %511 = vbcast.lane.b32.xlu0 %v497, %s510
        %v512 = vpop.permute.xlu0 %511
        %v513 = vmul.f32 %v230, %v500
        %v514 = vmul.f32 %v231, %v500
        %v515 = vmul.f32 %v232, %v504
        %v516 = vmul.f32 %v233, %v504
        %v517 = vmul.f32 %v234, %v508
        %v518 = vmul.f32 %v235, %v508
        %v519 = vmul.f32 %v236, %v512
        %v520 = vmul.f32 %v237, %v512
        %v521 = vmax.f32 %v513, %v517
        %v522 = vmax.f32 %v515, %v519
        %v523 = vmax.f32 %v521, %v522
        %v524 = vrot.slane %v523, 4
        %v525 = vmax.f32 %v523, %v524
        %v526 = vrot.slane %v525, 2
        %v527 = vmax.f32 %v525, %v526
        %v528 = vrot.slane %v527, 1
        %v529 = vmax.f32 %v527, %v528
        %v530 = vmax.f32 %v514, %v518
        %v531 = vmax.f32 %v516, %v520
        %v532 = vmax.f32 %v530, %v531
        %v533 = vrot.slane %v532, 4
        %v534 = vmax.f32 %v532, %v533
        %v535 = vrot.slane %v534, 2
        %v536 = vmax.f32 %v534, %v535
        %v537 = vrot.slane %v536, 1
        %v538 = vmax.f32 %v536, %v537
        %v539 = vadd.f32 %v513, %v515
        %v540 = vadd.f32 %v539, %v517
        %v541 = vadd.f32 %v540, %v519
        %v542 = vrot.slane %v541, 4
        %v543 = vadd.f32 %v541, %v542
        %v544 = vrot.slane %v543, 2
        %v545 = vadd.f32 %v543, %v544
        %v546 = vrot.slane %v545, 1
        %v547 = vadd.f32 %v545, %v546
        %v548 = vadd.f32 %v514, %v516
        %v549 = vadd.f32 %v548, %v518
        %v550 = vadd.f32 %v549, %v520
        %v551 = vrot.slane %v550, 4
        %v552 = vadd.f32 %v550, %v551
        %v553 = vrot.slane %v552, 2
        %v554 = vadd.f32 %v552, %v553
        %v555 = vrot.slane %v554, 1
        %v556 = vadd.f32 %v554, %v555
        %v557 = vmul.f32 %v547, 0.03125
        %v558 = vmul.f32 %v556, 0.03125
        %vm559 = vcmask 179200
        %560 = vst.msk [vmem:[#allocation2] sm:$0xff] %vm559, 0.0
        %561 = vst.msk [vmem:[#allocation2 + $0x8] sm:$0xff] %vm559, 0.0
        %vm562 = vcmask 177152
        %563 = vst.msk [vmem:[#allocation2 + $0x10] sm:$0x3f] %vm562, 0.0
        %564 = vst.msk [vmem:[#allocation2 + $0x18] sm:$0xff] %vm559, 0.0
        %565 = vst.msk [vmem:[#allocation2 + $0x20] sm:$0xff] %vm559, 0.0
        %566 = vst.msk [vmem:[#allocation2 + $0x28] sm:$0x3f] %vm562, 0.0
        %568 = vrot.lane.b32.xlu0 %v529, 112
        %v569 = vpop.permute.xlu0 %568
        %571 = vrot.lane.b32.xlu0 %v529, 96
        %v572 = vpop.permute.xlu0 %571
        %574 = vrot.lane.b32.xlu0 %v529, 80
        %v575 = vpop.permute.xlu0 %574
        %577 = vrot.lane.b32.xlu0 %v529, 64
        %v578 = vpop.permute.xlu0 %577
        %580 = vrot.lane.b32.xlu0 %v529, 48
        %v581 = vpop.permute.xlu0 %580
        %583 = vrot.lane.b32.xlu0 %v529, 32
        %v584 = vpop.permute.xlu0 %583
        %586 = vrot.lane.b32.xlu0 %v529, 16
        %v587 = vpop.permute.xlu0 %586
        %590 = vrot.lane.b32.xlu0 %v538, 112
        %v591 = vpop.permute.xlu0 %590
        %593 = vrot.lane.b32.xlu0 %v538, 96
        %v594 = vpop.permute.xlu0 %593
        %596 = vrot.lane.b32.xlu0 %v538, 80
        %v597 = vpop.permute.xlu0 %596
        %599 = vrot.lane.b32.xlu0 %v538, 64
        %v600 = vpop.permute.xlu0 %599
        %602 = vrot.lane.b32.xlu0 %v538, 48
        %v603 = vpop.permute.xlu0 %602
        %605 = vrot.lane.b32.xlu0 %v538, 32
        %v606 = vpop.permute.xlu0 %605
        %608 = vrot.lane.b32.xlu0 %v538, 16
        %v609 = vpop.permute.xlu0 %608
        %v611 = vcombine.low %v529, %v572
        %v613 = vunpack.c.l.s4 1983009808
        %v614 = vunpack.c.0.s8 %v613
        %v615 = vlaneseq
        %v616 = vshrl.u32 %v615, 7
        %v617 = vsub.s32 %v614, %v616
        %v618 = vrot.slane %v611, %v617
        %v619 = vcombine.low %v569, %v575
        %v621 = vunpack.c.l.s4 1983009808
        %v622 = vunpack.c.0.s8 %v621
        %v623 = vlaneseq
        %v624 = vshrl.u32 %v623, 7
        %v625 = vsub.s32 %v622, %v624
        %v626 = vrot.slane %v619, %v625
        %v627 = vcombine.low %v578, %v584
        %v629 = vunpack.c.l.s4 1983009808
        %v630 = vunpack.c.0.s8 %v629
        %v631 = vlaneseq
        %v632 = vshrl.u32 %v631, 7
        %v633 = vsub.s32 %v630, %v632
        %v634 = vrot.slane %v627, %v633
        %v635 = vcombine.low %v581, %v587
        %v637 = vunpack.c.l.s4 1983009808
        %v638 = vunpack.c.0.s8 %v637
        %v639 = vlaneseq
        %v640 = vshrl.u32 %v639, 7
        %v641 = vsub.s32 %v638, %v640
        %v642 = vrot.slane %v635, %v641
        %v643 = vcombine.low %v618, %v626
        %v645 = vunpack.c.l.s4 1934713408
        %v646 = vunpack.c.0.s8 %v645
        %v647 = vlaneseq
        %v648 = vshrl.u32 %v647, 7
        %v649 = vsub.s32 %v646, %v648
        %v650 = vrot.slane %v643, %v649
        %v651 = vcombine.low %v634, %v642
        %v653 = vunpack.c.l.s4 1934713408
        %v654 = vunpack.c.0.s8 %v653
        %v655 = vlaneseq
        %v656 = vshrl.u32 %v655, 7
        %v657 = vsub.s32 %v654, %v656
        %v658 = vrot.slane %v651, %v657
        %v659 = vcombine.low %v650, %v658
        %v660 = vcombine.low %v538, %v594
        %v662 = vunpack.c.l.s4 1983009808
        %v663 = vunpack.c.0.s8 %v662
        %v664 = vlaneseq
        %v665 = vshrl.u32 %v664, 7
        %v666 = vsub.s32 %v663, %v665
        %v667 = vrot.slane %v660, %v666
        %v668 = vcombine.low %v591, %v597
        %v670 = vunpack.c.l.s4 1983009808
        %v671 = vunpack.c.0.s8 %v670
        %v672 = vlaneseq
        %v673 = vshrl.u32 %v672, 7
        %v674 = vsub.s32 %v671, %v673
        %v675 = vrot.slane %v668, %v674
        %v676 = vcombine.low %v600, %v606
        %v678 = vunpack.c.l.s4 1983009808
        %v679 = vunpack.c.0.s8 %v678
        %v680 = vlaneseq
        %v681 = vshrl.u32 %v680, 7
        %v682 = vsub.s32 %v679, %v681
        %v683 = vrot.slane %v676, %v682
        %v684 = vcombine.low %v603, %v609
        %v686 = vunpack.c.l.s4 1983009808
        %v687 = vunpack.c.0.s8 %v686
        %v688 = vlaneseq
        %v689 = vshrl.u32 %v688, 7
        %v690 = vsub.s32 %v687, %v689
        %v691 = vrot.slane %v684, %v690
        %v692 = vcombine.low %v667, %v675
        %v694 = vunpack.c.l.s4 1934713408
        %v695 = vunpack.c.0.s8 %v694
        %v696 = vlaneseq
        %v697 = vshrl.u32 %v696, 7
        %v698 = vsub.s32 %v695, %v697
        %v699 = vrot.slane %v692, %v698
        %v700 = vcombine.low %v683, %v691
        %v702 = vunpack.c.l.s4 1934713408
        %v703 = vunpack.c.0.s8 %v702
        %v704 = vlaneseq
        %v705 = vshrl.u32 %v704, 7
        %v706 = vsub.s32 %v703, %v705
        %v707 = vrot.slane %v700, %v706
        %v708 = vcombine.low %v699, %v707
        %711 = vrot.lane.b32.xlu0 %v659, 3
        %v712 = vpop.permute.xlu0 %711
        %713 = vrot.lane.b32.xlu0 %v708, 3
        %v714 = vpop.permute.xlu0 %713
        %vm717 = vcmask 154648
        %718 = vst.msk [vmem:[#allocation2 + $0x3] sm:$0xff] %vm717, %v712
        %719 = vst.msk [vmem:[#allocation2 + $0xb] sm:$0xff] %vm717, %v714
        %721 = vrot.lane.b32.xlu0 %v557, 112
        %v722 = vpop.permute.xlu0 %721
        %724 = vrot.lane.b32.xlu0 %v557, 96
        %v725 = vpop.permute.xlu0 %724
        %727 = vrot.lane.b32.xlu0 %v557, 80
        %v728 = vpop.permute.xlu0 %727
        %730 = vrot.lane.b32.xlu0 %v557, 64
        %v731 = vpop.permute.xlu0 %730
        %733 = vrot.lane.b32.xlu0 %v557, 48
        %v734 = vpop.permute.xlu0 %733
        %736 = vrot.lane.b32.xlu0 %v557, 32
        %v737 = vpop.permute.xlu0 %736
        %739 = vrot.lane.b32.xlu0 %v557, 16
        %v740 = vpop.permute.xlu0 %739
        %743 = vrot.lane.b32.xlu0 %v558, 112
        %v744 = vpop.permute.xlu0 %743
        %746 = vrot.lane.b32.xlu0 %v558, 96
        %v747 = vpop.permute.xlu0 %746
        %749 = vrot.lane.b32.xlu0 %v558, 80
        %v750 = vpop.permute.xlu0 %749
        %752 = vrot.lane.b32.xlu0 %v558, 64
        %v753 = vpop.permute.xlu0 %752
        %755 = vrot.lane.b32.xlu0 %v558, 48
        %v756 = vpop.permute.xlu0 %755
        %758 = vrot.lane.b32.xlu0 %v558, 32
        %v759 = vpop.permute.xlu0 %758
        %761 = vrot.lane.b32.xlu0 %v558, 16
        %v762 = vpop.permute.xlu0 %761
        %v764 = vcombine.low %v557, %v725
        %v766 = vunpack.c.l.s4 1983009808
        %v767 = vunpack.c.0.s8 %v766
        %v768 = vlaneseq
        %v769 = vshrl.u32 %v768, 7
        %v770 = vsub.s32 %v767, %v769
        %v771 = vrot.slane %v764, %v770
        %v772 = vcombine.low %v722, %v728
        %v774 = vunpack.c.l.s4 1983009808
        %v775 = vunpack.c.0.s8 %v774
        %v776 = vlaneseq
        %v777 = vshrl.u32 %v776, 7
        %v778 = vsub.s32 %v775, %v777
        %v779 = vrot.slane %v772, %v778
        %v780 = vcombine.low %v731, %v737
        %v782 = vunpack.c.l.s4 1983009808
        %v783 = vunpack.c.0.s8 %v782
        %v784 = vlaneseq
        %v785 = vshrl.u32 %v784, 7
        %v786 = vsub.s32 %v783, %v785
        %v787 = vrot.slane %v780, %v786
        %v788 = vcombine.low %v734, %v740
        %v790 = vunpack.c.l.s4 1983009808
        %v791 = vunpack.c.0.s8 %v790
        %v792 = vlaneseq
        %v793 = vshrl.u32 %v792, 7
        %v794 = vsub.s32 %v791, %v793
        %v795 = vrot.slane %v788, %v794
        %v796 = vcombine.low %v771, %v779
        %v798 = vunpack.c.l.s4 1934713408
        %v799 = vunpack.c.0.s8 %v798
        %v800 = vlaneseq
        %v801 = vshrl.u32 %v800, 7
        %v802 = vsub.s32 %v799, %v801
        %v803 = vrot.slane %v796, %v802
        %v804 = vcombine.low %v787, %v795
        %v806 = vunpack.c.l.s4 1934713408
        %v807 = vunpack.c.0.s8 %v806
        %v808 = vlaneseq
        %v809 = vshrl.u32 %v808, 7
        %v810 = vsub.s32 %v807, %v809
        %v811 = vrot.slane %v804, %v810
        %v812 = vcombine.low %v803, %v811
        %v813 = vcombine.low %v558, %v747
        %v815 = vunpack.c.l.s4 1983009808
        %v816 = vunpack.c.0.s8 %v815
        %v817 = vlaneseq
        %v818 = vshrl.u32 %v817, 7
        %v819 = vsub.s32 %v816, %v818
        %v820 = vrot.slane %v813, %v819
        %v821 = vcombine.low %v744, %v750
        %v823 = vunpack.c.l.s4 1983009808
        %v824 = vunpack.c.0.s8 %v823
        %v825 = vlaneseq
        %v826 = vshrl.u32 %v825, 7
        %v827 = vsub.s32 %v824, %v826
        %v828 = vrot.slane %v821, %v827
        %v829 = vcombine.low %v753, %v759
        %v831 = vunpack.c.l.s4 1983009808
        %v832 = vunpack.c.0.s8 %v831
        %v833 = vlaneseq
        %v834 = vshrl.u32 %v833, 7
        %v835 = vsub.s32 %v832, %v834
        %v836 = vrot.slane %v829, %v835
        %v837 = vcombine.low %v756, %v762
        %v839 = vunpack.c.l.s4 1983009808
        %v840 = vunpack.c.0.s8 %v839
        %v841 = vlaneseq
        %v842 = vshrl.u32 %v841, 7
        %v843 = vsub.s32 %v840, %v842
        %v844 = vrot.slane %v837, %v843
        %v845 = vcombine.low %v820, %v828
        %v847 = vunpack.c.l.s4 1934713408
        %v848 = vunpack.c.0.s8 %v847
        %v849 = vlaneseq
        %v850 = vshrl.u32 %v849, 7
        %v851 = vsub.s32 %v848, %v850
        %v852 = vrot.slane %v845, %v851
        %v853 = vcombine.low %v836, %v844
        %v855 = vunpack.c.l.s4 1934713408
        %v856 = vunpack.c.0.s8 %v855
        %v857 = vlaneseq
        %v858 = vshrl.u32 %v857, 7
        %v859 = vsub.s32 %v856, %v858
        %v860 = vrot.slane %v853, %v859
        %v861 = vcombine.low %v852, %v860
        %864 = vrot.lane.b32.xlu0 %v812, 3
        %v865 = vpop.permute.xlu0 %864
        %866 = vrot.lane.b32.xlu0 %v861, 3
        %v867 = vpop.permute.xlu0 %866
        %s870 = scalar_lea.vmem [#allocation2], 24
        %871 = vst.msk [vmem:[%s870 + $0x3] sm:$0xff] %vm717, %v865
        %872 = vst.msk [vmem:[%s870 + $0xb] sm:$0xff] %vm717, %v867
        %v873 = vld [vmem:[#allocation2] sm:$0xff]
        %v874 = vld [vmem:[#allocation2 + $0x8] sm:$0xff]
        %v875 = vld [vmem:[#allocation2 + $0x10] sm:$0x3f]
        %v876 = vld [vmem:[#allocation2 + $0x18] sm:$0xff]
        %v877 = vld [vmem:[#allocation2 + $0x20] sm:$0xff]
        %v878 = vld [vmem:[#allocation2 + $0x28] sm:$0x3f]
        %s879 = sld [smem:[#allocation7]]
        %v880 = vstv %s879
        %v881 = vmul.f32 %v880, %v873
        %v882 = vmul.f32 %v880, %v874
        %v883 = vadd.f32 %v881, 0.0
        %v884 = vadd.f32 %v882, 0.0
        %s885 = sld [smem:[#allocation7 + $0x7]]
        %v886 = vstv %s885
        %v887 = vmul.f32 %v886, %v873
        %v888 = vmul.f32 %v886, %v874
        %v889 = vmul.f32 %v886, %v875
        %vm893 = vcmask 1046528
        %v894 = vrot.slane %v887, 1
        %v895 = vrot.slane %v888, 1
        %v896 = vsel %vm893, %v894, %v895
        %v897 = vrot.slane %v889, 1
        %v898 = vsel %vm893, %v895, %v897
        %v901 = vadd.f32 %v883, %v896
        %v902 = vadd.f32 %v884, %v898
        %s903 = sld [smem:[#allocation7 + $0xe]]
        %v904 = vstv %s903
        %v905 = vmul.f32 %v904, %v873
        %v906 = vmul.f32 %v904, %v874
        %v907 = vmul.f32 %v904, %v875
        %vm911 = vcmask 1045504
        %v912 = vrot.slane %v905, 2
        %v913 = vrot.slane %v906, 2
        %v914 = vsel %vm911, %v912, %v913
        %v915 = vrot.slane %v907, 2
        %v916 = vsel %vm911, %v913, %v915
        %v919 = vadd.f32 %v901, %v914
        %v920 = vadd.f32 %v902, %v916
        %s921 = sld [smem:[#allocation7 + $0x15]]
        %v922 = vstv %s921
        %v923 = vmul.f32 %v922, %v873
        %v924 = vmul.f32 %v922, %v874
        %v925 = vmul.f32 %v922, %v875
        %vm929 = vcmask 1044480
        %v930 = vrot.slane %v923, 3
        %v931 = vrot.slane %v924, 3
        %v932 = vsel %vm929, %v930, %v931
        %v933 = vrot.slane %v925, 3
        %v934 = vsel %vm929, %v931, %v933
        %v937 = vadd.f32 %v919, %v932
        %v938 = vadd.f32 %v920, %v934
        %s939 = sld [smem:[#allocation7 + $0x1c]]
        %v940 = vstv %s939
        %v941 = vmul.f32 %v940, %v873
        %v942 = vmul.f32 %v940, %v874
        %v943 = vmul.f32 %v940, %v875
        %vm947 = vcmask 1043456
        %v948 = vrot.slane %v941, 4
        %v949 = vrot.slane %v942, 4
        %v950 = vsel %vm947, %v948, %v949
        %v951 = vrot.slane %v943, 4
        %v952 = vsel %vm947, %v949, %v951
        %v955 = vadd.f32 %v937, %v950
        %v956 = vadd.f32 %v938, %v952
        %s957 = sld [smem:[#allocation7 + $0x23]]
        %v958 = vstv %s957
        %v959 = vmul.f32 %v958, %v873
        %v960 = vmul.f32 %v958, %v874
        %v961 = vmul.f32 %v958, %v875
        %vm965 = vcmask 1042432
        %v966 = vrot.slane %v959, 5
        %v967 = vrot.slane %v960, 5
        %v968 = vsel %vm965, %v966, %v967
        %v969 = vrot.slane %v961, 5
        %v970 = vsel %vm965, %v967, %v969
        %v973 = vadd.f32 %v955, %v968
        %v974 = vadd.f32 %v956, %v970
        %s975 = sld [smem:[#allocation7 + $0x2a]]
        %v976 = vstv %s975
        %v977 = vmul.f32 %v976, %v873
        %v978 = vmul.f32 %v976, %v874
        %v979 = vmul.f32 %v976, %v875
        %v983 = vrot.slane %v977, 6
        %v984 = vrot.slane %v978, 6
        %v985 = vsel %vm410, %v983, %v984
        %v986 = vrot.slane %v979, 6
        %v987 = vsel %vm410, %v984, %v986
        %v990 = vadd.f32 %v973, %v985
        %v991 = vadd.f32 %v974, %v987
        %s992 = sld [smem:[#allocation7 + $0x1]]
        %v993 = vstv %s992
        %v994 = vmul.f32 %v993, %v873
        %v995 = vmul.f32 %v993, %v874
        %998 = vrot.lane.b32.xlu0 %v994, 127
        %v999 = vpop.permute.xlu0 %998
        %1000 = vrot.lane.b32.xlu0 %v995, 127
        %v1001 = vpop.permute.xlu0 %1000
        %v1004 = vadd.f32 %v990, %v999
        %v1005 = vadd.f32 %v991, %v1001
        %s1006 = sld [smem:[#allocation7 + $0x8]]
        %v1007 = vstv %s1006
        %v1008 = vmul.f32 %v1007, %v873
        %v1009 = vmul.f32 %v1007, %v874
        %v1010 = vmul.f32 %v1007, %v875
        %v1014 = vrot.slane %v1008, 1
        %v1015 = vrot.slane %v1009, 1
        %v1016 = vsel %vm893, %v1014, %v1015
        %v1017 = vrot.slane %v1010, 1
        %v1018 = vsel %vm893, %v1015, %v1017
        %1019 = vrot.lane.b32.xlu0 %v1016, 127
        %v1020 = vpop.permute.xlu0 %1019
        %1021 = vrot.lane.b32.xlu0 %v1018, 127
        %v1022 = vpop.permute.xlu0 %1021
        %v1025 = vadd.f32 %v1004, %v1020
        %v1026 = vadd.f32 %v1005, %v1022
        %s1027 = sld [smem:[#allocation7 + $0xf]]
        %v1028 = vstv %s1027
        %v1029 = vmul.f32 %v1028, %v873
        %v1030 = vmul.f32 %v1028, %v874
        %v1031 = vmul.f32 %v1028, %v875
        %v1035 = vrot.slane %v1029, 2
        %v1036 = vrot.slane %v1030, 2
        %v1037 = vsel %vm911, %v1035, %v1036
        %v1038 = vrot.slane %v1031, 2
        %v1039 = vsel %vm911, %v1036, %v1038
        %1040 = vrot.lane.b32.xlu0 %v1037, 127
        %v1041 = vpop.permute.xlu0 %1040
        %1042 = vrot.lane.b32.xlu0 %v1039, 127
        %v1043 = vpop.permute.xlu0 %1042
        %v1046 = vadd.f32 %v1025, %v1041
        %v1047 = vadd.f32 %v1026, %v1043
        %s1048 = sld [smem:[#allocation7 + $0x16]]
        %v1049 = vstv %s1048
        %v1050 = vmul.f32 %v1049, %v873
        %v1051 = vmul.f32 %v1049, %v874
        %v1052 = vmul.f32 %v1049, %v875
        %v1056 = vrot.slane %v1050, 3
        %v1057 = vrot.slane %v1051, 3
        %v1058 = vsel %vm929, %v1056, %v1057
        %v1059 = vrot.slane %v1052, 3
        %v1060 = vsel %vm929, %v1057, %v1059
        %1061 = vrot.lane.b32.xlu0 %v1058, 127
        %v1062 = vpop.permute.xlu0 %1061
        %1063 = vrot.lane.b32.xlu0 %v1060, 127
        %v1064 = vpop.permute.xlu0 %1063
        %v1067 = vadd.f32 %v1046, %v1062
        %v1068 = vadd.f32 %v1047, %v1064
        %s1069 = sld [smem:[#allocation7 + $0x1d]]
        %v1070 = vstv %s1069
        %v1071 = vmul.f32 %v1070, %v873
        %v1072 = vmul.f32 %v1070, %v874
        %v1073 = vmul.f32 %v1070, %v875
        %v1077 = vrot.slane %v1071, 4
        %v1078 = vrot.slane %v1072, 4
        %v1079 = vsel %vm947, %v1077, %v1078
        %v1080 = vrot.slane %v1073, 4
        %v1081 = vsel %vm947, %v1078, %v1080
        %1082 = vrot.lane.b32.xlu0 %v1079, 127
        %v1083 = vpop.permute.xlu0 %1082
        %1084 = vrot.lane.b32.xlu0 %v1081, 127
        %v1085 = vpop.permute.xlu0 %1084
        %v1088 = vadd.f32 %v1067, %v1083
        %v1089 = vadd.f32 %v1068, %v1085
        %s1090 = sld [smem:[#allocation7 + $0x24]]
        %v1091 = vstv %s1090
        %v1092 = vmul.f32 %v1091, %v873
        %v1093 = vmul.f32 %v1091, %v874
        %v1094 = vmul.f32 %v1091, %v875
        %v1098 = vrot.slane %v1092, 5
        %v1099 = vrot.slane %v1093, 5
        %v1100 = vsel %vm965, %v1098, %v1099
        %v1101 = vrot.slane %v1094, 5
        %v1102 = vsel %vm965, %v1099, %v1101
        %1103 = vrot.lane.b32.xlu0 %v1100, 127
        %v1104 = vpop.permute.xlu0 %1103
        %1105 = vrot.lane.b32.xlu0 %v1102, 127
        %v1106 = vpop.permute.xlu0 %1105
        %v1109 = vadd.f32 %v1088, %v1104
        %v1110 = vadd.f32 %v1089, %v1106
        %s1111 = sld [smem:[#allocation7 + $0x2b]]
        %v1112 = vstv %s1111
        %v1113 = vmul.f32 %v1112, %v873
        %v1114 = vmul.f32 %v1112, %v874
        %v1115 = vmul.f32 %v1112, %v875
        %v1119 = vrot.slane %v1113, 6
        %v1120 = vrot.slane %v1114, 6
        %v1121 = vsel %vm410, %v1119, %v1120
        %v1122 = vrot.slane %v1115, 6
        %v1123 = vsel %vm410, %v1120, %v1122
        %1124 = vrot.lane.b32.xlu0 %v1121, 127
        %v1125 = vpop.permute.xlu0 %1124
        %1126 = vrot.lane.b32.xlu0 %v1123, 127
        %v1127 = vpop.permute.xlu0 %1126
        %v1130 = vadd.f32 %v1109, %v1125
        %v1131 = vadd.f32 %v1110, %v1127
        %s1132 = sld [smem:[#allocation7 + $0x2]]
        %v1133 = vstv %s1132
        %v1134 = vmul.f32 %v1133, %v873
        %v1135 = vmul.f32 %v1133, %v874
        %1138 = vrot.lane.b32.xlu0 %v1134, 126
        %v1139 = vpop.permute.xlu0 %1138
        %1140 = vrot.lane.b32.xlu0 %v1135, 126
        %v1141 = vpop.permute.xlu0 %1140
        %v1144 = vadd.f32 %v1130, %v1139
        %v1145 = vadd.f32 %v1131, %v1141
        %s1146 = sld [smem:[#allocation7 + $0x9]]
        %v1147 = vstv %s1146
        %v1148 = vmul.f32 %v1147, %v873
        %v1149 = vmul.f32 %v1147, %v874
        %v1150 = vmul.f32 %v1147, %v875
        %v1154 = vrot.slane %v1148, 1
        %v1155 = vrot.slane %v1149, 1
        %v1156 = vsel %vm893, %v1154, %v1155
        %v1157 = vrot.slane %v1150, 1
        %v1158 = vsel %vm893, %v1155, %v1157
        %1159 = vrot.lane.b32.xlu0 %v1156, 126
        %v1160 = vpop.permute.xlu0 %1159
        %1161 = vrot.lane.b32.xlu0 %v1158, 126
        %v1162 = vpop.permute.xlu0 %1161
        %v1165 = vadd.f32 %v1144, %v1160
        %v1166 = vadd.f32 %v1145, %v1162
        %s1167 = sld [smem:[#allocation7 + $0x10]]
        %v1168 = vstv %s1167
        %v1169 = vmul.f32 %v1168, %v873
        %v1170 = vmul.f32 %v1168, %v874
        %v1171 = vmul.f32 %v1168, %v875
        %v1175 = vrot.slane %v1169, 2
        %v1176 = vrot.slane %v1170, 2
        %v1177 = vsel %vm911, %v1175, %v1176
        %v1178 = vrot.slane %v1171, 2
        %v1179 = vsel %vm911, %v1176, %v1178
        %1180 = vrot.lane.b32.xlu0 %v1177, 126
        %v1181 = vpop.permute.xlu0 %1180
        %1182 = vrot.lane.b32.xlu0 %v1179, 126
        %v1183 = vpop.permute.xlu0 %1182
        %v1186 = vadd.f32 %v1165, %v1181
        %v1187 = vadd.f32 %v1166, %v1183
        %s1188 = sld [smem:[#allocation7 + $0x17]]
        %v1189 = vstv %s1188
        %v1190 = vmul.f32 %v1189, %v873
        %v1191 = vmul.f32 %v1189, %v874
        %v1192 = vmul.f32 %v1189, %v875
        %v1196 = vrot.slane %v1190, 3
        %v1197 = vrot.slane %v1191, 3
        %v1198 = vsel %vm929, %v1196, %v1197
        %v1199 = vrot.slane %v1192, 3
        %v1200 = vsel %vm929, %v1197, %v1199
        %1201 = vrot.lane.b32.xlu0 %v1198, 126
        %v1202 = vpop.permute.xlu0 %1201
        %1203 = vrot.lane.b32.xlu0 %v1200, 126
        %v1204 = vpop.permute.xlu0 %1203
        %v1207 = vadd.f32 %v1186, %v1202
        %v1208 = vadd.f32 %v1187, %v1204
        %s1209 = sld [smem:[#allocation7 + $0x1e]]
        %v1210 = vstv %s1209
        %v1211 = vmul.f32 %v1210, %v873
        %v1212 = vmul.f32 %v1210, %v874
        %v1213 = vmul.f32 %v1210, %v875
        %v1217 = vrot.slane %v1211, 4
        %v1218 = vrot.slane %v1212, 4
        %v1219 = vsel %vm947, %v1217, %v1218
        %v1220 = vrot.slane %v1213, 4
        %v1221 = vsel %vm947, %v1218, %v1220
        %1222 = vrot.lane.b32.xlu0 %v1219, 126
        %v1223 = vpop.permute.xlu0 %1222
        %1224 = vrot.lane.b32.xlu0 %v1221, 126
        %v1225 = vpop.permute.xlu0 %1224
        %v1228 = vadd.f32 %v1207, %v1223
        %v1229 = vadd.f32 %v1208, %v1225
        %s1230 = sld [smem:[#allocation7 + $0x25]]
        %v1231 = vstv %s1230
        %v1232 = vmul.f32 %v1231, %v873
        %v1233 = vmul.f32 %v1231, %v874
        %v1234 = vmul.f32 %v1231, %v875
        %v1238 = vrot.slane %v1232, 5
        %v1239 = vrot.slane %v1233, 5
        %v1240 = vsel %vm965, %v1238, %v1239
        %v1241 = vrot.slane %v1234, 5
        %v1242 = vsel %vm965, %v1239, %v1241
        %1243 = vrot.lane.b32.xlu0 %v1240, 126
        %v1244 = vpop.permute.xlu0 %1243
        %1245 = vrot.lane.b32.xlu0 %v1242, 126
        %v1246 = vpop.permute.xlu0 %1245
        %v1249 = vadd.f32 %v1228, %v1244
        %v1250 = vadd.f32 %v1229, %v1246
        %s1251 = sld [smem:[#allocation7 + $0x2c]]
        %v1252 = vstv %s1251
        %v1253 = vmul.f32 %v1252, %v873
        %v1254 = vmul.f32 %v1252, %v874
        %v1255 = vmul.f32 %v1252, %v875
        %v1259 = vrot.slane %v1253, 6
        %v1260 = vrot.slane %v1254, 6
        %v1261 = vsel %vm410, %v1259, %v1260
        %v1262 = vrot.slane %v1255, 6
        %v1263 = vsel %vm410, %v1260, %v1262
        %1264 = vrot.lane.b32.xlu0 %v1261, 126
        %v1265 = vpop.permute.xlu0 %1264
        %1266 = vrot.lane.b32.xlu0 %v1263, 126
        %v1267 = vpop.permute.xlu0 %1266
        %v1270 = vadd.f32 %v1249, %v1265
        %v1271 = vadd.f32 %v1250, %v1267
        %s1272 = sld [smem:[#allocation7 + $0x3]]
        %v1273 = vstv %s1272
        %v1274 = vmul.f32 %v1273, %v873
        %v1275 = vmul.f32 %v1273, %v874
        %1278 = vrot.lane.b32.xlu0 %v1274, 125
        %v1279 = vpop.permute.xlu0 %1278
        %1280 = vrot.lane.b32.xlu0 %v1275, 125
        %v1281 = vpop.permute.xlu0 %1280
        %v1284 = vadd.f32 %v1270, %v1279
        %v1285 = vadd.f32 %v1271, %v1281
        %s1286 = sld [smem:[#allocation7 + $0xa]]
        %v1287 = vstv %s1286
        %v1288 = vmul.f32 %v1287, %v873
        %v1289 = vmul.f32 %v1287, %v874
        %v1290 = vmul.f32 %v1287, %v875
        %v1294 = vrot.slane %v1288, 1
        %v1295 = vrot.slane %v1289, 1
        %v1296 = vsel %vm893, %v1294, %v1295
        %v1297 = vrot.slane %v1290, 1
        %v1298 = vsel %vm893, %v1295, %v1297
        %1299 = vrot.lane.b32.xlu0 %v1296, 125
        %v1300 = vpop.permute.xlu0 %1299
        %1301 = vrot.lane.b32.xlu0 %v1298, 125
        %v1302 = vpop.permute.xlu0 %1301
        %v1305 = vadd.f32 %v1284, %v1300
        %v1306 = vadd.f32 %v1285, %v1302
        %s1307 = sld [smem:[#allocation7 + $0x11]]
        %v1308 = vstv %s1307
        %v1309 = vmul.f32 %v1308, %v873
        %v1310 = vmul.f32 %v1308, %v874
        %v1311 = vmul.f32 %v1308, %v875
        %v1315 = vrot.slane %v1309, 2
        %v1316 = vrot.slane %v1310, 2
        %v1317 = vsel %vm911, %v1315, %v1316
        %v1318 = vrot.slane %v1311, 2
        %v1319 = vsel %vm911, %v1316, %v1318
        %1320 = vrot.lane.b32.xlu0 %v1317, 125
        %v1321 = vpop.permute.xlu0 %1320
        %1322 = vrot.lane.b32.xlu0 %v1319, 125
        %v1323 = vpop.permute.xlu0 %1322
        %v1326 = vadd.f32 %v1305, %v1321
        %v1327 = vadd.f32 %v1306, %v1323
        %s1328 = sld [smem:[#allocation7 + $0x18]]
        %v1329 = vstv %s1328
        %v1330 = vmul.f32 %v1329, %v873
        %v1331 = vmul.f32 %v1329, %v874
        %v1332 = vmul.f32 %v1329, %v875
        %v1336 = vrot.slane %v1330, 3
        %v1337 = vrot.slane %v1331, 3
        %v1338 = vsel %vm929, %v1336, %v1337
        %v1339 = vrot.slane %v1332, 3
        %v1340 = vsel %vm929, %v1337, %v1339
        %1341 = vrot.lane.b32.xlu0 %v1338, 125
        %v1342 = vpop.permute.xlu0 %1341
        %1343 = vrot.lane.b32.xlu0 %v1340, 125
        %v1344 = vpop.permute.xlu0 %1343
        %v1347 = vadd.f32 %v1326, %v1342
        %v1348 = vadd.f32 %v1327, %v1344
        %s1349 = sld [smem:[#allocation7 + $0x1f]]
        %v1350 = vstv %s1349
        %v1351 = vmul.f32 %v1350, %v873
        %v1352 = vmul.f32 %v1350, %v874
        %v1353 = vmul.f32 %v1350, %v875
        %v1357 = vrot.slane %v1351, 4
        %v1358 = vrot.slane %v1352, 4
        %v1359 = vsel %vm947, %v1357, %v1358
        %v1360 = vrot.slane %v1353, 4
        %v1361 = vsel %vm947, %v1358, %v1360
        %1362 = vrot.lane.b32.xlu0 %v1359, 125
        %v1363 = vpop.permute.xlu0 %1362
        %1364 = vrot.lane.b32.xlu0 %v1361, 125
        %v1365 = vpop.permute.xlu0 %1364
        %v1368 = vadd.f32 %v1347, %v1363
        %v1369 = vadd.f32 %v1348, %v1365
        %s1370 = sld [smem:[#allocation7 + $0x26]]
        %v1371 = vstv %s1370
        %v1372 = vmul.f32 %v1371, %v873
        %v1373 = vmul.f32 %v1371, %v874
        %v1374 = vmul.f32 %v1371, %v875
        %v1378 = vrot.slane %v1372, 5
        %v1379 = vrot.slane %v1373, 5
        %v1380 = vsel %vm965, %v1378, %v1379
        %v1381 = vrot.slane %v1374, 5
        %v1382 = vsel %vm965, %v1379, %v1381
        %1383 = vrot.lane.b32.xlu0 %v1380, 125
        %v1384 = vpop.permute.xlu0 %1383
        %1385 = vrot.lane.b32.xlu0 %v1382, 125
        %v1386 = vpop.permute.xlu0 %1385
        %v1389 = vadd.f32 %v1368, %v1384
        %v1390 = vadd.f32 %v1369, %v1386
        %s1391 = sld [smem:[#allocation7 + $0x2d]]
        %v1392 = vstv %s1391
        %v1393 = vmul.f32 %v1392, %v873
        %v1394 = vmul.f32 %v1392, %v874
        %v1395 = vmul.f32 %v1392, %v875
        %v1399 = vrot.slane %v1393, 6
        %v1400 = vrot.slane %v1394, 6
        %v1401 = vsel %vm410, %v1399, %v1400
        %v1402 = vrot.slane %v1395, 6
        %v1403 = vsel %vm410, %v1400, %v1402
        %1404 = vrot.lane.b32.xlu0 %v1401, 125
        %v1405 = vpop.permute.xlu0 %1404
        %1406 = vrot.lane.b32.xlu0 %v1403, 125
        %v1407 = vpop.permute.xlu0 %1406
        %v1410 = vadd.f32 %v1389, %v1405
        %v1411 = vadd.f32 %v1390, %v1407
        %s1412 = sld [smem:[#allocation7 + $0x4]]
        %v1413 = vstv %s1412
        %v1414 = vmul.f32 %v1413, %v873
        %v1415 = vmul.f32 %v1413, %v874
        %1418 = vrot.lane.b32.xlu0 %v1414, 124
        %v1419 = vpop.permute.xlu0 %1418
        %1420 = vrot.lane.b32.xlu0 %v1415, 124
        %v1421 = vpop.permute.xlu0 %1420
        %v1424 = vadd.f32 %v1410, %v1419
        %v1425 = vadd.f32 %v1411, %v1421
        %s1426 = sld [smem:[#allocation7 + $0xb]]
        %v1427 = vstv %s1426
        %v1428 = vmul.f32 %v1427, %v873
        %v1429 = vmul.f32 %v1427, %v874
        %v1430 = vmul.f32 %v1427, %v875
        %v1434 = vrot.slane %v1428, 1
        %v1435 = vrot.slane %v1429, 1
        %v1436 = vsel %vm893, %v1434, %v1435
        %v1437 = vrot.slane %v1430, 1
        %v1438 = vsel %vm893, %v1435, %v1437
        %1439 = vrot.lane.b32.xlu0 %v1436, 124
        %v1440 = vpop.permute.xlu0 %1439
        %1441 = vrot.lane.b32.xlu0 %v1438, 124
        %v1442 = vpop.permute.xlu0 %1441
        %v1445 = vadd.f32 %v1424, %v1440
        %v1446 = vadd.f32 %v1425, %v1442
        %s1447 = sld [smem:[#allocation7 + $0x12]]
        %v1448 = vstv %s1447
        %v1449 = vmul.f32 %v1448, %v873
        %v1450 = vmul.f32 %v1448, %v874
        %v1451 = vmul.f32 %v1448, %v875
        %v1455 = vrot.slane %v1449, 2
        %v1456 = vrot.slane %v1450, 2
        %v1457 = vsel %vm911, %v1455, %v1456
        %v1458 = vrot.slane %v1451, 2
        %v1459 = vsel %vm911, %v1456, %v1458
        %1460 = vrot.lane.b32.xlu0 %v1457, 124
        %v1461 = vpop.permute.xlu0 %1460
        %1462 = vrot.lane.b32.xlu0 %v1459, 124
        %v1463 = vpop.permute.xlu0 %1462
        %v1466 = vadd.f32 %v1445, %v1461
        %v1467 = vadd.f32 %v1446, %v1463
        %s1468 = sld [smem:[#allocation7 + $0x19]]
        %v1469 = vstv %s1468
        %v1470 = vmul.f32 %v1469, %v873
        %v1471 = vmul.f32 %v1469, %v874
        %v1472 = vmul.f32 %v1469, %v875
        %v1476 = vrot.slane %v1470, 3
        %v1477 = vrot.slane %v1471, 3
        %v1478 = vsel %vm929, %v1476, %v1477
        %v1479 = vrot.slane %v1472, 3
        %v1480 = vsel %vm929, %v1477, %v1479
        %1481 = vrot.lane.b32.xlu0 %v1478, 124
        %v1482 = vpop.permute.xlu0 %1481
        %1483 = vrot.lane.b32.xlu0 %v1480, 124
        %v1484 = vpop.permute.xlu0 %1483
        %v1487 = vadd.f32 %v1466, %v1482
        %v1488 = vadd.f32 %v1467, %v1484
        %s1489 = sld [smem:[#allocation7 + $0x20]]
        %v1490 = vstv %s1489
        %v1491 = vmul.f32 %v1490, %v873
        %v1492 = vmul.f32 %v1490, %v874
        %v1493 = vmul.f32 %v1490, %v875
        %v1497 = vrot.slane %v1491, 4
        %v1498 = vrot.slane %v1492, 4
        %v1499 = vsel %vm947, %v1497, %v1498
        %v1500 = vrot.slane %v1493, 4
        %v1501 = vsel %vm947, %v1498, %v1500
        %1502 = vrot.lane.b32.xlu0 %v1499, 124
        %v1503 = vpop.permute.xlu0 %1502
        %1504 = vrot.lane.b32.xlu0 %v1501, 124
        %v1505 = vpop.permute.xlu0 %1504
        %v1508 = vadd.f32 %v1487, %v1503
        %v1509 = vadd.f32 %v1488, %v1505
        %s1510 = sld [smem:[#allocation7 + $0x27]]
        %v1511 = vstv %s1510
        %v1512 = vmul.f32 %v1511, %v873
        %v1513 = vmul.f32 %v1511, %v874
        %v1514 = vmul.f32 %v1511, %v875
        %v1518 = vrot.slane %v1512, 5
        %v1519 = vrot.slane %v1513, 5
        %v1520 = vsel %vm965, %v1518, %v1519
        %v1521 = vrot.slane %v1514, 5
        %v1522 = vsel %vm965, %v1519, %v1521
        %1523 = vrot.lane.b32.xlu0 %v1520, 124
        %v1524 = vpop.permute.xlu0 %1523
        %1525 = vrot.lane.b32.xlu0 %v1522, 124
        %v1526 = vpop.permute.xlu0 %1525
        %v1529 = vadd.f32 %v1508, %v1524
        %v1530 = vadd.f32 %v1509, %v1526
        %s1531 = sld [smem:[#allocation7 + $0x2e]]
        %v1532 = vstv %s1531
        %v1533 = vmul.f32 %v1532, %v873
        %v1534 = vmul.f32 %v1532, %v874
        %v1535 = vmul.f32 %v1532, %v875
        %v1539 = vrot.slane %v1533, 6
        %v1540 = vrot.slane %v1534, 6
        %v1541 = vsel %vm410, %v1539, %v1540
        %v1542 = vrot.slane %v1535, 6
        %v1543 = vsel %vm410, %v1540, %v1542
        %1544 = vrot.lane.b32.xlu0 %v1541, 124
        %v1545 = vpop.permute.xlu0 %1544
        %1546 = vrot.lane.b32.xlu0 %v1543, 124
        %v1547 = vpop.permute.xlu0 %1546
        %v1550 = vadd.f32 %v1529, %v1545
        %v1551 = vadd.f32 %v1530, %v1547
        %s1552 = sld [smem:[#allocation7 + $0x5]]
        %v1553 = vstv %s1552
        %v1554 = vmul.f32 %v1553, %v873
        %v1555 = vmul.f32 %v1553, %v874
        %1558 = vrot.lane.b32.xlu0 %v1554, 123
        %v1559 = vpop.permute.xlu0 %1558
        %1560 = vrot.lane.b32.xlu0 %v1555, 123
        %v1561 = vpop.permute.xlu0 %1560
        %v1564 = vadd.f32 %v1550, %v1559
        %v1565 = vadd.f32 %v1551, %v1561
        %s1566 = sld [smem:[#allocation7 + $0xc]]
        %v1567 = vstv %s1566
        %v1568 = vmul.f32 %v1567, %v873
        %v1569 = vmul.f32 %v1567, %v874
        %v1570 = vmul.f32 %v1567, %v875
        %v1574 = vrot.slane %v1568, 1
        %v1575 = vrot.slane %v1569, 1
        %v1576 = vsel %vm893, %v1574, %v1575
        %v1577 = vrot.slane %v1570, 1
        %v1578 = vsel %vm893, %v1575, %v1577
        %1579 = vrot.lane.b32.xlu0 %v1576, 123
        %v1580 = vpop.permute.xlu0 %1579
        %1581 = vrot.lane.b32.xlu0 %v1578, 123
        %v1582 = vpop.permute.xlu0 %1581
        %v1585 = vadd.f32 %v1564, %v1580
        %v1586 = vadd.f32 %v1565, %v1582
        %s1587 = sld [smem:[#allocation7 + $0x13]]
        %v1588 = vstv %s1587
        %v1589 = vmul.f32 %v1588, %v873
        %v1590 = vmul.f32 %v1588, %v874
        %v1591 = vmul.f32 %v1588, %v875
        %v1595 = vrot.slane %v1589, 2
        %v1596 = vrot.slane %v1590, 2
        %v1597 = vsel %vm911, %v1595, %v1596
        %v1598 = vrot.slane %v1591, 2
        %v1599 = vsel %vm911, %v1596, %v1598
        %1600 = vrot.lane.b32.xlu0 %v1597, 123
        %v1601 = vpop.permute.xlu0 %1600
        %1602 = vrot.lane.b32.xlu0 %v1599, 123
        %v1603 = vpop.permute.xlu0 %1602
        %v1606 = vadd.f32 %v1585, %v1601
        %v1607 = vadd.f32 %v1586, %v1603
        %s1608 = sld [smem:[#allocation7 + $0x1a]]
        %v1609 = vstv %s1608
        %v1610 = vmul.f32 %v1609, %v873
        %v1611 = vmul.f32 %v1609, %v874
        %v1612 = vmul.f32 %v1609, %v875
        %v1616 = vrot.slane %v1610, 3
        %v1617 = vrot.slane %v1611, 3
        %v1618 = vsel %vm929, %v1616, %v1617
        %v1619 = vrot.slane %v1612, 3
        %v1620 = vsel %vm929, %v1617, %v1619
        %1621 = vrot.lane.b32.xlu0 %v1618, 123
        %v1622 = vpop.permute.xlu0 %1621
        %1623 = vrot.lane.b32.xlu0 %v1620, 123
        %v1624 = vpop.permute.xlu0 %1623
        %v1627 = vadd.f32 %v1606, %v1622
        %v1628 = vadd.f32 %v1607, %v1624
        %s1629 = sld [smem:[#allocation7 + $0x21]]
        %v1630 = vstv %s1629
        %v1631 = vmul.f32 %v1630, %v873
        %v1632 = vmul.f32 %v1630, %v874
        %v1633 = vmul.f32 %v1630, %v875
        %v1637 = vrot.slane %v1631, 4
        %v1638 = vrot.slane %v1632, 4
        %v1639 = vsel %vm947, %v1637, %v1638
        %v1640 = vrot.slane %v1633, 4
        %v1641 = vsel %vm947, %v1638, %v1640
        %1642 = vrot.lane.b32.xlu0 %v1639, 123
        %v1643 = vpop.permute.xlu0 %1642
        %1644 = vrot.lane.b32.xlu0 %v1641, 123
        %v1645 = vpop.permute.xlu0 %1644
        %v1648 = vadd.f32 %v1627, %v1643
        %v1649 = vadd.f32 %v1628, %v1645
        %s1650 = sld [smem:[#allocation7 + $0x28]]
        %v1651 = vstv %s1650
        %v1652 = vmul.f32 %v1651, %v873
        %v1653 = vmul.f32 %v1651, %v874
        %v1654 = vmul.f32 %v1651, %v875
        %v1658 = vrot.slane %v1652, 5
        %v1659 = vrot.slane %v1653, 5
        %v1660 = vsel %vm965, %v1658, %v1659
        %v1661 = vrot.slane %v1654, 5
        %v1662 = vsel %vm965, %v1659, %v1661
        %1663 = vrot.lane.b32.xlu0 %v1660, 123
        %v1664 = vpop.permute.xlu0 %1663
        %1665 = vrot.lane.b32.xlu0 %v1662, 123
        %v1666 = vpop.permute.xlu0 %1665
        %v1669 = vadd.f32 %v1648, %v1664
        %v1670 = vadd.f32 %v1649, %v1666
        %s1671 = sld [smem:[#allocation7 + $0x2f]]
        %v1672 = vstv %s1671
        %v1673 = vmul.f32 %v1672, %v873
        %v1674 = vmul.f32 %v1672, %v874
        %v1675 = vmul.f32 %v1672, %v875
        %v1679 = vrot.slane %v1673, 6
        %v1680 = vrot.slane %v1674, 6
        %v1681 = vsel %vm410, %v1679, %v1680
        %v1682 = vrot.slane %v1675, 6
        %v1683 = vsel %vm410, %v1680, %v1682
        %1684 = vrot.lane.b32.xlu0 %v1681, 123
        %v1685 = vpop.permute.xlu0 %1684
        %1686 = vrot.lane.b32.xlu0 %v1683, 123
        %v1687 = vpop.permute.xlu0 %1686
        %v1690 = vadd.f32 %v1669, %v1685
        %v1691 = vadd.f32 %v1670, %v1687
        %s1692 = sld [smem:[#allocation7 + $0x6]]
        %v1693 = vstv %s1692
        %v1694 = vmul.f32 %v1693, %v873
        %v1695 = vmul.f32 %v1693, %v874
        %1698 = vrot.lane.b32.xlu0 %v1694, 122
        %v1699 = vpop.permute.xlu0 %1698
        %1700 = vrot.lane.b32.xlu0 %v1695, 122
        %v1701 = vpop.permute.xlu0 %1700
        %v1704 = vadd.f32 %v1690, %v1699
        %v1705 = vadd.f32 %v1691, %v1701
        %s1706 = sld [smem:[#allocation7 + $0xd]]
        %v1707 = vstv %s1706
        %v1708 = vmul.f32 %v1707, %v873
        %v1709 = vmul.f32 %v1707, %v874
        %v1710 = vmul.f32 %v1707, %v875
        %v1714 = vrot.slane %v1708, 1
        %v1715 = vrot.slane %v1709, 1
        %v1716 = vsel %vm893, %v1714, %v1715
        %v1717 = vrot.slane %v1710, 1
        %v1718 = vsel %vm893, %v1715, %v1717
        %1719 = vrot.lane.b32.xlu0 %v1716, 122
        %v1720 = vpop.permute.xlu0 %1719
        %1721 = vrot.lane.b32.xlu0 %v1718, 122
        %v1722 = vpop.permute.xlu0 %1721
        %v1725 = vadd.f32 %v1704, %v1720
        %v1726 = vadd.f32 %v1705, %v1722
        %s1727 = sld [smem:[#allocation7 + $0x14]]
        %v1728 = vstv %s1727
        %v1729 = vmul.f32 %v1728, %v873
        %v1730 = vmul.f32 %v1728, %v874
        %v1731 = vmul.f32 %v1728, %v875
        %v1735 = vrot.slane %v1729, 2
        %v1736 = vrot.slane %v1730, 2
        %v1737 = vsel %vm911, %v1735, %v1736
        %v1738 = vrot.slane %v1731, 2
        %v1739 = vsel %vm911, %v1736, %v1738
        %1740 = vrot.lane.b32.xlu0 %v1737, 122
        %v1741 = vpop.permute.xlu0 %1740
        %1742 = vrot.lane.b32.xlu0 %v1739, 122
        %v1743 = vpop.permute.xlu0 %1742
        %v1746 = vadd.f32 %v1725, %v1741
        %v1747 = vadd.f32 %v1726, %v1743
        %s1748 = sld [smem:[#allocation7 + $0x1b]]
        %v1749 = vstv %s1748
        %v1750 = vmul.f32 %v1749, %v873
        %v1751 = vmul.f32 %v1749, %v874
        %v1752 = vmul.f32 %v1749, %v875
        %v1756 = vrot.slane %v1750, 3
        %v1757 = vrot.slane %v1751, 3
        %v1758 = vsel %vm929, %v1756, %v1757
        %v1759 = vrot.slane %v1752, 3
        %v1760 = vsel %vm929, %v1757, %v1759
        %1761 = vrot.lane.b32.xlu0 %v1758, 122
        %v1762 = vpop.permute.xlu0 %1761
        %1763 = vrot.lane.b32.xlu0 %v1760, 122
        %v1764 = vpop.permute.xlu0 %1763
        %v1767 = vadd.f32 %v1746, %v1762
        %v1768 = vadd.f32 %v1747, %v1764
        %s1769 = sld [smem:[#allocation7 + $0x22]]
        %v1770 = vstv %s1769
        %v1771 = vmul.f32 %v1770, %v873
        %v1772 = vmul.f32 %v1770, %v874
        %v1773 = vmul.f32 %v1770, %v875
        %v1777 = vrot.slane %v1771, 4
        %v1778 = vrot.slane %v1772, 4
        %v1779 = vsel %vm947, %v1777, %v1778
        %v1780 = vrot.slane %v1773, 4
        %v1781 = vsel %vm947, %v1778, %v1780
        %1782 = vrot.lane.b32.xlu0 %v1779, 122
        %v1783 = vpop.permute.xlu0 %1782
        %1784 = vrot.lane.b32.xlu0 %v1781, 122
        %v1785 = vpop.permute.xlu0 %1784
        %v1788 = vadd.f32 %v1767, %v1783
        %v1789 = vadd.f32 %v1768, %v1785
        %s1790 = sld [smem:[#allocation7 + $0x29]]
        %v1791 = vstv %s1790
        %v1792 = vmul.f32 %v1791, %v873
        %v1793 = vmul.f32 %v1791, %v874
        %v1794 = vmul.f32 %v1791, %v875
        %v1798 = vrot.slane %v1792, 5
        %v1799 = vrot.slane %v1793, 5
        %v1800 = vsel %vm965, %v1798, %v1799
        %v1801 = vrot.slane %v1794, 5
        %v1802 = vsel %vm965, %v1799, %v1801
        %1803 = vrot.lane.b32.xlu0 %v1800, 122
        %v1804 = vpop.permute.xlu0 %1803
        %1805 = vrot.lane.b32.xlu0 %v1802, 122
        %v1806 = vpop.permute.xlu0 %1805
        %v1809 = vadd.f32 %v1788, %v1804
        %v1810 = vadd.f32 %v1789, %v1806
        %s1811 = sld [smem:[#allocation7 + $0x30]]
        %v1812 = vstv %s1811
        %v1813 = vmul.f32 %v1812, %v873
        %v1814 = vmul.f32 %v1812, %v874
        %v1815 = vmul.f32 %v1812, %v875
        %v1819 = vrot.slane %v1813, 6
        %v1820 = vrot.slane %v1814, 6
        %v1821 = vsel %vm410, %v1819, %v1820
        %v1822 = vrot.slane %v1815, 6
        %v1823 = vsel %vm410, %v1820, %v1822
        %1824 = vrot.lane.b32.xlu0 %v1821, 122
        %v1825 = vpop.permute.xlu0 %1824
        %1826 = vrot.lane.b32.xlu0 %v1823, 122
        %v1827 = vpop.permute.xlu0 %1826
        %v1830 = vadd.f32 %v1809, %v1825
        %v1831 = vadd.f32 %v1810, %v1827
        %s1832 = sld [smem:[#allocation7 + $0x31]]
        %v1833 = vstv %s1832
        %v1834 = vmul.f32 %v1833, %v876
        %v1835 = vmul.f32 %v1833, %v877
        %v1836 = vadd.f32 %v1830, %v1834
        %v1837 = vadd.f32 %v1831, %v1835
        %s1838 = sld [smem:[#allocation7 + $0x38]]
        %v1839 = vstv %s1838
        %v1840 = vmul.f32 %v1839, %v876
        %v1841 = vmul.f32 %v1839, %v877
        %v1842 = vmul.f32 %v1839, %v878
        %v1846 = vrot.slane %v1840, 1
        %v1847 = vrot.slane %v1841, 1
        %v1848 = vsel %vm893, %v1846, %v1847
        %v1849 = vrot.slane %v1842, 1
        %v1850 = vsel %vm893, %v1847, %v1849
        %v1853 = vadd.f32 %v1836, %v1848
        %v1854 = vadd.f32 %v1837, %v1850
        %s1855 = sld [smem:[#allocation7 + $0x3f]]
        %v1856 = vstv %s1855
        %v1857 = vmul.f32 %v1856, %v876
        %v1858 = vmul.f32 %v1856, %v877
        %v1859 = vmul.f32 %v1856, %v878
        %v1863 = vrot.slane %v1857, 2
        %v1864 = vrot.slane %v1858, 2
        %v1865 = vsel %vm911, %v1863, %v1864
        %v1866 = vrot.slane %v1859, 2
        %v1867 = vsel %vm911, %v1864, %v1866
        %v1870 = vadd.f32 %v1853, %v1865
        %v1871 = vadd.f32 %v1854, %v1867
        %s1872 = sld [smem:[#allocation7 + $0x46]]
        %v1873 = vstv %s1872
        %v1874 = vmul.f32 %v1873, %v876
        %v1875 = vmul.f32 %v1873, %v877
        %v1876 = vmul.f32 %v1873, %v878
        %v1880 = vrot.slane %v1874, 3
        %v1881 = vrot.slane %v1875, 3
        %v1882 = vsel %vm929, %v1880, %v1881
        %v1883 = vrot.slane %v1876, 3
        %v1884 = vsel %vm929, %v1881, %v1883
        %v1887 = vadd.f32 %v1870, %v1882
        %v1888 = vadd.f32 %v1871, %v1884
        %s1889 = sld [smem:[#allocation7 + $0x4d]]
        %v1890 = vstv %s1889
        %v1891 = vmul.f32 %v1890, %v876
        %v1892 = vmul.f32 %v1890, %v877
        %v1893 = vmul.f32 %v1890, %v878
        %v1897 = vrot.slane %v1891, 4
        %v1898 = vrot.slane %v1892, 4
        %v1899 = vsel %vm947, %v1897, %v1898
        %v1900 = vrot.slane %v1893, 4
        %v1901 = vsel %vm947, %v1898, %v1900
        %v1904 = vadd.f32 %v1887, %v1899
        %v1905 = vadd.f32 %v1888, %v1901
        %s1906 = sld [smem:[#allocation7 + $0x54]]
        %v1907 = vstv %s1906
        %v1908 = vmul.f32 %v1907, %v876
        %v1909 = vmul.f32 %v1907, %v877
        %v1910 = vmul.f32 %v1907, %v878
        %v1914 = vrot.slane %v1908, 5
        %v1915 = vrot.slane %v1909, 5
        %v1916 = vsel %vm965, %v1914, %v1915
        %v1917 = vrot.slane %v1910, 5
        %v1918 = vsel %vm965, %v1915, %v1917
        %v1921 = vadd.f32 %v1904, %v1916
        %v1922 = vadd.f32 %v1905, %v1918
        %s1923 = sld [smem:[#allocation7 + $0x5b]]
        %v1924 = vstv %s1923
        %v1925 = vmul.f32 %v1924, %v876
        %v1926 = vmul.f32 %v1924, %v877
        %v1927 = vmul.f32 %v1924, %v878
        %v1931 = vrot.slane %v1925, 6
        %v1932 = vrot.slane %v1926, 6
        %v1933 = vsel %vm410, %v1931, %v1932
        %v1934 = vrot.slane %v1927, 6
        %v1935 = vsel %vm410, %v1932, %v1934
        %v1938 = vadd.f32 %v1921, %v1933
        %v1939 = vadd.f32 %v1922, %v1935
        %s1940 = sld [smem:[#allocation7 + $0x32]]
        %v1941 = vstv %s1940
        %v1942 = vmul.f32 %v1941, %v876
        %v1943 = vmul.f32 %v1941, %v877
        %1946 = vrot.lane.b32.xlu0 %v1942, 127
        %v1947 = vpop.permute.xlu0 %1946
        %1948 = vrot.lane.b32.xlu0 %v1943, 127
        %v1949 = vpop.permute.xlu0 %1948
        %v1952 = vadd.f32 %v1938, %v1947
        %v1953 = vadd.f32 %v1939, %v1949
        %s1954 = sld [smem:[#allocation7 + $0x39]]
        %v1955 = vstv %s1954
        %v1956 = vmul.f32 %v1955, %v876
        %v1957 = vmul.f32 %v1955, %v877
        %v1958 = vmul.f32 %v1955, %v878
        %v1962 = vrot.slane %v1956, 1
        %v1963 = vrot.slane %v1957, 1
        %v1964 = vsel %vm893, %v1962, %v1963
        %v1965 = vrot.slane %v1958, 1
        %v1966 = vsel %vm893, %v1963, %v1965
        %1967 = vrot.lane.b32.xlu0 %v1964, 127
        %v1968 = vpop.permute.xlu0 %1967
        %1969 = vrot.lane.b32.xlu0 %v1966, 127
        %v1970 = vpop.permute.xlu0 %1969
        %v1973 = vadd.f32 %v1952, %v1968
        %v1974 = vadd.f32 %v1953, %v1970
        %s1975 = sld [smem:[#allocation7 + $0x40]]
        %v1976 = vstv %s1975
        %v1977 = vmul.f32 %v1976, %v876
        %v1978 = vmul.f32 %v1976, %v877
        %v1979 = vmul.f32 %v1976, %v878
        %v1983 = vrot.slane %v1977, 2
        %v1984 = vrot.slane %v1978, 2
        %v1985 = vsel %vm911, %v1983, %v1984
        %v1986 = vrot.slane %v1979, 2
        %v1987 = vsel %vm911, %v1984, %v1986
        %1988 = vrot.lane.b32.xlu0 %v1985, 127
        %v1989 = vpop.permute.xlu0 %1988
        %1990 = vrot.lane.b32.xlu0 %v1987, 127
        %v1991 = vpop.permute.xlu0 %1990
        %v1994 = vadd.f32 %v1973, %v1989
        %v1995 = vadd.f32 %v1974, %v1991
        %s1996 = sld [smem:[#allocation7 + $0x47]]
        %v1997 = vstv %s1996
        %v1998 = vmul.f32 %v1997, %v876
        %v1999 = vmul.f32 %v1997, %v877
        %v2000 = vmul.f32 %v1997, %v878
        %v2004 = vrot.slane %v1998, 3
        %v2005 = vrot.slane %v1999, 3
        %v2006 = vsel %vm929, %v2004, %v2005
        %v2007 = vrot.slane %v2000, 3
        %v2008 = vsel %vm929, %v2005, %v2007
        %2009 = vrot.lane.b32.xlu0 %v2006, 127
        %v2010 = vpop.permute.xlu0 %2009
        %2011 = vrot.lane.b32.xlu0 %v2008, 127
        %v2012 = vpop.permute.xlu0 %2011
        %v2015 = vadd.f32 %v1994, %v2010
        %v2016 = vadd.f32 %v1995, %v2012
        %s2017 = sld [smem:[#allocation7 + $0x4e]]
        %v2018 = vstv %s2017
        %v2019 = vmul.f32 %v2018, %v876
        %v2020 = vmul.f32 %v2018, %v877
        %v2021 = vmul.f32 %v2018, %v878
        %v2025 = vrot.slane %v2019, 4
        %v2026 = vrot.slane %v2020, 4
        %v2027 = vsel %vm947, %v2025, %v2026
        %v2028 = vrot.slane %v2021, 4
        %v2029 = vsel %vm947, %v2026, %v2028
        %2030 = vrot.lane.b32.xlu0 %v2027, 127
        %v2031 = vpop.permute.xlu0 %2030
        %2032 = vrot.lane.b32.xlu0 %v2029, 127
        %v2033 = vpop.permute.xlu0 %2032
        %v2036 = vadd.f32 %v2015, %v2031
        %v2037 = vadd.f32 %v2016, %v2033
        %s2038 = sld [smem:[#allocation7 + $0x55]]
        %v2039 = vstv %s2038
        %v2040 = vmul.f32 %v2039, %v876
        %v2041 = vmul.f32 %v2039, %v877
        %v2042 = vmul.f32 %v2039, %v878
        %v2046 = vrot.slane %v2040, 5
        %v2047 = vrot.slane %v2041, 5
        %v2048 = vsel %vm965, %v2046, %v2047
        %v2049 = vrot.slane %v2042, 5
        %v2050 = vsel %vm965, %v2047, %v2049
        %2051 = vrot.lane.b32.xlu0 %v2048, 127
        %v2052 = vpop.permute.xlu0 %2051
        %2053 = vrot.lane.b32.xlu0 %v2050, 127
        %v2054 = vpop.permute.xlu0 %2053
        %v2057 = vadd.f32 %v2036, %v2052
        %v2058 = vadd.f32 %v2037, %v2054
        %s2059 = sld [smem:[#allocation7 + $0x5c]]
        %v2060 = vstv %s2059
        %v2061 = vmul.f32 %v2060, %v876
        %v2062 = vmul.f32 %v2060, %v877
        %v2063 = vmul.f32 %v2060, %v878
        %v2067 = vrot.slane %v2061, 6
        %v2068 = vrot.slane %v2062, 6
        %v2069 = vsel %vm410, %v2067, %v2068
        %v2070 = vrot.slane %v2063, 6
        %v2071 = vsel %vm410, %v2068, %v2070
        %2072 = vrot.lane.b32.xlu0 %v2069, 127
        %v2073 = vpop.permute.xlu0 %2072
        %2074 = vrot.lane.b32.xlu0 %v2071, 127
        %v2075 = vpop.permute.xlu0 %2074
        %v2078 = vadd.f32 %v2057, %v2073
        %v2079 = vadd.f32 %v2058, %v2075
        %s2080 = sld [smem:[#allocation7 + $0x33]]
        %v2081 = vstv %s2080
        %v2082 = vmul.f32 %v2081, %v876
        %v2083 = vmul.f32 %v2081, %v877
        %2086 = vrot.lane.b32.xlu0 %v2082, 126
        %v2087 = vpop.permute.xlu0 %2086
        %2088 = vrot.lane.b32.xlu0 %v2083, 126
        %v2089 = vpop.permute.xlu0 %2088
        %v2092 = vadd.f32 %v2078, %v2087
        %v2093 = vadd.f32 %v2079, %v2089
        %s2094 = sld [smem:[#allocation7 + $0x3a]]
        %v2095 = vstv %s2094
        %v2096 = vmul.f32 %v2095, %v876
        %v2097 = vmul.f32 %v2095, %v877
        %v2098 = vmul.f32 %v2095, %v878
        %v2102 = vrot.slane %v2096, 1
        %v2103 = vrot.slane %v2097, 1
        %v2104 = vsel %vm893, %v2102, %v2103
        %v2105 = vrot.slane %v2098, 1
        %v2106 = vsel %vm893, %v2103, %v2105
        %2107 = vrot.lane.b32.xlu0 %v2104, 126
        %v2108 = vpop.permute.xlu0 %2107
        %2109 = vrot.lane.b32.xlu0 %v2106, 126
        %v2110 = vpop.permute.xlu0 %2109
        %v2113 = vadd.f32 %v2092, %v2108
        %v2114 = vadd.f32 %v2093, %v2110
        %s2115 = sld [smem:[#allocation7 + $0x41]]
        %v2116 = vstv %s2115
        %v2117 = vmul.f32 %v2116, %v876
        %v2118 = vmul.f32 %v2116, %v877
        %v2119 = vmul.f32 %v2116, %v878
        %v2123 = vrot.slane %v2117, 2
        %v2124 = vrot.slane %v2118, 2
        %v2125 = vsel %vm911, %v2123, %v2124
        %v2126 = vrot.slane %v2119, 2
        %v2127 = vsel %vm911, %v2124, %v2126
        %2128 = vrot.lane.b32.xlu0 %v2125, 126
        %v2129 = vpop.permute.xlu0 %2128
        %2130 = vrot.lane.b32.xlu0 %v2127, 126
        %v2131 = vpop.permute.xlu0 %2130
        %v2134 = vadd.f32 %v2113, %v2129
        %v2135 = vadd.f32 %v2114, %v2131
        %s2136 = sld [smem:[#allocation7 + $0x48]]
        %v2137 = vstv %s2136
        %v2138 = vmul.f32 %v2137, %v876
        %v2139 = vmul.f32 %v2137, %v877
        %v2140 = vmul.f32 %v2137, %v878
        %v2144 = vrot.slane %v2138, 3
        %v2145 = vrot.slane %v2139, 3
        %v2146 = vsel %vm929, %v2144, %v2145
        %v2147 = vrot.slane %v2140, 3
        %v2148 = vsel %vm929, %v2145, %v2147
        %2149 = vrot.lane.b32.xlu0 %v2146, 126
        %v2150 = vpop.permute.xlu0 %2149
        %2151 = vrot.lane.b32.xlu0 %v2148, 126
        %v2152 = vpop.permute.xlu0 %2151
        %v2155 = vadd.f32 %v2134, %v2150
        %v2156 = vadd.f32 %v2135, %v2152
        %s2157 = sld [smem:[#allocation7 + $0x4f]]
        %v2158 = vstv %s2157
        %v2159 = vmul.f32 %v2158, %v876
        %v2160 = vmul.f32 %v2158, %v877
        %v2161 = vmul.f32 %v2158, %v878
        %v2165 = vrot.slane %v2159, 4
        %v2166 = vrot.slane %v2160, 4
        %v2167 = vsel %vm947, %v2165, %v2166
        %v2168 = vrot.slane %v2161, 4
        %v2169 = vsel %vm947, %v2166, %v2168
        %2170 = vrot.lane.b32.xlu0 %v2167, 126
        %v2171 = vpop.permute.xlu0 %2170
        %2172 = vrot.lane.b32.xlu0 %v2169, 126
        %v2173 = vpop.permute.xlu0 %2172
        %v2176 = vadd.f32 %v2155, %v2171
        %v2177 = vadd.f32 %v2156, %v2173
        %s2178 = sld [smem:[#allocation7 + $0x56]]
        %v2179 = vstv %s2178
        %v2180 = vmul.f32 %v2179, %v876
        %v2181 = vmul.f32 %v2179, %v877
        %v2182 = vmul.f32 %v2179, %v878
        %v2186 = vrot.slane %v2180, 5
        %v2187 = vrot.slane %v2181, 5
        %v2188 = vsel %vm965, %v2186, %v2187
        %v2189 = vrot.slane %v2182, 5
        %v2190 = vsel %vm965, %v2187, %v2189
        %2191 = vrot.lane.b32.xlu0 %v2188, 126
        %v2192 = vpop.permute.xlu0 %2191
        %2193 = vrot.lane.b32.xlu0 %v2190, 126
        %v2194 = vpop.permute.xlu0 %2193
        %v2197 = vadd.f32 %v2176, %v2192
        %v2198 = vadd.f32 %v2177, %v2194
        %s2199 = sld [smem:[#allocation7 + $0x5d]]
        %v2200 = vstv %s2199
        %v2201 = vmul.f32 %v2200, %v876
        %v2202 = vmul.f32 %v2200, %v877
        %v2203 = vmul.f32 %v2200, %v878
        %v2207 = vrot.slane %v2201, 6
        %v2208 = vrot.slane %v2202, 6
        %v2209 = vsel %vm410, %v2207, %v2208
        %v2210 = vrot.slane %v2203, 6
        %v2211 = vsel %vm410, %v2208, %v2210
        %2212 = vrot.lane.b32.xlu0 %v2209, 126
        %v2213 = vpop.permute.xlu0 %2212
        %2214 = vrot.lane.b32.xlu0 %v2211, 126
        %v2215 = vpop.permute.xlu0 %2214
        %v2218 = vadd.f32 %v2197, %v2213
        %v2219 = vadd.f32 %v2198, %v2215
        %s2220 = sld [smem:[#allocation7 + $0x34]]
        %v2221 = vstv %s2220
        %v2222 = vmul.f32 %v2221, %v876
        %v2223 = vmul.f32 %v2221, %v877
        %2226 = vrot.lane.b32.xlu0 %v2222, 125
        %v2227 = vpop.permute.xlu0 %2226
        %2228 = vrot.lane.b32.xlu0 %v2223, 125
        %v2229 = vpop.permute.xlu0 %2228
        %v2232 = vadd.f32 %v2218, %v2227
        %v2233 = vadd.f32 %v2219, %v2229
        %s2234 = sld [smem:[#allocation7 + $0x3b]]
        %v2235 = vstv %s2234
        %v2236 = vmul.f32 %v2235, %v876
        %v2237 = vmul.f32 %v2235, %v877
        %v2238 = vmul.f32 %v2235, %v878
        %v2242 = vrot.slane %v2236, 1
        %v2243 = vrot.slane %v2237, 1
        %v2244 = vsel %vm893, %v2242, %v2243
        %v2245 = vrot.slane %v2238, 1
        %v2246 = vsel %vm893, %v2243, %v2245
        %2247 = vrot.lane.b32.xlu0 %v2244, 125
        %v2248 = vpop.permute.xlu0 %2247
        %2249 = vrot.lane.b32.xlu0 %v2246, 125
        %v2250 = vpop.permute.xlu0 %2249
        %v2253 = vadd.f32 %v2232, %v2248
        %v2254 = vadd.f32 %v2233, %v2250
        %s2255 = sld [smem:[#allocation7 + $0x42]]
        %v2256 = vstv %s2255
        %v2257 = vmul.f32 %v2256, %v876
        %v2258 = vmul.f32 %v2256, %v877
        %v2259 = vmul.f32 %v2256, %v878
        %v2263 = vrot.slane %v2257, 2
        %v2264 = vrot.slane %v2258, 2
        %v2265 = vsel %vm911, %v2263, %v2264
        %v2266 = vrot.slane %v2259, 2
        %v2267 = vsel %vm911, %v2264, %v2266
        %2268 = vrot.lane.b32.xlu0 %v2265, 125
        %v2269 = vpop.permute.xlu0 %2268
        %2270 = vrot.lane.b32.xlu0 %v2267, 125
        %v2271 = vpop.permute.xlu0 %2270
        %v2274 = vadd.f32 %v2253, %v2269
        %v2275 = vadd.f32 %v2254, %v2271
        %s2276 = sld [smem:[#allocation7 + $0x49]]
        %v2277 = vstv %s2276
        %v2278 = vmul.f32 %v2277, %v876
        %v2279 = vmul.f32 %v2277, %v877
        %v2280 = vmul.f32 %v2277, %v878
        %v2284 = vrot.slane %v2278, 3
        %v2285 = vrot.slane %v2279, 3
        %v2286 = vsel %vm929, %v2284, %v2285
        %v2287 = vrot.slane %v2280, 3
        %v2288 = vsel %vm929, %v2285, %v2287
        %2289 = vrot.lane.b32.xlu0 %v2286, 125
        %v2290 = vpop.permute.xlu0 %2289
        %2291 = vrot.lane.b32.xlu0 %v2288, 125
        %v2292 = vpop.permute.xlu0 %2291
        %v2295 = vadd.f32 %v2274, %v2290
        %v2296 = vadd.f32 %v2275, %v2292
        %s2297 = sld [smem:[#allocation7 + $0x50]]
        %v2298 = vstv %s2297
        %v2299 = vmul.f32 %v2298, %v876
        %v2300 = vmul.f32 %v2298, %v877
        %v2301 = vmul.f32 %v2298, %v878
        %v2305 = vrot.slane %v2299, 4
        %v2306 = vrot.slane %v2300, 4
        %v2307 = vsel %vm947, %v2305, %v2306
        %v2308 = vrot.slane %v2301, 4
        %v2309 = vsel %vm947, %v2306, %v2308
        %2310 = vrot.lane.b32.xlu0 %v2307, 125
        %v2311 = vpop.permute.xlu0 %2310
        %2312 = vrot.lane.b32.xlu0 %v2309, 125
        %v2313 = vpop.permute.xlu0 %2312
        %v2316 = vadd.f32 %v2295, %v2311
        %v2317 = vadd.f32 %v2296, %v2313
        %s2318 = sld [smem:[#allocation7 + $0x57]]
        %v2319 = vstv %s2318
        %v2320 = vmul.f32 %v2319, %v876
        %v2321 = vmul.f32 %v2319, %v877
        %v2322 = vmul.f32 %v2319, %v878
        %v2326 = vrot.slane %v2320, 5
        %v2327 = vrot.slane %v2321, 5
        %v2328 = vsel %vm965, %v2326, %v2327
        %v2329 = vrot.slane %v2322, 5
        %v2330 = vsel %vm965, %v2327, %v2329
        %2331 = vrot.lane.b32.xlu0 %v2328, 125
        %v2332 = vpop.permute.xlu0 %2331
        %2333 = vrot.lane.b32.xlu0 %v2330, 125
        %v2334 = vpop.permute.xlu0 %2333
        %v2337 = vadd.f32 %v2316, %v2332
        %v2338 = vadd.f32 %v2317, %v2334
        %s2339 = sld [smem:[#allocation7 + $0x5e]]
        %v2340 = vstv %s2339
        %v2341 = vmul.f32 %v2340, %v876
        %v2342 = vmul.f32 %v2340, %v877
        %v2343 = vmul.f32 %v2340, %v878
        %v2347 = vrot.slane %v2341, 6
        %v2348 = vrot.slane %v2342, 6
        %v2349 = vsel %vm410, %v2347, %v2348
        %v2350 = vrot.slane %v2343, 6
        %v2351 = vsel %vm410, %v2348, %v2350
        %2352 = vrot.lane.b32.xlu0 %v2349, 125
        %v2353 = vpop.permute.xlu0 %2352
        %2354 = vrot.lane.b32.xlu0 %v2351, 125
        %v2355 = vpop.permute.xlu0 %2354
        %v2358 = vadd.f32 %v2337, %v2353
        %v2359 = vadd.f32 %v2338, %v2355
        %s2360 = sld [smem:[#allocation7 + $0x35]]
        %v2361 = vstv %s2360
        %v2362 = vmul.f32 %v2361, %v876
        %v2363 = vmul.f32 %v2361, %v877
        %2366 = vrot.lane.b32.xlu0 %v2362, 124
        %v2367 = vpop.permute.xlu0 %2366
        %2368 = vrot.lane.b32.xlu0 %v2363, 124
        %v2369 = vpop.permute.xlu0 %2368
        %v2372 = vadd.f32 %v2358, %v2367
        %v2373 = vadd.f32 %v2359, %v2369
        %s2374 = sld [smem:[#allocation7 + $0x3c]]
        %v2375 = vstv %s2374
        %v2376 = vmul.f32 %v2375, %v876
        %v2377 = vmul.f32 %v2375, %v877
        %v2378 = vmul.f32 %v2375, %v878
        %v2382 = vrot.slane %v2376, 1
        %v2383 = vrot.slane %v2377, 1
        %v2384 = vsel %vm893, %v2382, %v2383
        %v2385 = vrot.slane %v2378, 1
        %v2386 = vsel %vm893, %v2383, %v2385
        %2387 = vrot.lane.b32.xlu0 %v2384, 124
        %v2388 = vpop.permute.xlu0 %2387
        %2389 = vrot.lane.b32.xlu0 %v2386, 124
        %v2390 = vpop.permute.xlu0 %2389
        %v2393 = vadd.f32 %v2372, %v2388
        %v2394 = vadd.f32 %v2373, %v2390
        %s2395 = sld [smem:[#allocation7 + $0x43]]
        %v2396 = vstv %s2395
        %v2397 = vmul.f32 %v2396, %v876
        %v2398 = vmul.f32 %v2396, %v877
        %v2399 = vmul.f32 %v2396, %v878
        %v2403 = vrot.slane %v2397, 2
        %v2404 = vrot.slane %v2398, 2
        %v2405 = vsel %vm911, %v2403, %v2404
        %v2406 = vrot.slane %v2399, 2
        %v2407 = vsel %vm911, %v2404, %v2406
        %2408 = vrot.lane.b32.xlu0 %v2405, 124
        %v2409 = vpop.permute.xlu0 %2408
        %2410 = vrot.lane.b32.xlu0 %v2407, 124
        %v2411 = vpop.permute.xlu0 %2410
        %v2414 = vadd.f32 %v2393, %v2409
        %v2415 = vadd.f32 %v2394, %v2411
        %s2416 = sld [smem:[#allocation7 + $0x4a]]
        %v2417 = vstv %s2416
        %v2418 = vmul.f32 %v2417, %v876
        %v2419 = vmul.f32 %v2417, %v877
        %v2420 = vmul.f32 %v2417, %v878
        %v2424 = vrot.slane %v2418, 3
        %v2425 = vrot.slane %v2419, 3
        %v2426 = vsel %vm929, %v2424, %v2425
        %v2427 = vrot.slane %v2420, 3
        %v2428 = vsel %vm929, %v2425, %v2427
        %2429 = vrot.lane.b32.xlu0 %v2426, 124
        %v2430 = vpop.permute.xlu0 %2429
        %2431 = vrot.lane.b32.xlu0 %v2428, 124
        %v2432 = vpop.permute.xlu0 %2431
        %v2435 = vadd.f32 %v2414, %v2430
        %v2436 = vadd.f32 %v2415, %v2432
        %s2437 = sld [smem:[#allocation7 + $0x51]]
        %v2438 = vstv %s2437
        %v2439 = vmul.f32 %v2438, %v876
        %v2440 = vmul.f32 %v2438, %v877
        %v2441 = vmul.f32 %v2438, %v878
        %v2445 = vrot.slane %v2439, 4
        %v2446 = vrot.slane %v2440, 4
        %v2447 = vsel %vm947, %v2445, %v2446
        %v2448 = vrot.slane %v2441, 4
        %v2449 = vsel %vm947, %v2446, %v2448
        %2450 = vrot.lane.b32.xlu0 %v2447, 124
        %v2451 = vpop.permute.xlu0 %2450
        %2452 = vrot.lane.b32.xlu0 %v2449, 124
        %v2453 = vpop.permute.xlu0 %2452
        %v2456 = vadd.f32 %v2435, %v2451
        %v2457 = vadd.f32 %v2436, %v2453
        %s2458 = sld [smem:[#allocation7 + $0x58]]
        %v2459 = vstv %s2458
        %v2460 = vmul.f32 %v2459, %v876
        %v2461 = vmul.f32 %v2459, %v877
        %v2462 = vmul.f32 %v2459, %v878
        %v2466 = vrot.slane %v2460, 5
        %v2467 = vrot.slane %v2461, 5
        %v2468 = vsel %vm965, %v2466, %v2467
        %v2469 = vrot.slane %v2462, 5
        %v2470 = vsel %vm965, %v2467, %v2469
        %2471 = vrot.lane.b32.xlu0 %v2468, 124
        %v2472 = vpop.permute.xlu0 %2471
        %2473 = vrot.lane.b32.xlu0 %v2470, 124
        %v2474 = vpop.permute.xlu0 %2473
        %v2477 = vadd.f32 %v2456, %v2472
        %v2478 = vadd.f32 %v2457, %v2474
        %s2479 = sld [smem:[#allocation7 + $0x5f]]
        %v2480 = vstv %s2479
        %v2481 = vmul.f32 %v2480, %v876
        %v2482 = vmul.f32 %v2480, %v877
        %v2483 = vmul.f32 %v2480, %v878
        %v2487 = vrot.slane %v2481, 6
        %v2488 = vrot.slane %v2482, 6
        %v2489 = vsel %vm410, %v2487, %v2488
        %v2490 = vrot.slane %v2483, 6
        %v2491 = vsel %vm410, %v2488, %v2490
        %2492 = vrot.lane.b32.xlu0 %v2489, 124
        %v2493 = vpop.permute.xlu0 %2492
        %2494 = vrot.lane.b32.xlu0 %v2491, 124
        %v2495 = vpop.permute.xlu0 %2494
        %v2498 = vadd.f32 %v2477, %v2493
        %v2499 = vadd.f32 %v2478, %v2495
        %s2500 = sld [smem:[#allocation7 + $0x36]]
        %v2501 = vstv %s2500
        %v2502 = vmul.f32 %v2501, %v876
        %v2503 = vmul.f32 %v2501, %v877
        %2506 = vrot.lane.b32.xlu0 %v2502, 123
        %v2507 = vpop.permute.xlu0 %2506
        %2508 = vrot.lane.b32.xlu0 %v2503, 123
        %v2509 = vpop.permute.xlu0 %2508
        %v2512 = vadd.f32 %v2498, %v2507
        %v2513 = vadd.f32 %v2499, %v2509
        %s2514 = sld [smem:[#allocation7 + $0x3d]]
        %v2515 = vstv %s2514
        %v2516 = vmul.f32 %v2515, %v876
        %v2517 = vmul.f32 %v2515, %v877
        %v2518 = vmul.f32 %v2515, %v878
        %v2522 = vrot.slane %v2516, 1
        %v2523 = vrot.slane %v2517, 1
        %v2524 = vsel %vm893, %v2522, %v2523
        %v2525 = vrot.slane %v2518, 1
        %v2526 = vsel %vm893, %v2523, %v2525
        %2527 = vrot.lane.b32.xlu0 %v2524, 123
        %v2528 = vpop.permute.xlu0 %2527
        %2529 = vrot.lane.b32.xlu0 %v2526, 123
        %v2530 = vpop.permute.xlu0 %2529
        %v2533 = vadd.f32 %v2512, %v2528
        %v2534 = vadd.f32 %v2513, %v2530
        %s2535 = sld [smem:[#allocation7 + $0x44]]
        %v2536 = vstv %s2535
        %v2537 = vmul.f32 %v2536, %v876
        %v2538 = vmul.f32 %v2536, %v877
        %v2539 = vmul.f32 %v2536, %v878
        %v2543 = vrot.slane %v2537, 2
        %v2544 = vrot.slane %v2538, 2
        %v2545 = vsel %vm911, %v2543, %v2544
        %v2546 = vrot.slane %v2539, 2
        %v2547 = vsel %vm911, %v2544, %v2546
        %2548 = vrot.lane.b32.xlu0 %v2545, 123
        %v2549 = vpop.permute.xlu0 %2548
        %2550 = vrot.lane.b32.xlu0 %v2547, 123
        %v2551 = vpop.permute.xlu0 %2550
        %v2554 = vadd.f32 %v2533, %v2549
        %v2555 = vadd.f32 %v2534, %v2551
        %s2556 = sld [smem:[#allocation7 + $0x4b]]
        %v2557 = vstv %s2556
        %v2558 = vmul.f32 %v2557, %v876
        %v2559 = vmul.f32 %v2557, %v877
        %v2560 = vmul.f32 %v2557, %v878
        %v2564 = vrot.slane %v2558, 3
        %v2565 = vrot.slane %v2559, 3
        %v2566 = vsel %vm929, %v2564, %v2565
        %v2567 = vrot.slane %v2560, 3
        %v2568 = vsel %vm929, %v2565, %v2567
        %2569 = vrot.lane.b32.xlu0 %v2566, 123
        %v2570 = vpop.permute.xlu0 %2569
        %2571 = vrot.lane.b32.xlu0 %v2568, 123
        %v2572 = vpop.permute.xlu0 %2571
        %v2575 = vadd.f32 %v2554, %v2570
        %v2576 = vadd.f32 %v2555, %v2572
        %s2577 = sld [smem:[#allocation7 + $0x52]]
        %v2578 = vstv %s2577
        %v2579 = vmul.f32 %v2578, %v876
        %v2580 = vmul.f32 %v2578, %v877
        %v2581 = vmul.f32 %v2578, %v878
        %v2585 = vrot.slane %v2579, 4
        %v2586 = vrot.slane %v2580, 4
        %v2587 = vsel %vm947, %v2585, %v2586
        %v2588 = vrot.slane %v2581, 4
        %v2589 = vsel %vm947, %v2586, %v2588
        %2590 = vrot.lane.b32.xlu0 %v2587, 123
        %v2591 = vpop.permute.xlu0 %2590
        %2592 = vrot.lane.b32.xlu0 %v2589, 123
        %v2593 = vpop.permute.xlu0 %2592
        %v2596 = vadd.f32 %v2575, %v2591
        %v2597 = vadd.f32 %v2576, %v2593
        %s2598 = sld [smem:[#allocation7 + $0x59]]
        %v2599 = vstv %s2598
        %v2600 = vmul.f32 %v2599, %v876
        %v2601 = vmul.f32 %v2599, %v877
        %v2602 = vmul.f32 %v2599, %v878
        %v2606 = vrot.slane %v2600, 5
        %v2607 = vrot.slane %v2601, 5
        %v2608 = vsel %vm965, %v2606, %v2607
        %v2609 = vrot.slane %v2602, 5
        %v2610 = vsel %vm965, %v2607, %v2609
        %2611 = vrot.lane.b32.xlu0 %v2608, 123
        %v2612 = vpop.permute.xlu0 %2611
        %2613 = vrot.lane.b32.xlu0 %v2610, 123
        %v2614 = vpop.permute.xlu0 %2613
        %v2617 = vadd.f32 %v2596, %v2612
        %v2618 = vadd.f32 %v2597, %v2614
        %s2619 = sld [smem:[#allocation7 + $0x60]]
        %v2620 = vstv %s2619
        %v2621 = vmul.f32 %v2620, %v876
        %v2622 = vmul.f32 %v2620, %v877
        %v2623 = vmul.f32 %v2620, %v878
        %v2627 = vrot.slane %v2621, 6
        %v2628 = vrot.slane %v2622, 6
        %v2629 = vsel %vm410, %v2627, %v2628
        %v2630 = vrot.slane %v2623, 6
        %v2631 = vsel %vm410, %v2628, %v2630
        %2632 = vrot.lane.b32.xlu0 %v2629, 123
        %v2633 = vpop.permute.xlu0 %2632
        %2634 = vrot.lane.b32.xlu0 %v2631, 123
        %v2635 = vpop.permute.xlu0 %2634
        %v2638 = vadd.f32 %v2617, %v2633
        %v2639 = vadd.f32 %v2618, %v2635
        %s2640 = sld [smem:[#allocation7 + $0x37]]
        %v2641 = vstv %s2640
        %v2642 = vmul.f32 %v2641, %v876
        %v2643 = vmul.f32 %v2641, %v877
        %2646 = vrot.lane.b32.xlu0 %v2642, 122
        %v2647 = vpop.permute.xlu0 %2646
        %2648 = vrot.lane.b32.xlu0 %v2643, 122
        %v2649 = vpop.permute.xlu0 %2648
        %v2652 = vadd.f32 %v2638, %v2647
        %v2653 = vadd.f32 %v2639, %v2649
        %s2654 = sld [smem:[#allocation7 + $0x3e]]
        %v2655 = vstv %s2654
        %v2656 = vmul.f32 %v2655, %v876
        %v2657 = vmul.f32 %v2655, %v877
        %v2658 = vmul.f32 %v2655, %v878
        %v2662 = vrot.slane %v2656, 1
        %v2663 = vrot.slane %v2657, 1
        %v2664 = vsel %vm893, %v2662, %v2663
        %v2665 = vrot.slane %v2658, 1
        %v2666 = vsel %vm893, %v2663, %v2665
        %2667 = vrot.lane.b32.xlu0 %v2664, 122
        %v2668 = vpop.permute.xlu0 %2667
        %2669 = vrot.lane.b32.xlu0 %v2666, 122
        %v2670 = vpop.permute.xlu0 %2669
        %v2673 = vadd.f32 %v2652, %v2668
        %v2674 = vadd.f32 %v2653, %v2670
        %s2675 = sld [smem:[#allocation7 + $0x45]]
        %v2676 = vstv %s2675
        %v2677 = vmul.f32 %v2676, %v876
        %v2678 = vmul.f32 %v2676, %v877
        %v2679 = vmul.f32 %v2676, %v878
        %v2683 = vrot.slane %v2677, 2
        %v2684 = vrot.slane %v2678, 2
        %v2685 = vsel %vm911, %v2683, %v2684
        %v2686 = vrot.slane %v2679, 2
        %v2687 = vsel %vm911, %v2684, %v2686
        %2688 = vrot.lane.b32.xlu0 %v2685, 122
        %v2689 = vpop.permute.xlu0 %2688
        %2690 = vrot.lane.b32.xlu0 %v2687, 122
        %v2691 = vpop.permute.xlu0 %2690
        %v2694 = vadd.f32 %v2673, %v2689
        %v2695 = vadd.f32 %v2674, %v2691
        %s2696 = sld [smem:[#allocation7 + $0x4c]]
        %v2697 = vstv %s2696
        %v2698 = vmul.f32 %v2697, %v876
        %v2699 = vmul.f32 %v2697, %v877
        %v2700 = vmul.f32 %v2697, %v878
        %v2704 = vrot.slane %v2698, 3
        %v2705 = vrot.slane %v2699, 3
        %v2706 = vsel %vm929, %v2704, %v2705
        %v2707 = vrot.slane %v2700, 3
        %v2708 = vsel %vm929, %v2705, %v2707
        %2709 = vrot.lane.b32.xlu0 %v2706, 122
        %v2710 = vpop.permute.xlu0 %2709
        %2711 = vrot.lane.b32.xlu0 %v2708, 122
        %v2712 = vpop.permute.xlu0 %2711
        %v2715 = vadd.f32 %v2694, %v2710
        %v2716 = vadd.f32 %v2695, %v2712
        %s2717 = sld [smem:[#allocation7 + $0x53]]
        %v2718 = vstv %s2717
        %v2719 = vmul.f32 %v2718, %v876
        %v2720 = vmul.f32 %v2718, %v877
        %v2721 = vmul.f32 %v2718, %v878
        %v2725 = vrot.slane %v2719, 4
        %v2726 = vrot.slane %v2720, 4
        %v2727 = vsel %vm947, %v2725, %v2726
        %v2728 = vrot.slane %v2721, 4
        %v2729 = vsel %vm947, %v2726, %v2728
        %2730 = vrot.lane.b32.xlu0 %v2727, 122
        %v2731 = vpop.permute.xlu0 %2730
        %2732 = vrot.lane.b32.xlu0 %v2729, 122
        %v2733 = vpop.permute.xlu0 %2732
        %v2736 = vadd.f32 %v2715, %v2731
        %v2737 = vadd.f32 %v2716, %v2733
        %s2738 = sld [smem:[#allocation7 + $0x5a]]
        %v2739 = vstv %s2738
        %v2740 = vmul.f32 %v2739, %v876
        %v2741 = vmul.f32 %v2739, %v877
        %v2742 = vmul.f32 %v2739, %v878
        %v2746 = vrot.slane %v2740, 5
        %v2747 = vrot.slane %v2741, 5
        %v2748 = vsel %vm965, %v2746, %v2747
        %v2749 = vrot.slane %v2742, 5
        %v2750 = vsel %vm965, %v2747, %v2749
        %2751 = vrot.lane.b32.xlu0 %v2748, 122
        %v2752 = vpop.permute.xlu0 %2751
        %2753 = vrot.lane.b32.xlu0 %v2750, 122
        %v2754 = vpop.permute.xlu0 %2753
        %v2757 = vadd.f32 %v2736, %v2752
        %v2758 = vadd.f32 %v2737, %v2754
        %s2759 = sld [smem:[#allocation7 + $0x61]]
        %v2760 = vstv %s2759
        %v2761 = vmul.f32 %v2760, %v876
        %v2762 = vmul.f32 %v2760, %v877
        %v2763 = vmul.f32 %v2760, %v878
        %v2767 = vrot.slane %v2761, 6
        %v2768 = vrot.slane %v2762, 6
        %v2769 = vsel %vm410, %v2767, %v2768
        %v2770 = vrot.slane %v2763, 6
        %v2771 = vsel %vm410, %v2768, %v2770
        %2772 = vrot.lane.b32.xlu0 %v2769, 122
        %v2773 = vpop.permute.xlu0 %2772
        %2774 = vrot.lane.b32.xlu0 %v2771, 122
        %v2775 = vpop.permute.xlu0 %2774
        %v2778 = vadd.f32 %v2757, %v2773
        %v2779 = vadd.f32 %v2758, %v2775
        %v2780 = vxor.u32 %v2778, 2147483648
        %v2781 = vxor.u32 %v2779, 2147483648
        %v2782 = vmul.f32 %v2780, 1.442695
        %v2783 = vpow.pop %v2782
        %v2784 = vmul.f32 %v2781, 1.442695
        %v2785 = vpow.pop %v2784
        %v2786 = vadd.f32 %v2783, 1.0
        %v2787 = vadd.f32 %v2785, 1.0
        %v2788 = vrcp.pop %v2786
        %v2789 = vmul.f32 1.0, %v2788
        %v2790 = vrcp.pop %v2787
        %v2791 = vmul.f32 1.0, %v2790
        %v2792 = vcombine.high %v2789, 0.0
        %v2794 = vunpack.c.l.s4 1983009808
        %v2795 = vunpack.c.0.s8 %v2794
        %v2796 = vlaneseq
        %v2797 = vshrl.u32 %v2796, 7
        %v2798 = vsub.s32 %v2795, %v2797
        %v2799 = vrot.slane %v2789, %v2798
        %v2801 = vunpack.c.l.s4 1983009808
        %v2802 = vunpack.c.0.s8 %v2801
        %v2803 = vlaneseq
        %v2804 = vshrl.u32 %v2803, 7
        %v2805 = vsub.s32 %v2802, %v2804
        %v2806 = vrot.slane %v2792, %v2805
        %v2807 = vcombine.high %v2799, 0.0
        %v2809 = vunpack.c.l.s4 1934713408
        %v2810 = vunpack.c.0.s8 %v2809
        %v2811 = vlaneseq
        %v2812 = vshrl.u32 %v2811, 7
        %v2813 = vsub.s32 %v2810, %v2812
        %v2814 = vrot.slane %v2799, %v2813
        %v2816 = vunpack.c.l.s4 1934713408
        %v2817 = vunpack.c.0.s8 %v2816
        %v2818 = vlaneseq
        %v2819 = vshrl.u32 %v2818, 7
        %v2820 = vsub.s32 %v2817, %v2819
        %v2821 = vrot.slane %v2807, %v2820
        %v2822 = vcombine.high %v2806, 0.0
        %v2824 = vunpack.c.l.s4 1934713408
        %v2825 = vunpack.c.0.s8 %v2824
        %v2826 = vlaneseq
        %v2827 = vshrl.u32 %v2826, 7
        %v2828 = vsub.s32 %v2825, %v2827
        %v2829 = vrot.slane %v2806, %v2828
        %v2831 = vunpack.c.l.s4 1934713408
        %v2832 = vunpack.c.0.s8 %v2831
        %v2833 = vlaneseq
        %v2834 = vshrl.u32 %v2833, 7
        %v2835 = vsub.s32 %v2832, %v2834
        %v2836 = vrot.slane %v2822, %v2835
        %v2837 = vcombine.high %v2814, 0.0
        %v2838 = vcombine.high %v2821, 0.0
        %v2839 = vcombine.high %v2829, 0.0
        %v2840 = vcombine.high %v2836, 0.0
        %v2841 = vcombine.high %v2791, 0.0
        %v2843 = vunpack.c.l.s4 1983009808
        %v2844 = vunpack.c.0.s8 %v2843
        %v2845 = vlaneseq
        %v2846 = vshrl.u32 %v2845, 7
        %v2847 = vsub.s32 %v2844, %v2846
        %v2848 = vrot.slane %v2791, %v2847
        %v2850 = vunpack.c.l.s4 1983009808
        %v2851 = vunpack.c.0.s8 %v2850
        %v2852 = vlaneseq
        %v2853 = vshrl.u32 %v2852, 7
        %v2854 = vsub.s32 %v2851, %v2853
        %v2855 = vrot.slane %v2841, %v2854
        %v2856 = vcombine.high %v2848, 0.0
        %v2858 = vunpack.c.l.s4 1934713408
        %v2859 = vunpack.c.0.s8 %v2858
        %v2860 = vlaneseq
        %v2861 = vshrl.u32 %v2860, 7
        %v2862 = vsub.s32 %v2859, %v2861
        %v2863 = vrot.slane %v2848, %v2862
        %v2865 = vunpack.c.l.s4 1934713408
        %v2866 = vunpack.c.0.s8 %v2865
        %v2867 = vlaneseq
        %v2868 = vshrl.u32 %v2867, 7
        %v2869 = vsub.s32 %v2866, %v2868
        %v2870 = vrot.slane %v2856, %v2869
        %v2871 = vcombine.high %v2855, 0.0
        %v2873 = vunpack.c.l.s4 1934713408
        %v2874 = vunpack.c.0.s8 %v2873
        %v2875 = vlaneseq
        %v2876 = vshrl.u32 %v2875, 7
        %v2877 = vsub.s32 %v2874, %v2876
        %v2878 = vrot.slane %v2855, %v2877
        %v2880 = vunpack.c.l.s4 1934713408
        %v2881 = vunpack.c.0.s8 %v2880
        %v2882 = vlaneseq
        %v2883 = vshrl.u32 %v2882, 7
        %v2884 = vsub.s32 %v2881, %v2883
        %v2885 = vrot.slane %v2871, %v2884
        %v2886 = vcombine.high %v2863, 0.0
        %v2887 = vcombine.high %v2870, 0.0
        %v2888 = vcombine.high %v2878, 0.0
        %v2889 = vcombine.high %v2885, 0.0
        %2891 = vrot.lane.b32.xlu0 %v2837, 16
        %v2892 = vpop.permute.xlu0 %2891
        %2895 = vrot.lane.b32.xlu0 %v2821, 32
        %v2896 = vpop.permute.xlu0 %2895
        %2899 = vrot.lane.b32.xlu0 %v2838, 48
        %v2900 = vpop.permute.xlu0 %2899
        %2903 = vrot.lane.b32.xlu0 %v2829, 64
        %v2904 = vpop.permute.xlu0 %2903
        %2907 = vrot.lane.b32.xlu0 %v2839, 80
        %v2908 = vpop.permute.xlu0 %2907
        %2911 = vrot.lane.b32.xlu0 %v2836, 96
        %v2912 = vpop.permute.xlu0 %2911
        %2915 = vrot.lane.b32.xlu0 %v2840, 112
        %v2916 = vpop.permute.xlu0 %2915
        %2919 = vrot.lane.b32.xlu0 %v2886, 16
        %v2920 = vpop.permute.xlu0 %2919
        %2923 = vrot.lane.b32.xlu0 %v2870, 32
        %v2924 = vpop.permute.xlu0 %2923
        %2927 = vrot.lane.b32.xlu0 %v2887, 48
        %v2928 = vpop.permute.xlu0 %2927
        %2931 = vrot.lane.b32.xlu0 %v2878, 64
        %v2932 = vpop.permute.xlu0 %2931
        %2935 = vrot.lane.b32.xlu0 %v2888, 80
        %v2936 = vpop.permute.xlu0 %2935
        %2939 = vrot.lane.b32.xlu0 %v2885, 96
        %v2940 = vpop.permute.xlu0 %2939
        %2943 = vrot.lane.b32.xlu0 %v2889, 112
        %v2944 = vpop.permute.xlu0 %2943
        %vm2946 = vcmask 130048
        %v2947 = vsel %vm2946, %v2814, %v2892
        %v2948 = vsel %vm328, %v2947, %v2896
        %vm2949 = vcmask 392192
        %v2950 = vsel %vm2949, %v2948, %v2900
        %vm2951 = vcmask 523264
        %v2952 = vsel %vm2951, %v2950, %v2904
        %vm2953 = vcmask 654336
        %v2954 = vsel %vm2953, %v2952, %v2908
        %vm2955 = vcmask 785408
        %v2956 = vsel %vm2955, %v2954, %v2912
        %vm2957 = vcmask 916480
        %v2958 = vsel %vm2957, %v2956, %v2916
        %v2959 = vsel %vm2946, %v2863, %v2920
        %v2960 = vsel %vm328, %v2959, %v2924
        %v2961 = vsel %vm2949, %v2960, %v2928
        %v2962 = vsel %vm2951, %v2961, %v2932
        %v2963 = vsel %vm2953, %v2962, %v2936
        %v2964 = vsel %vm2955, %v2963, %v2940
        %v2965 = vsel %vm2957, %v2964, %v2944
        %v2966 = vlaneseq
        %v2967 = vshrl.u32 %v2966, 7
        %v2968 = vsub.s32 0, %v2967
        %v2969 = vrot.slane %v2958, %v2968
        %v2970 = vlaneseq
        %v2971 = vshrl.u32 %v2970, 7
        %v2972 = vsub.s32 0, %v2971
        %v2973 = vrot.slane %v2965, %v2972
        %v2974 = vmul.f32 %v513, %v2969
        %v2975 = vmul.f32 %v514, %v2973
        %v2976 = vmul.f32 %v515, %v2969
        %v2977 = vmul.f32 %v516, %v2973
        %v2978 = vmul.f32 %v517, %v2969
        %v2979 = vmul.f32 %v518, %v2973
        %v2980 = vmul.f32 %v519, %v2969
        %v2981 = vmul.f32 %v520, %v2973
        %2982 = vst [vmem:[%s229] sm:$0xff] %v2974
        %2983 = vst [vmem:[%s229 + $0x8] sm:$0xff] %v2975
        %2984 = vst [vmem:[%s229 + $0x10] sm:$0xff] %v2976
        %2985 = vst [vmem:[%s229 + $0x18] sm:$0xff] %v2977
        %2986 = vst [vmem:[%s229 + $0x20] sm:$0xff] %v2978
        %2987 = vst [vmem:[%s229 + $0x28] sm:$0xff] %v2979
        %2988 = vst [vmem:[%s229 + $0x30] sm:$0xff] %v2980
        %2989 = vst [vmem:[%s229 + $0x38] sm:$0xff] %v2981
        %s2990 = sand.u32 %s119, 1
        %s2991 = scalar_lea.sflag [#allocation5], %s2990
        %s2992 = sand.u32 %s119, 1
        %s2993 = smul.addr %s2992, 64
        %s2994 = scalar_lea.vmem [#allocation8], %s2993
        // Predicated region
        $region45: #{tpu_custom_call.1} parent=35 // pred_check
          %p2995 = pneg %p129
        $region46: #{tpu_custom_call.1} parent=35 // pred_check_branch
          %2997 = sbr.rel (%p2995) target = $region48
        $region47: #{tpu_custom_call.1} parent=35 // pred_region
          %s2999 = ssub.s32 1024, 1024
          %3000 = vsyncadd %s2991, %s2999
          %s3001 = smul.addr %s22, 8
          %s3002 = smul.addr %s3001, 128
          %s3003 = scalar_lea.hbm %s4, %s3002
          %s3004 = sshll.u32 %s2994, 4
          %s3005 = int_to_ptr.vmem [resolvable:$true] %s3004
          %3010 = dma.vmem_to_hbm [thread:$0]  %s3005, 1024, %s3003, %s2991, 256, 256, 16
        $region48: #{tpu_custom_call.1} parent=35 // pred_fallthru
          _
      $region36: #{tpu_custom_call.1} parent=5 // pred_fallthru
        _
      %p3011 = scmp.le.s32.totalorder 2, %s17
      // Predicated region
      $region49: #{tpu_custom_call.1} parent=5 // pred_check
        %p3012 = pneg %p3011
      $region50: #{tpu_custom_call.1} parent=5 // pred_check_branch
        %3014 = sbr.rel (%p3012) target = $region52
      $region51: #{tpu_custom_call.1} parent=5 // pred_region
        %s3015 = ssub.s32 %s17, 2
        // Predicated region
        $region53: #{tpu_custom_call.1} parent=51 // pred_check
          %p3016 = pneg %p135
        $region54: #{tpu_custom_call.1} parent=51 // pred_check_branch
          %3018 = sbr.rel (%p3016) target = $region56
        $region55: #{tpu_custom_call.1} parent=51 // pred_region
          %s3019 = sand.u32 %s120, 1
          %s3020 = scalar_lea.sflag [#allocation5], %s3019
          %s3021 = sand.u32 %s120, 1
          %s3022 = smul.addr %s3021, 64
          %s3023 = scalar_lea.vmem [#allocation8], %s3022
          %3024 = dma.done %s3020, 1024
        $region56: #{tpu_custom_call.1} parent=51 // pred_fallthru
          _
      $region52: #{tpu_custom_call.1} parent=5 // pred_fallthru
        _
    $region6: #{tpu_custom_call.1} parent=1 // loop_footer
      %s21 = sadd.s32 1, %s17
    $region7: #{tpu_custom_call.1} parent=1 // loop_footer_branch
      %16 = sbr.rel target = $region3
    $region8: #{tpu_custom_call.1} parent=1 // loop_exit
      _
    %3025 = vsyncpa [#allocation4], 1
    %s3026 = scalar_lea.sflag [#allocation4], 1
    %3027 = vsyncpa %s3026, 1
    %3028 = vsyncpa [#allocation5], 1
    %s3029 = scalar_lea.sflag [#allocation5], 1
    %3030 = vsyncpa %s3029, 1
    %3031 = vsyncpa [#allocation6], 1
    %s3032 = scalar_lea.sflag [#allocation6], 1
    %3033 = vsyncpa %s3032, 1

</llo_original>
